<compile_context>
chip_gen: v7x
topology: tpu7x:2x2x1
jax: 0.10.0
libtpu: 0.0.40
codegen_flags: <defaults>
</compile_context>

<pallas_src>
import functools

import jax
import jax.numpy as jnp
import numpy as np
from jax.experimental import pallas as pl
from jax.experimental.pallas import tpu as pltpu

# -------------------- architecture config (BasicBlock, expansion = 1) -------
N_BLOCKS = (1, 1, 1)          # blocks per layer (layer1, layer2, layer3)
CHANNELS = (16, 32, 64)       # channels per layer
OUTPUT_DIM = 10               # classifier output dim
BN_EPS = 1e-5

LANE = 128                    # TPU lane width: kernel outputs padded to 128
ACT_DTYPE = jnp.bfloat16      # matmul operands / activations (f32 accumulate)
VMEM_LIMIT = 32 * 1024 * 1024 # conservative scoped-VMEM budget, safe on v5e/v6e/v7x

_VMEM_SPEC = pl.BlockSpec(memory_space=pltpu.MemorySpace.VMEM)


def _round_up(x, m):
    return (x + m - 1) // m * m


# ------------------------------ Pallas kernels -------------------------------
def _conv_matmul_kernel(has_residual, apply_relu, *refs):
    """One (TM x N) output tile of relu?((patches @ w) * scale + bias [+ res]).

    Grid axes: (m_tile ["parallel"], k_step ["arbitrary"]).  A float32 VMEM
    scratch accumulates partial products over K; the BN / residual / ReLU
    epilogue runs once on the last K step.
    """
    if has_residual:
        p_ref, w_ref, s_ref, b_ref, r_ref, o_ref, acc_ref = refs
    else:
        p_ref, w_ref, s_ref, b_ref, o_ref, acc_ref = refs
        r_ref = None
    k = pl.program_id(1)

    @pl.when(k == 0)
    def _():
        acc_ref[...] = jnp.zeros_like(acc_ref)

    acc_ref[...] += jnp.dot(p_ref[...], w_ref[...],
                            preferred_element_type=jnp.float32)

    @pl.when(k == pl.num_programs(1) - 1)
    def _():
        y = acc_ref[...] * s_ref[...] + b_ref[...]
        if has_residual:
            y = y + r_ref[...].astype(jnp.float32)
        if apply_relu:
            y = jnp.maximum(y, 0.0)
        o_ref[...] = y.astype(o_ref.dtype)


def _maxpool_kernel(ho, wo, x_ref, o_ref, hmax_ref):
    """MaxPool2d(3, stride=2, padding done by caller) for one image, in VMEM.

    Step 1: vertical 3-tap max for every output row (contiguous reads).
    Step 2: horizontal 3-tap max at stride 2 via sublane-strided pl.ds reads
            from the f32 scratch (no [9, B*Ho*Wo, C] HBM materialization).
    """
    for yo in range(ho):      # static unroll; fine for the small maps here
        band = x_ref[:, pl.ds(2 * yo, 3), :, :].astype(jnp.float32)  # (1,3,Wp,C)
        hmax_ref[pl.ds(yo, 1), :, :] = jnp.max(band, axis=1)         # (1,Wp,C)
    acc = hmax_ref[:, pl.ds(0, wo, stride=2), :]
    acc = jnp.maximum(acc, hmax_ref[:, pl.ds(1, wo, stride=2), :])
    acc = jnp.maximum(acc, hmax_ref[:, pl.ds(2, wo, stride=2), :])
    o_ref[...] = acc[None].astype(o_ref.dtype)


def _pool_fc_kernel(inv_hw, x_ref, w_ref, b_ref, logits_ref, h_ref):
    """AdaptiveAvgPool2d((1,1)) fused with the final Linear (tiny operands)."""
    x = x_ref[...].astype(jnp.float32)          # (B, H*W, Cp)
    h = jnp.sum(x, axis=1) * inv_hw             # (B, Cp)
    h_ref[...] = h
    logits = jnp.dot(h.astype(ACT_DTYPE), w_ref[...],
                     preferred_element_type=jnp.float32) + b_ref[...]
    logits_ref[...] = logits


# ------------------------------ kernel wrappers ------------------------------
def _conv_matmul(patches, w_mat, scale, bias, residual, apply_relu, out_dtype):
    """Tiled fused matmul.  patches: (M,K) bf16, w: (K,N) bf16 (N % 128 == 0)."""
    M, K = patches.shape
    N = w_mat.shape[1]

    # --- tile selection ------------------------------------------------------
    TM = 512 if M >= 512 else _round_up(M, 8)        # 512-row tiles at scale
    M_pad = _round_up(M, TM)
    K_pad = _round_up(K, 8)                          # aligned K
    if K_pad <= 1024:
        TK = K_pad                                   # single reduction step
    else:
        TK = 512
        K_pad = _round_up(K_pad, TK)
    n_k = K_pad // TK

    if M_pad != M or K_pad != K:
        patches = jnp.pad(patches, ((0, M_pad - M), (0, K_pad - K)))
    if K_pad != K:
        w_mat = jnp.pad(w_mat, ((0, K_pad - K), (0, 0)))
    has_residual = residual is not None
    if has_residual and M_pad != M:
        residual = jnp.pad(residual, ((0, M_pad - M), (0, 0)))

    in_specs = [
        pl.BlockSpec((TM, TK), lambda i, k: (i, k)),     # patches: streamed
        pl.BlockSpec((TK, N), lambda i, k: (k, 0)),      # weights: resident per k
        pl.BlockSpec((1, N), lambda i, k: (0, 0)),       # scale: resident
        pl.BlockSpec((1, N), lambda i, k: (0, 0)),       # bias: resident
    ]
    args = [patches, w_mat, scale, bias]
    if has_residual:
        in_specs.append(pl.BlockSpec((TM, N), lambda i, k: (i, 0)))
        args.append(residual)

    bytes_accessed = int(sum(a.size * a.dtype.itemsize for a in args)
                         + M_pad * N * jnp.dtype(out_dtype).itemsize)
    cost = pl.CostEstimate(flops=int(2 * M_pad * K_pad * N),
                           transcendentals=0,
                           bytes_accessed=bytes_accessed)

    out = pl.pallas_call(
        functools.partial(_conv_matmul_kernel, has_residual, apply_relu),
        out_shape=jax.ShapeDtypeStruct((M_pad, N), out_dtype),
        grid_spec=pltpu.PrefetchScalarGridSpec(
            num_scalar_prefetch=0,
            grid=(M_pad // TM, n_k),
            in_specs=in_specs,
            out_specs=pl.BlockSpec((TM, N), lambda i, k: (i, 0)),
            scratch_shapes=[pltpu.VMEM((TM, N), jnp.float32)]),
        compiler_params=pltpu.CompilerParams(
            dimension_semantics=("parallel", "arbitrary"),
            vmem_limit_bytes=VMEM_LIMIT),
        cost_estimate=cost,
    )(*args)
    return out[:M]


def _im2col(x, kh, kw, stride, pad):
    """x: NHWC (bf16) -> patches [B*Ho*Wo, kh*kw*C].  XLA data-movement glue."""
    B, H, W, C = x.shape
    xp = jnp.pad(x, ((0, 0), (pad, pad), (pad, pad), (0, 0)))
    Hp, Wp = H + 2 * pad, W + 2 * pad
    Ho = (Hp - kh) // stride + 1
    Wo = (Wp - kw) // stride + 1
    cols = []
    for i in range(kh):
        for j in range(kw):
            cols.append(
                xp[:, i:i + (Ho - 1) * stride + 1:stride,
                      j:j + (Wo - 1) * stride + 1:stride, :])
    patches = jnp.stack(cols, axis=3)                       # [B,Ho,Wo,kh*kw,C]
    return patches.reshape(B * Ho * Wo, kh * kw * C), Ho, Wo


def conv_bn(x, w_oihw, scale, bias, *, stride, pad, relu, residual=None,
            out_dtype=ACT_DTYPE):
    """Conv2d(bias=False) + folded BN (+ residual) (+ ReLU).

    x is NHWC with channels possibly padded to 128; output is NHWC bf16 with
    channels padded to a multiple of 128 (lane-dense stores)."""
    B = x.shape[0]
    cout, cin, kh, kw = w_oihw.shape
    x = x[..., :cin].astype(ACT_DTYPE)                  # drop channel padding
    patches, Ho, Wo = _im2col(x, kh, kw, stride, pad)
    K = patches.shape[1]
    w_mat = (jnp.transpose(w_oihw, (2, 3, 1, 0))
             .reshape(K, cout).astype(ACT_DTYPE))

    n_pad = _round_up(cout, LANE)
    w_mat = jnp.pad(w_mat, ((0, 0), (0, n_pad - cout)))
    scale_p = jnp.pad(scale.reshape(1, -1).astype(jnp.float32),
                      ((0, 0), (0, n_pad - cout)))
    bias_p = jnp.pad(bias.reshape(1, -1).astype(jnp.float32),
                     ((0, 0), (0, n_pad - cout)))

    M = B * Ho * Wo
    res = None
    if residual is not None:
        res = residual.reshape(M, residual.shape[-1])
        if res.shape[1] != n_pad:
            res = jnp.pad(res, ((0, 0), (0, n_pad - res.shape[1])))
        res = res.astype(ACT_DTYPE)

    out = _conv_matmul(patches, w_mat, scale_p, bias_p, res, relu, out_dtype)
    return out.reshape(B, Ho, Wo, n_pad)


def maxpool_3x3_s2_p1(x):
    """MaxPool2d(kernel_size=3, stride=2, padding=1) on padded-channel NHWC."""
    B, H, W, C = x.shape
    Ho = (H + 2 - 3) // 2 + 1
    Wo = (W + 2 - 3) // 2 + 1
    neg = float(jnp.finfo(x.dtype).min)
    xp = jnp.pad(x, ((0, 0), (1, 1), (1, 1), (0, 0)), constant_values=neg)
    Hp, Wp = H + 2, W + 2
    return pl.pallas_call(
        functools.partial(_maxpool_kernel, Ho, Wo),
        out_shape=jax.ShapeDtypeStruct((B, Ho, Wo, C), x.dtype),
        grid_spec=pltpu.PrefetchScalarGridSpec(
            num_scalar_prefetch=0,
            grid=(B,),
            in_specs=[pl.BlockSpec((1, Hp, Wp, C), lambda b: (b, 0, 0, 0))],
            out_specs=pl.BlockSpec((1, Ho, Wo, C), lambda b: (b, 0, 0, 0)),
            scratch_shapes=[pltpu.VMEM((Ho, Wp, C), jnp.float32)]),
        compiler_params=pltpu.CompilerParams(
            dimension_semantics=("parallel",),
            vmem_limit_bytes=VMEM_LIMIT),
    )(xp)


def avgpool_fc(x, fc_w, fc_b):
    """AdaptiveAvgPool2d((1,1)) + view + Linear, fused.  x: (B,H,W,128) bf16."""
    B, H, W, Cp = x.shape
    c_true = fc_w.shape[1]
    out_dim = fc_w.shape[0]
    x_flat = x.reshape(B, H * W, Cp)
    w = jnp.zeros((Cp, LANE), ACT_DTYPE).at[:c_true, :out_dim].set(
        fc_w.T.astype(ACT_DTYPE))
    b = jnp.zeros((1, LANE), jnp.float32).at[:, :out_dim].set(
        fc_b.reshape(1, -1).astype(jnp.float32))
    # Operands are (B, H*W, 128) / (128, 128): small by construction, so a
    # single un-tiled VMEM block is fine here.
    logits_p, h_p = pl.pallas_call(
        functools.partial(_pool_fc_kernel, 1.0 / float(H * W)),
        out_shape=(jax.ShapeDtypeStruct((B, LANE), jnp.float32),
                   jax.ShapeDtypeStruct((B, Cp), jnp.float32)),
        in_specs=[_VMEM_SPEC] * 3,
        out_specs=(_VMEM_SPEC, _VMEM_SPEC),
        compiler_params=pltpu.CompilerParams(vmem_limit_bytes=VMEM_LIMIT),
    )(x_flat, w, b)
    return logits_p[:, :out_dim], h_p[:, :c_true]


# ------------------------------ parameters -----------------------------------
def _init_params(key):
    keys = iter(jax.random.split(key, 128))

    def conv_w(cout, cin, k):
        fan_in = cin * k * k
        return (jax.random.normal(next(keys), (cout, cin, k, k), jnp.float32)
                * (1.0 / np.sqrt(fan_in)))

    def bn(c):
        gamma = 1.0 + 0.1 * jax.random.normal(next(keys), (c,), jnp.float32)
        beta = 0.1 * jax.random.normal(next(keys), (c,), jnp.float32)
        rmean = 0.1 * jax.random.normal(next(keys), (c,), jnp.float32)
        rvar = 1.0 + 0.1 * jax.random.uniform(next(keys), (c,), jnp.float32)
        scale = gamma / jnp.sqrt(rvar + BN_EPS)
        bias = beta - rmean * scale
        return scale.reshape(1, c), bias.reshape(1, c)

    params = {
        'conv1_w': conv_w(CHANNELS[0], 3, 7),
        'bn1': bn(CHANNELS[0]),
    }

    in_ch = CHANNELS[0]
    layers = []
    for li, (nb, ch) in enumerate(zip(N_BLOCKS, CHANNELS)):
        layer_stride = 1 if li == 0 else 2
        blocks = []
        for bi in range(nb):
            stride = layer_stride if bi == 0 else 1
            # Matches the PyTorch spec: downsample iff channel count changes.
            downsample = (bi == 0 and in_ch != ch)  # BasicBlock.expansion == 1
            blk = {
                'conv1_w': conv_w(ch, in_ch if bi == 0 else ch, 3),
                'bn1': bn(ch),
                'conv2_w': conv_w(ch, ch, 3),
                'bn2': bn(ch),
                'stride': stride,
                'downsample': downsample,
            }
            if downsample:
                blk['down_w'] = conv_w(ch, in_ch, 1)
                blk['down_bn'] = bn(ch)
            blocks.append(blk)
            if bi == 0:
                in_ch = ch
        layers.append(blocks)

    params['layers'] = layers
    params['fc_w'] = (jax.random.normal(next(keys), (OUTPUT_DIM, in_ch), jnp.float32)
                      * (1.0 / np.sqrt(in_ch)))
    params['fc_b'] = 0.1 * jax.random.normal(next(keys), (OUTPUT_DIM,), jnp.float32)
    return params


# ------------------------------ forward pass ----------------------------------
def _basic_block_forward(x, blk):
    out = conv_bn(x, blk['conv1_w'], *blk['bn1'],
                  stride=blk['stride'], pad=1, relu=True)
    if blk['downsample']:
        identity = conv_bn(x, blk['down_w'], *blk['down_bn'],
                           stride=blk['stride'], pad=0, relu=False)
    else:
        identity = x
    # conv2 + bn2 + residual add + relu, all fused in the tiled matmul kernel
    out = conv_bn(out, blk['conv2_w'], *blk['bn2'],
                  stride=1, pad=1, relu=True, residual=identity)
    return out


def resnet_forward(x_nchw, params):
    x = jnp.transpose(x_nchw, (0, 2, 3, 1))                       # NCHW -> NHWC
    x = conv_bn(x, params['conv1_w'], *params['bn1'], stride=2, pad=3, relu=True)
    x = maxpool_3x3_s2_p1(x)
    for layer in params['layers']:
        for blk in layer:
            x = _basic_block_forward(x, blk)
    logits, h = avgpool_fc(x, params['fc_w'], params['fc_b'])
    return logits, h


# ----------------------------------- main --------------------------------------
if __name__ == "__main__":
    key = jax.random.PRNGKey(0)
    k_params, k_x = jax.random.split(key)
    params = _init_params(k_params)

    # Small NCHW input (3 channels required by conv1), 32x32 spatial.
    x = jax.random.normal(k_x, (2, 3, 32, 32), jnp.float32)

    fwd = jax.jit(lambda inp: resnet_forward(inp, params))
    logits, h = fwd(x)
    jax.block_until_ready(logits)
    jax.block_until_ready(h)

    assert logits.shape == (2, OUTPUT_DIM)
    assert h.shape == (2, CHANNELS[-1])
    print("KERNEL_OK")
</pallas_src>

<mosaic_0001>
module attributes {stable_mosaic.version = 11 : i64} {
  func.func @_conv_matmul_kernel(%arg0: i32, %arg1: i32, %arg2: memref<512x152xbf16, #tpu.memory_space<vmem>>, %arg3: memref<152x128xbf16, #tpu.memory_space<vmem>>, %arg4: memref<1x128xf32, #tpu.memory_space<vmem>>, %arg5: memref<1x128xf32, #tpu.memory_space<vmem>>, %arg6: memref<512x128xbf16, #tpu.memory_space<vmem>>, %arg7: memref<512x128xf32, #tpu.memory_space<vmem>>) attributes {dimension_semantics = [#tpu.dimension_semantics<parallel>, #tpu.dimension_semantics<arbitrary>], iteration_bounds = array<i64: 1, 1>, scalar_prefetch = 0 : i64, scratch_operands = 1 : i64, tpu.core_type = #tpu.core_type<tc>, window_params = [{transform_indices = @transform_0, window_bounds = array<i64: 512, 152>}, {transform_indices = @transform_1, window_bounds = array<i64: 152, 128>}, {pipeline_mode = #tpu.pipeline_mode<synchronous>, transform_indices = @transform_2, window_bounds = array<i64: 1, 128>}, {pipeline_mode = #tpu.pipeline_mode<synchronous>, transform_indices = @transform_3, window_bounds = array<i64: 1, 128>}, {transform_indices = @transform_4, window_bounds = array<i64: 512, 128>}]} {
    %c0_i32 = arith.constant 0 : i32
    %0 = arith.cmpi eq, %arg1, %c0_i32 : i32
    %1 = arith.extui %0 : i1 to i32
    %c0_i32_0 = arith.constant 0 : i32
    %2 = arith.cmpi ne, %1, %c0_i32_0 : i32
    scf.if %2 {
      %cst_10 = arith.constant 0.000000e+00 : f32
      %12 = vector.broadcast %cst_10 : f32 to vector<512x128xf32>
      %c0_11 = arith.constant 0 : index
      %c0_12 = arith.constant 0 : index
      %13 = vector.load %arg7[%c0_11, %c0_12] : memref<512x128xf32, #tpu.memory_space<vmem>>, vector<512x128xf32>
      tpu.vector_store %arg7[%c0_11, %c0_12], %12 {strides = array<i32>} : memref<512x128xf32, #tpu.memory_space<vmem>>, vector<512x128xf32>,
    } else {
    }
    %c0 = arith.constant 0 : index
    %c0_1 = arith.constant 0 : index
    %3 = vector.load %arg7[%c0, %c0_1] : memref<512x128xf32, #tpu.memory_space<vmem>>, vector<512x128xf32>
    %c0_2 = arith.constant 0 : index
    %c0_3 = arith.constant 0 : index
    %4 = vector.load %arg2[%c0_2, %c0_3] : memref<512x152xbf16, #tpu.memory_space<vmem>>, vector<512x152xbf16>
    %c0_4 = arith.constant 0 : index
    %c0_5 = arith.constant 0 : index
    %5 = vector.load %arg3[%c0_4, %c0_5] : memref<152x128xbf16, #tpu.memory_space<vmem>>, vector<152x128xbf16>
    %cst = arith.constant dense<0.000000e+00> : vector<512x128xf32>
    %6 = tpu.matmul %4, %5, %cst {dimension_numbers = #tpu.dot_dimension_numbers<[1], [0], [0], [1], [0, 0, 1, 1], [], []>} : vector<512x152xbf16>, vector<152x128xbf16>, vector<512x128xf32> -> vector<512x128xf32>
    %7 = arith.addf %3, %6 : vector<512x128xf32>
    %c0_6 = arith.constant 0 : index
    %c0_7 = arith.constant 0 : index
    %8 = vector.load %arg7[%c0_6, %c0_7] : memref<512x128xf32, #tpu.memory_space<vmem>>, vector<512x128xf32>
    tpu.vector_store %arg7[%c0_6, %c0_7], %7 {strides = array<i32>} : memref<512x128xf32, #tpu.memory_space<vmem>>, vector<512x128xf32>,
    %c0_i32_8 = arith.constant 0 : i32
    %9 = arith.cmpi eq, %arg1, %c0_i32_8 : i32
    %10 = arith.extui %9 : i1 to i32
    %c0_i32_9 = arith.constant 0 : i32
    %11 = arith.cmpi ne, %10, %c0_i32_9 : i32
    scf.if %11 {
      %c0_10 = arith.constant 0 : index
      %c0_11 = arith.constant 0 : index
      %12 = vector.load %arg7[%c0_10, %c0_11] : memref<512x128xf32, #tpu.memory_space<vmem>>, vector<512x128xf32>
      %c0_12 = arith.constant 0 : index
      %c0_13 = arith.constant 0 : index
      %13 = vector.load %arg4[%c0_12, %c0_13] : memref<1x128xf32, #tpu.memory_space<vmem>>, vector<1x128xf32>
      %14 = vector.broadcast %13 : vector<1x128xf32> to vector<512x128xf32>
      %15 = arith.mulf %12, %14 : vector<512x128xf32>
      %c0_14 = arith.constant 0 : index
      %c0_15 = arith.constant 0 : index
      %16 = vector.load %arg5[%c0_14, %c0_15] : memref<1x128xf32, #tpu.memory_space<vmem>>, vector<1x128xf32>
      %17 = vector.broadcast %16 : vector<1x128xf32> to vector<512x128xf32>
      %18 = arith.addf %15, %17 : vector<512x128xf32>
      %cst_16 = arith.constant 0.000000e+00 : f32
      %19 = vector.broadcast %cst_16 : f32 to vector<512x128xf32>
      %20 = arith.maximumf %18, %19 : vector<512x128xf32>
      %21 = arith.truncf %20 : vector<512x128xf32> to vector<512x128xbf16>
      %c0_17 = arith.constant 0 : index
      %c0_18 = arith.constant 0 : index
      %22 = vector.load %arg6[%c0_17, %c0_18] : memref<512x128xbf16, #tpu.memory_space<vmem>>, vector<512x128xbf16>
      tpu.vector_store %arg6[%c0_17, %c0_18], %21 {strides = array<i32>} : memref<512x128xbf16, #tpu.memory_space<vmem>>, vector<512x128xbf16>,
    } else {
    }
    return
  }
  func.func @transform_0(%arg0: i32, %arg1: i32) -> (i32, i32) {
    %c0_i32 = arith.constant 0 : i32
    return %arg0, %arg1 : i32, i32
  }
  func.func @transform_1(%arg0: i32, %arg1: i32) -> (i32, i32) {
    %c0_i32 = arith.constant 0 : i32
    %c0_i32_0 = arith.constant 0 : i32
    return %arg1, %c0_i32 : i32, i32
  }
  func.func @transform_2(%arg0: i32, %arg1: i32) -> (i32, i32) {
    %c0_i32 = arith.constant 0 : i32
    %c0_i32_0 = arith.constant 0 : i32
    %c0_i32_1 = arith.constant 0 : i32
    return %c0_i32, %c0_i32_0 : i32, i32
  }
  func.func @transform_3(%arg0: i32, %arg1: i32) -> (i32, i32) {
    %c0_i32 = arith.constant 0 : i32
    %c0_i32_0 = arith.constant 0 : i32
    %c0_i32_1 = arith.constant 0 : i32
    return %c0_i32, %c0_i32_0 : i32, i32
  }
  func.func @transform_4(%arg0: i32, %arg1: i32) -> (i32, i32) {
    %c0_i32 = arith.constant 0 : i32
    %c0_i32_0 = arith.constant 0 : i32
    return %arg0, %c0_i32 : i32, i32
  }
}

module attributes {stable_mosaic.version = 11 : i64} {
  func.func @_maxpool_kernel(%arg0: i32, %arg1: memref<1x18x18x128xbf16, #tpu.memory_space<vmem>>, %arg2: memref<1x8x8x128xbf16, #tpu.memory_space<vmem>>, %arg3: memref<8x18x128xf32, #tpu.memory_space<vmem>>) attributes {dimension_semantics = [#tpu.dimension_semantics<parallel>], iteration_bounds = array<i64: 2>, scalar_prefetch = 0 : i64, scratch_operands = 1 : i64, tpu.core_type = #tpu.core_type<tc>, window_params = [{transform_indices = @transform_0, window_bounds = array<i64: 1, 18, 18, 128>}, {transform_indices = @transform_1, window_bounds = array<i64: 1, 8, 8, 128>}]} {
    %c0 = arith.constant 0 : index
    %c0_0 = arith.constant 0 : index
    %c0_1 = arith.constant 0 : index
    %c0_2 = arith.constant 0 : index
    %0 = vector.load %arg1[%c0, %c0_0, %c0_1, %c0_2] : memref<1x18x18x128xbf16, #tpu.memory_space<vmem>>, vector<1x3x18x128xbf16>
    %1 = arith.extf %0 : vector<1x3x18x128xbf16> to vector<1x3x18x128xf32>
    %cst = arith.constant dense<0xFF800000> : vector<1x18x128xf32>
    %2 = vector.multi_reduction <maximumf>, %1, %cst [1] : vector<1x3x18x128xf32> to vector<1x18x128xf32>
    %c0_3 = arith.constant 0 : index
    %c0_4 = arith.constant 0 : index
    %c0_5 = arith.constant 0 : index
    %3 = vector.load %arg3[%c0_3, %c0_4, %c0_5] : memref<8x18x128xf32, #tpu.memory_space<vmem>>, vector<1x18x128xf32>
    tpu.vector_store %arg3[%c0_3, %c0_4, %c0_5], %2 {strides = array<i32>} : memref<8x18x128xf32, #tpu.memory_space<vmem>>, vector<1x18x128xf32>,
    %c0_6 = arith.constant 0 : index
    %c2 = arith.constant 2 : index
    %c0_7 = arith.constant 0 : index
    %c0_8 = arith.constant 0 : index
    %4 = vector.load %arg1[%c0_6, %c2, %c0_7, %c0_8] : memref<1x18x18x128xbf16, #tpu.memory_space<vmem>>, vector<1x3x18x128xbf16>
    %5 = arith.extf %4 : vector<1x3x18x128xbf16> to vector<1x3x18x128xf32>
    %cst_9 = arith.constant dense<0xFF800000> : vector<1x18x128xf32>
    %6 = vector.multi_reduction <maximumf>, %5, %cst_9 [1] : vector<1x3x18x128xf32> to vector<1x18x128xf32>
    %c1 = arith.constant 1 : index
    %c0_10 = arith.constant 0 : index
    %c0_11 = arith.constant 0 : index
    %7 = vector.load %arg3[%c1, %c0_10, %c0_11] : memref<8x18x128xf32, #tpu.memory_space<vmem>>, vector<1x18x128xf32>
    tpu.vector_store %arg3[%c1, %c0_10, %c0_11], %6 {strides = array<i32>} : memref<8x18x128xf32, #tpu.memory_space<vmem>>, vector<1x18x128xf32>,
    %c0_12 = arith.constant 0 : index
    %c4 = arith.constant 4 : index
    %c0_13 = arith.constant 0 : index
    %c0_14 = arith.constant 0 : index
    %8 = vector.load %arg1[%c0_12, %c4, %c0_13, %c0_14] : memref<1x18x18x128xbf16, #tpu.memory_space<vmem>>, vector<1x3x18x128xbf16>
    %9 = arith.extf %8 : vector<1x3x18x128xbf16> to vector<1x3x18x128xf32>
    %cst_15 = arith.constant dense<0xFF800000> : vector<1x18x128xf32>
    %10 = vector.multi_reduction <maximumf>, %9, %cst_15 [1] : vector<1x3x18x128xf32> to vector<1x18x128xf32>
    %c2_16 = arith.constant 2 : index
    %c0_17 = arith.constant 0 : index
    %c0_18 = arith.constant 0 : index
    %11 = vector.load %arg3[%c2_16, %c0_17, %c0_18] : memref<8x18x128xf32, #tpu.memory_space<vmem>>, vector<1x18x128xf32>
    tpu.vector_store %arg3[%c2_16, %c0_17, %c0_18], %10 {strides = array<i32>} : memref<8x18x128xf32, #tpu.memory_space<vmem>>, vector<1x18x128xf32>,
    %c0_19 = arith.constant 0 : index
    %c6 = arith.constant 6 : index
    %c0_20 = arith.constant 0 : index
    %c0_21 = arith.constant 0 : index
    %12 = vector.load %arg1[%c0_19, %c6, %c0_20, %c0_21] : memref<1x18x18x128xbf16, #tpu.memory_space<vmem>>, vector<1x3x18x128xbf16>
    %13 = arith.extf %12 : vector<1x3x18x128xbf16> to vector<1x3x18x128xf32>
    %cst_22 = arith.constant dense<0xFF800000> : vector<1x18x128xf32>
    %14 = vector.multi_reduction <maximumf>, %13, %cst_22 [1] : vector<1x3x18x128xf32> to vector<1x18x128xf32>
    %c3 = arith.constant 3 : index
    %c0_23 = arith.constant 0 : index
    %c0_24 = arith.constant 0 : index
    %15 = vector.load %arg3[%c3, %c0_23, %c0_24] : memref<8x18x128xf32, #tpu.memory_space<vmem>>, vector<1x18x128xf32>
    tpu.vector_store %arg3[%c3, %c0_23, %c0_24], %14 {strides = array<i32>} : memref<8x18x128xf32, #tpu.memory_space<vmem>>, vector<1x18x128xf32>,
    %c0_25 = arith.constant 0 : index
    %c8 = arith.constant 8 : index
    %c0_26 = arith.constant 0 : index
    %c0_27 = arith.constant 0 : index
    %16 = vector.load %arg1[%c0_25, %c8, %c0_26, %c0_27] : memref<1x18x18x128xbf16, #tpu.memory_space<vmem>>, vector<1x3x18x128xbf16>
    %17 = arith.extf %16 : vector<1x3x18x128xbf16> to vector<1x3x18x128xf32>
    %cst_28 = arith.constant dense<0xFF800000> : vector<1x18x128xf32>
    %18 = vector.multi_reduction <maximumf>, %17, %cst_28 [1] : vector<1x3x18x128xf32> to vector<1x18x128xf32>
    %c4_29 = arith.constant 4 : index
    %c0_30 = arith.constant 0 : index
    %c0_31 = arith.constant 0 : index
    %19 = vector.load %arg3[%c4_29, %c0_30, %c0_31] : memref<8x18x128xf32, #tpu.memory_space<vmem>>, vector<1x18x128xf32>
    tpu.vector_store %arg3[%c4_29, %c0_30, %c0_31], %18 {strides = array<i32>} : memref<8x18x128xf32, #tpu.memory_space<vmem>>, vector<1x18x128xf32>,
    %c0_32 = arith.constant 0 : index
    %c10 = arith.constant 10 : index
    %c0_33 = arith.constant 0 : index
    %c0_34 = arith.constant 0 : index
    %20 = vector.load %arg1[%c0_32, %c10, %c0_33, %c0_34] : memref<1x18x18x128xbf16, #tpu.memory_space<vmem>>, vector<1x3x18x128xbf16>
    %21 = arith.extf %20 : vector<1x3x18x128xbf16> to vector<1x3x18x128xf32>
    %cst_35 = arith.constant dense<0xFF800000> : vector<1x18x128xf32>
    %22 = vector.multi_reduction <maximumf>, %21, %cst_35 [1] : vector<1x3x18x128xf32> to vector<1x18x128xf32>
    %c5 = arith.constant 5 : index
    %c0_36 = arith.constant 0 : index
    %c0_37 = arith.constant 0 : index
    %23 = vector.load %arg3[%c5, %c0_36, %c0_37] : memref<8x18x128xf32, #tpu.memory_space<vmem>>, vector<1x18x128xf32>
    tpu.vector_store %arg3[%c5, %c0_36, %c0_37], %22 {strides = array<i32>} : memref<8x18x128xf32, #tpu.memory_space<vmem>>, vector<1x18x128xf32>,
    %c0_38 = arith.constant 0 : index
    %c12 = arith.constant 12 : index
    %c0_39 = arith.constant 0 : index
    %c0_40 = arith.constant 0 : index
    %24 = vector.load %arg1[%c0_38, %c12, %c0_39, %c0_40] : memref<1x18x18x128xbf16, #tpu.memory_space<vmem>>, vector<1x3x18x128xbf16>
    %25 = arith.extf %24 : vector<1x3x18x128xbf16> to vector<1x3x18x128xf32>
    %cst_41 = arith.constant dense<0xFF800000> : vector<1x18x128xf32>
    %26 = vector.multi_reduction <maximumf>, %25, %cst_41 [1] : vector<1x3x18x128xf32> to vector<1x18x128xf32>
    %c6_42 = arith.constant 6 : index
    %c0_43 = arith.constant 0 : index
    %c0_44 = arith.constant 0 : index
    %27 = vector.load %arg3[%c6_42, %c0_43, %c0_44] : memref<8x18x128xf32, #tpu.memory_space<vmem>>, vector<1x18x128xf32>
    tpu.vector_store %arg3[%c6_42, %c0_43, %c0_44], %26 {strides = array<i32>} : memref<8x18x128xf32, #tpu.memory_space<vmem>>, vector<1x18x128xf32>,
    %c0_45 = arith.constant 0 : index
    %c14 = arith.constant 14 : index
    %c0_46 = arith.constant 0 : index
    %c0_47 = arith.constant 0 : index
    %28 = vector.load %arg1[%c0_45, %c14, %c0_46, %c0_47] : memref<1x18x18x128xbf16, #tpu.memory_space<vmem>>, vector<1x3x18x128xbf16>
    %29 = arith.extf %28 : vector<1x3x18x128xbf16> to vector<1x3x18x128xf32>
    %cst_48 = arith.constant dense<0xFF800000> : vector<1x18x128xf32>
    %30 = vector.multi_reduction <maximumf>, %29, %cst_48 [1] : vector<1x3x18x128xf32> to vector<1x18x128xf32>
    %c7 = arith.constant 7 : index
    %c0_49 = arith.constant 0 : index
    %c0_50 = arith.constant 0 : index
    %31 = vector.load %arg3[%c7, %c0_49, %c0_50] : memref<8x18x128xf32, #tpu.memory_space<vmem>>, vector<1x18x128xf32>
    tpu.vector_store %arg3[%c7, %c0_49, %c0_50], %30 {strides = array<i32>} : memref<8x18x128xf32, #tpu.memory_space<vmem>>, vector<1x18x128xf32>,
    %c0_51 = arith.constant 0 : index
    %c0_52 = arith.constant 0 : index
    %c0_53 = arith.constant 0 : index
    %32 = tpu.strided_load %arg3[%c0_51, %c0_52, %c0_53] {strides = array<i32: 1, 2, 1>} : memref<8x18x128xf32, #tpu.memory_space<vmem>>, vector<8x8x128xf32>
    %c0_54 = arith.constant 0 : index
    %c1_55 = arith.constant 1 : index
    %c0_56 = arith.constant 0 : index
    %33 = tpu.strided_load %arg3[%c0_54, %c1_55, %c0_56] {strides = array<i32: 1, 2, 1>} : memref<8x18x128xf32, #tpu.memory_space<vmem>>, vector<8x8x128xf32>
    %34 = arith.maximumf %32, %33 : vector<8x8x128xf32>
    %c0_57 = arith.constant 0 : index
    %c2_58 = arith.constant 2 : index
    %c0_59 = arith.constant 0 : index
    %35 = tpu.strided_load %arg3[%c0_57, %c2_58, %c0_59] {strides = array<i32: 1, 2, 1>} : memref<8x18x128xf32, #tpu.memory_space<vmem>>, vector<8x8x128xf32>
    %36 = arith.maximumf %34, %35 : vector<8x8x128xf32>
    %37 = vector.shape_cast %36 : vector<8x8x128xf32> to vector<1x8x8x128xf32>
    %38 = arith.truncf %37 : vector<1x8x8x128xf32> to vector<1x8x8x128xbf16>
    %c0_60 = arith.constant 0 : index
    %c0_61 = arith.constant 0 : index
    %c0_62 = arith.constant 0 : index
    %c0_63 = arith.constant 0 : index
    %39 = vector.load %arg2[%c0_60, %c0_61, %c0_62, %c0_63] : memref<1x8x8x128xbf16, #tpu.memory_space<vmem>>, vector<1x8x8x128xbf16>
    tpu.vector_store %arg2[%c0_60, %c0_61, %c0_62, %c0_63], %38 {strides = array<i32>} : memref<1x8x8x128xbf16, #tpu.memory_space<vmem>>, vector<1x8x8x128xbf16>,
    return
  }
  func.func @transform_0(%arg0: i32) -> (i32, i32, i32, i32) {
    %c0_i32 = arith.constant 0 : i32
    %c0_i32_0 = arith.constant 0 : i32
    %c0_i32_1 = arith.constant 0 : i32
    %c0_i32_2 = arith.constant 0 : i32
    return %arg0, %c0_i32, %c0_i32_0, %c0_i32_1 : i32, i32, i32, i32
  }
  func.func @transform_1(%arg0: i32) -> (i32, i32, i32, i32) {
    %c0_i32 = arith.constant 0 : i32
    %c0_i32_0 = arith.constant 0 : i32
    %c0_i32_1 = arith.constant 0 : i32
    %c0_i32_2 = arith.constant 0 : i32
    return %arg0, %c0_i32, %c0_i32_0, %c0_i32_1 : i32, i32, i32, i32
  }
}

module attributes {stable_mosaic.version = 11 : i64} {
  func.func @_conv_matmul_kernel(%arg0: i32, %arg1: i32, %arg2: memref<128x144xbf16, #tpu.memory_space<vmem>>, %arg3: memref<144x128xbf16, #tpu.memory_space<vmem>>, %arg4: memref<1x128xf32, #tpu.memory_space<vmem>>, %arg5: memref<1x128xf32, #tpu.memory_space<vmem>>, %arg6: memref<128x128xbf16, #tpu.memory_space<vmem>>, %arg7: memref<128x128xf32, #tpu.memory_space<vmem>>) attributes {dimension_semantics = [#tpu.dimension_semantics<parallel>, #tpu.dimension_semantics<arbitrary>], iteration_bounds = array<i64: 1, 1>, scalar_prefetch = 0 : i64, scratch_operands = 1 : i64, tpu.core_type = #tpu.core_type<tc>, window_params = [{transform_indices = @transform_0, window_bounds = array<i64: 128, 144>}, {transform_indices = @transform_1, window_bounds = array<i64: 144, 128>}, {pipeline_mode = #tpu.pipeline_mode<synchronous>, transform_indices = @transform_2, window_bounds = array<i64: 1, 128>}, {pipeline_mode = #tpu.pipeline_mode<synchronous>, transform_indices = @transform_3, window_bounds = array<i64: 1, 128>}, {transform_indices = @transform_4, window_bounds = array<i64: 128, 128>}]} {
    %c0_i32 = arith.constant 0 : i32
    %0 = arith.cmpi eq, %arg1, %c0_i32 : i32
    %1 = arith.extui %0 : i1 to i32
    %c0_i32_0 = arith.constant 0 : i32
    %2 = arith.cmpi ne, %1, %c0_i32_0 : i32
    scf.if %2 {
      %cst_10 = arith.constant 0.000000e+00 : f32
      %12 = vector.broadcast %cst_10 : f32 to vector<128x128xf32>
      %c0_11 = arith.constant 0 : index
      %c0_12 = arith.constant 0 : index
      %13 = vector.load %arg7[%c0_11, %c0_12] : memref<128x128xf32, #tpu.memory_space<vmem>>, vector<128x128xf32>
      tpu.vector_store %arg7[%c0_11, %c0_12], %12 {strides = array<i32>} : memref<128x128xf32, #tpu.memory_space<vmem>>, vector<128x128xf32>,
    } else {
    }
    %c0 = arith.constant 0 : index
    %c0_1 = arith.constant 0 : index
    %3 = vector.load %arg7[%c0, %c0_1] : memref<128x128xf32, #tpu.memory_space<vmem>>, vector<128x128xf32>
    %c0_2 = arith.constant 0 : index
    %c0_3 = arith.constant 0 : index
    %4 = vector.load %arg2[%c0_2, %c0_3] : memref<128x144xbf16, #tpu.memory_space<vmem>>, vector<128x144xbf16>
    %c0_4 = arith.constant 0 : index
    %c0_5 = arith.constant 0 : index
    %5 = vector.load %arg3[%c0_4, %c0_5] : memref<144x128xbf16, #tpu.memory_space<vmem>>, vector<144x128xbf16>
    %cst = arith.constant dense<0.000000e+00> : vector<128x128xf32>
    %6 = tpu.matmul %4, %5, %cst {dimension_numbers = #tpu.dot_dimension_numbers<[1], [0], [0], [1], [0, 0, 1, 1], [], []>} : vector<128x144xbf16>, vector<144x128xbf16>, vector<128x128xf32> -> vector<128x128xf32>
    %7 = arith.addf %3, %6 : vector<128x128xf32>
    %c0_6 = arith.constant 0 : index
    %c0_7 = arith.constant 0 : index
    %8 = vector.load %arg7[%c0_6, %c0_7] : memref<128x128xf32, #tpu.memory_space<vmem>>, vector<128x128xf32>
    tpu.vector_store %arg7[%c0_6, %c0_7], %7 {strides = array<i32>} : memref<128x128xf32, #tpu.memory_space<vmem>>, vector<128x128xf32>,
    %c0_i32_8 = arith.constant 0 : i32
    %9 = arith.cmpi eq, %arg1, %c0_i32_8 : i32
    %10 = arith.extui %9 : i1 to i32
    %c0_i32_9 = arith.constant 0 : i32
    %11 = arith.cmpi ne, %10, %c0_i32_9 : i32
    scf.if %11 {
      %c0_10 = arith.constant 0 : index
      %c0_11 = arith.constant 0 : index
      %12 = vector.load %arg7[%c0_10, %c0_11] : memref<128x128xf32, #tpu.memory_space<vmem>>, vector<128x128xf32>
      %c0_12 = arith.constant 0 : index
      %c0_13 = arith.constant 0 : index
      %13 = vector.load %arg4[%c0_12, %c0_13] : memref<1x128xf32, #tpu.memory_space<vmem>>, vector<1x128xf32>
      %14 = vector.broadcast %13 : vector<1x128xf32> to vector<128x128xf32>
      %15 = arith.mulf %12, %14 : vector<128x128xf32>
      %c0_14 = arith.constant 0 : index
      %c0_15 = arith.constant 0 : index
      %16 = vector.load %arg5[%c0_14, %c0_15] : memref<1x128xf32, #tpu.memory_space<vmem>>, vector<1x128xf32>
      %17 = vector.broadcast %16 : vector<1x128xf32> to vector<128x128xf32>
      %18 = arith.addf %15, %17 : vector<128x128xf32>
      %cst_16 = arith.constant 0.000000e+00 : f32
      %19 = vector.broadcast %cst_16 : f32 to vector<128x128xf32>
      %20 = arith.maximumf %18, %19 : vector<128x128xf32>
      %21 = arith.truncf %20 : vector<128x128xf32> to vector<128x128xbf16>
      %c0_17 = arith.constant 0 : index
      %c0_18 = arith.constant 0 : index
      %22 = vector.load %arg6[%c0_17, %c0_18] : memref<128x128xbf16, #tpu.memory_space<vmem>>, vector<128x128xbf16>
      tpu.vector_store %arg6[%c0_17, %c0_18], %21 {strides = array<i32>} : memref<128x128xbf16, #tpu.memory_space<vmem>>, vector<128x128xbf16>,
    } else {
    }
    return
  }
  func.func @transform_0(%arg0: i32, %arg1: i32) -> (i32, i32) {
    %c0_i32 = arith.constant 0 : i32
    return %arg0, %arg1 : i32, i32
  }
  func.func @transform_1(%arg0: i32, %arg1: i32) -> (i32, i32) {
    %c0_i32 = arith.constant 0 : i32
    %c0_i32_0 = arith.constant 0 : i32
    return %arg1, %c0_i32 : i32, i32
  }
  func.func @transform_2(%arg0: i32, %arg1: i32) -> (i32, i32) {
    %c0_i32 = arith.constant 0 : i32
    %c0_i32_0 = arith.constant 0 : i32
    %c0_i32_1 = arith.constant 0 : i32
    return %c0_i32, %c0_i32_0 : i32, i32
  }
  func.func @transform_3(%arg0: i32, %arg1: i32) -> (i32, i32) {
    %c0_i32 = arith.constant 0 : i32
    %c0_i32_0 = arith.constant 0 : i32
    %c0_i32_1 = arith.constant 0 : i32
    return %c0_i32, %c0_i32_0 : i32, i32
  }
  func.func @transform_4(%arg0: i32, %arg1: i32) -> (i32, i32) {
    %c0_i32 = arith.constant 0 : i32
    %c0_i32_0 = arith.constant 0 : i32
    return %arg0, %c0_i32 : i32, i32
  }
}

module attributes {stable_mosaic.version = 11 : i64} {
  func.func @_conv_matmul_kernel(%arg0: i32, %arg1: i32, %arg2: memref<128x144xbf16, #tpu.memory_space<vmem>>, %arg3: memref<144x128xbf16, #tpu.memory_space<vmem>>, %arg4: memref<1x128xf32, #tpu.memory_space<vmem>>, %arg5: memref<1x128xf32, #tpu.memory_space<vmem>>, %arg6: memref<128x128xbf16, #tpu.memory_space<vmem>>, %arg7: memref<128x128xbf16, #tpu.memory_space<vmem>>, %arg8: memref<128x128xf32, #tpu.memory_space<vmem>>) attributes {dimension_semantics = [#tpu.dimension_semantics<parallel>, #tpu.dimension_semantics<arbitrary>], iteration_bounds = array<i64: 1, 1>, scalar_prefetch = 0 : i64, scratch_operands = 1 : i64, tpu.core_type = #tpu.core_type<tc>, window_params = [{transform_indices = @transform_0, window_bounds = array<i64: 128, 144>}, {transform_indices = @transform_1, window_bounds = array<i64: 144, 128>}, {pipeline_mode = #tpu.pipeline_mode<synchronous>, transform_indices = @transform_2, window_bounds = array<i64: 1, 128>}, {pipeline_mode = #tpu.pipeline_mode<synchronous>, transform_indices = @transform_3, window_bounds = array<i64: 1, 128>}, {transform_indices = @transform_4, window_bounds = array<i64: 128, 128>}, {transform_indices = @transform_5, window_bounds = array<i64: 128, 128>}]} {
    %c0_i32 = arith.constant 0 : i32
    %0 = arith.cmpi eq, %arg1, %c0_i32 : i32
    %1 = arith.extui %0 : i1 to i32
    %c0_i32_0 = arith.constant 0 : i32
    %2 = arith.cmpi ne, %1, %c0_i32_0 : i32
    scf.if %2 {
      %cst_10 = arith.constant 0.000000e+00 : f32
      %12 = vector.broadcast %cst_10 : f32 to vector<128x128xf32>
      %c0_11 = arith.constant 0 : index
      %c0_12 = arith.constant 0 : index
      %13 = vector.load %arg8[%c0_11, %c0_12] : memref<128x128xf32, #tpu.memory_space<vmem>>, vector<128x128xf32>
      tpu.vector_store %arg8[%c0_11, %c0_12], %12 {strides = array<i32>} : memref<128x128xf32, #tpu.memory_space<vmem>>, vector<128x128xf32>,
    } else {
    }
    %c0 = arith.constant 0 : index
    %c0_1 = arith.constant 0 : index
    %3 = vector.load %arg8[%c0, %c0_1] : memref<128x128xf32, #tpu.memory_space<vmem>>, vector<128x128xf32>
    %c0_2 = arith.constant 0 : index
    %c0_3 = arith.constant 0 : index
    %4 = vector.load %arg2[%c0_2, %c0_3] : memref<128x144xbf16, #tpu.memory_space<vmem>>, vector<128x144xbf16>
    %c0_4 = arith.constant 0 : index
    %c0_5 = arith.constant 0 : index
    %5 = vector.load %arg3[%c0_4, %c0_5] : memref<144x128xbf16, #tpu.memory_space<vmem>>, vector<144x128xbf16>
    %cst = arith.constant dense<0.000000e+00> : vector<128x128xf32>
    %6 = tpu.matmul %4, %5, %cst {dimension_numbers = #tpu.dot_dimension_numbers<[1], [0], [0], [1], [0, 0, 1, 1], [], []>} : vector<128x144xbf16>, vector<144x128xbf16>, vector<128x128xf32> -> vector<128x128xf32>
    %7 = arith.addf %3, %6 : vector<128x128xf32>
    %c0_6 = arith.constant 0 : index
    %c0_7 = arith.constant 0 : index
    %8 = vector.load %arg8[%c0_6, %c0_7] : memref<128x128xf32, #tpu.memory_space<vmem>>, vector<128x128xf32>
    tpu.vector_store %arg8[%c0_6, %c0_7], %7 {strides = array<i32>} : memref<128x128xf32, #tpu.memory_space<vmem>>, vector<128x128xf32>,
    %c0_i32_8 = arith.constant 0 : i32
    %9 = arith.cmpi eq, %arg1, %c0_i32_8 : i32
    %10 = arith.extui %9 : i1 to i32
    %c0_i32_9 = arith.constant 0 : i32
    %11 = arith.cmpi ne, %10, %c0_i32_9 : i32
    scf.if %11 {
      %c0_10 = arith.constant 0 : index
      %c0_11 = arith.constant 0 : index
      %12 = vector.load %arg8[%c0_10, %c0_11] : memref<128x128xf32, #tpu.memory_space<vmem>>, vector<128x128xf32>
      %c0_12 = arith.constant 0 : index
      %c0_13 = arith.constant 0 : index
      %13 = vector.load %arg4[%c0_12, %c0_13] : memref<1x128xf32, #tpu.memory_space<vmem>>, vector<1x128xf32>
      %14 = vector.broadcast %13 : vector<1x128xf32> to vector<128x128xf32>
      %15 = arith.mulf %12, %14 : vector<128x128xf32>
      %c0_14 = arith.constant 0 : index
      %c0_15 = arith.constant 0 : index
      %16 = vector.load %arg5[%c0_14, %c0_15] : memref<1x128xf32, #tpu.memory_space<vmem>>, vector<1x128xf32>
      %17 = vector.broadcast %16 : vector<1x128xf32> to vector<128x128xf32>
      %18 = arith.addf %15, %17 : vector<128x128xf32>
      %c0_16 = arith.constant 0 : index
      %c0_17 = arith.constant 0 : index
      %19 = vector.load %arg6[%c0_16, %c0_17] : memref<128x128xbf16, #tpu.memory_space<vmem>>, vector<128x128xbf16>
      %20 = arith.extf %19 : vector<128x128xbf16> to vector<128x128xf32>
      %21 = arith.addf %18, %20 : vector<128x128xf32>
      %cst_18 = arith.constant 0.000000e+00 : f32
      %22 = vector.broadcast %cst_18 : f32 to vector<128x128xf32>
      %23 = arith.maximumf %21, %22 : vector<128x128xf32>
      %24 = arith.truncf %23 : vector<128x128xf32> to vector<128x128xbf16>
      %c0_19 = arith.constant 0 : index
      %c0_20 = arith.constant 0 : index
      %25 = vector.load %arg7[%c0_19, %c0_20] : memref<128x128xbf16, #tpu.memory_space<vmem>>, vector<128x128xbf16>
      tpu.vector_store %arg7[%c0_19, %c0_20], %24 {strides = array<i32>} : memref<128x128xbf16, #tpu.memory_space<vmem>>, vector<128x128xbf16>,
    } else {
    }
    return
  }
  func.func @transform_0(%arg0: i32, %arg1: i32) -> (i32, i32) {
    %c0_i32 = arith.constant 0 : i32
    return %arg0, %arg1 : i32, i32
  }
  func.func @transform_1(%arg0: i32, %arg1: i32) -> (i32, i32) {
    %c0_i32 = arith.constant 0 : i32
    %c0_i32_0 = arith.constant 0 : i32
    return %arg1, %c0_i32 : i32, i32
  }
  func.func @transform_2(%arg0: i32, %arg1: i32) -> (i32, i32) {
    %c0_i32 = arith.constant 0 : i32
    %c0_i32_0 = arith.constant 0 : i32
    %c0_i32_1 = arith.constant 0 : i32
    return %c0_i32, %c0_i32_0 : i32, i32
  }
  func.func @transform_3(%arg0: i32, %arg1: i32) -> (i32, i32) {
    %c0_i32 = arith.constant 0 : i32
    %c0_i32_0 = arith.constant 0 : i32
    %c0_i32_1 = arith.constant 0 : i32
    return %c0_i32, %c0_i32_0 : i32, i32
  }
  func.func @transform_4(%arg0: i32, %arg1: i32) -> (i32, i32) {
    %c0_i32 = arith.constant 0 : i32
    %c0_i32_0 = arith.constant 0 : i32
    return %arg0, %c0_i32 : i32, i32
  }
  func.func @transform_5(%arg0: i32, %arg1: i32) -> (i32, i32) {
    %c0_i32 = arith.constant 0 : i32
    %c0_i32_0 = arith.constant 0 : i32
    return %arg0, %c0_i32 : i32, i32
  }
}

module attributes {stable_mosaic.version = 11 : i64} {
  func.func @_conv_matmul_kernel(%arg0: i32, %arg1: i32, %arg2: memref<32x144xbf16, #tpu.memory_space<vmem>>, %arg3: memref<144x128xbf16, #tpu.memory_space<vmem>>, %arg4: memref<1x128xf32, #tpu.memory_space<vmem>>, %arg5: memref<1x128xf32, #tpu.memory_space<vmem>>, %arg6: memref<32x128xbf16, #tpu.memory_space<vmem>>, %arg7: memref<32x128xf32, #tpu.memory_space<vmem>>) attributes {dimension_semantics = [#tpu.dimension_semantics<parallel>, #tpu.dimension_semantics<arbitrary>], iteration_bounds = array<i64: 1, 1>, scalar_prefetch = 0 : i64, scratch_operands = 1 : i64, tpu.core_type = #tpu.core_type<tc>, window_params = [{transform_indices = @transform_0, window_bounds = array<i64: 32, 144>}, {transform_indices = @transform_1, window_bounds = array<i64: 144, 128>}, {pipeline_mode = #tpu.pipeline_mode<synchronous>, transform_indices = @transform_2, window_bounds = array<i64: 1, 128>}, {pipeline_mode = #tpu.pipeline_mode<synchronous>, transform_indices = @transform_3, window_bounds = array<i64: 1, 128>}, {transform_indices = @transform_4, window_bounds = array<i64: 32, 128>}]} {
    %c0_i32 = arith.constant 0 : i32
    %0 = arith.cmpi eq, %arg1, %c0_i32 : i32
    %1 = arith.extui %0 : i1 to i32
    %c0_i32_0 = arith.constant 0 : i32
    %2 = arith.cmpi ne, %1, %c0_i32_0 : i32
    scf.if %2 {
      %cst_10 = arith.constant 0.000000e+00 : f32
      %12 = vector.broadcast %cst_10 : f32 to vector<32x128xf32>
      %c0_11 = arith.constant 0 : index
      %c0_12 = arith.constant 0 : index
      %13 = vector.load %arg7[%c0_11, %c0_12] : memref<32x128xf32, #tpu.memory_space<vmem>>, vector<32x128xf32>
      tpu.vector_store %arg7[%c0_11, %c0_12], %12 {strides = array<i32>} : memref<32x128xf32, #tpu.memory_space<vmem>>, vector<32x128xf32>,
    } else {
    }
    %c0 = arith.constant 0 : index
    %c0_1 = arith.constant 0 : index
    %3 = vector.load %arg7[%c0, %c0_1] : memref<32x128xf32, #tpu.memory_space<vmem>>, vector<32x128xf32>
    %c0_2 = arith.constant 0 : index
    %c0_3 = arith.constant 0 : index
    %4 = vector.load %arg2[%c0_2, %c0_3] : memref<32x144xbf16, #tpu.memory_space<vmem>>, vector<32x144xbf16>
    %c0_4 = arith.constant 0 : index
    %c0_5 = arith.constant 0 : index
    %5 = vector.load %arg3[%c0_4, %c0_5] : memref<144x128xbf16, #tpu.memory_space<vmem>>, vector<144x128xbf16>
    %cst = arith.constant dense<0.000000e+00> : vector<32x128xf32>
    %6 = tpu.matmul %4, %5, %cst {dimension_numbers = #tpu.dot_dimension_numbers<[1], [0], [0], [1], [0, 0, 1, 1], [], []>} : vector<32x144xbf16>, vector<144x128xbf16>, vector<32x128xf32> -> vector<32x128xf32>
    %7 = arith.addf %3, %6 : vector<32x128xf32>
    %c0_6 = arith.constant 0 : index
    %c0_7 = arith.constant 0 : index
    %8 = vector.load %arg7[%c0_6, %c0_7] : memref<32x128xf32, #tpu.memory_space<vmem>>, vector<32x128xf32>
    tpu.vector_store %arg7[%c0_6, %c0_7], %7 {strides = array<i32>} : memref<32x128xf32, #tpu.memory_space<vmem>>, vector<32x128xf32>,
    %c0_i32_8 = arith.constant 0 : i32
    %9 = arith.cmpi eq, %arg1, %c0_i32_8 : i32
    %10 = arith.extui %9 : i1 to i32
    %c0_i32_9 = arith.constant 0 : i32
    %11 = arith.cmpi ne, %10, %c0_i32_9 : i32
    scf.if %11 {
      %c0_10 = arith.constant 0 : index
      %c0_11 = arith.constant 0 : index
      %12 = vector.load %arg7[%c0_10, %c0_11] : memref<32x128xf32, #tpu.memory_space<vmem>>, vector<32x128xf32>
      %c0_12 = arith.constant 0 : index
      %c0_13 = arith.constant 0 : index
      %13 = vector.load %arg4[%c0_12, %c0_13] : memref<1x128xf32, #tpu.memory_space<vmem>>, vector<1x128xf32>
      %14 = vector.broadcast %13 : vector<1x128xf32> to vector<32x128xf32>
      %15 = arith.mulf %12, %14 : vector<32x128xf32>
      %c0_14 = arith.constant 0 : index
      %c0_15 = arith.constant 0 : index
      %16 = vector.load %arg5[%c0_14, %c0_15] : memref<1x128xf32, #tpu.memory_space<vmem>>, vector<1x128xf32>
      %17 = vector.broadcast %16 : vector<1x128xf32> to vector<32x128xf32>
      %18 = arith.addf %15, %17 : vector<32x128xf32>
      %cst_16 = arith.constant 0.000000e+00 : f32
      %19 = vector.broadcast %cst_16 : f32 to vector<32x128xf32>
      %20 = arith.maximumf %18, %19 : vector<32x128xf32>
      %21 = arith.truncf %20 : vector<32x128xf32> to vector<32x128xbf16>
      %c0_17 = arith.constant 0 : index
      %c0_18 = arith.constant 0 : index
      %22 = vector.load %arg6[%c0_17, %c0_18] : memref<32x128xbf16, #tpu.memory_space<vmem>>, vector<32x128xbf16>
      tpu.vector_store %arg6[%c0_17, %c0_18], %21 {strides = array<i32>} : memref<32x128xbf16, #tpu.memory_space<vmem>>, vector<32x128xbf16>,
    } else {
    }
    return
  }
  func.func @transform_0(%arg0: i32, %arg1: i32) -> (i32, i32) {
    %c0_i32 = arith.constant 0 : i32
    return %arg0, %arg1 : i32, i32
  }
  func.func @transform_1(%arg0: i32, %arg1: i32) -> (i32, i32) {
    %c0_i32 = arith.constant 0 : i32
    %c0_i32_0 = arith.constant 0 : i32
    return %arg1, %c0_i32 : i32, i32
  }
  func.func @transform_2(%arg0: i32, %arg1: i32) -> (i32, i32) {
    %c0_i32 = arith.constant 0 : i32
    %c0_i32_0 = arith.constant 0 : i32
    %c0_i32_1 = arith.constant 0 : i32
    return %c0_i32, %c0_i32_0 : i32, i32
  }
  func.func @transform_3(%arg0: i32, %arg1: i32) -> (i32, i32) {
    %c0_i32 = arith.constant 0 : i32
    %c0_i32_0 = arith.constant 0 : i32
    %c0_i32_1 = arith.constant 0 : i32
    return %c0_i32, %c0_i32_0 : i32, i32
  }
  func.func @transform_4(%arg0: i32, %arg1: i32) -> (i32, i32) {
    %c0_i32 = arith.constant 0 : i32
    %c0_i32_0 = arith.constant 0 : i32
    return %arg0, %c0_i32 : i32, i32
  }
}

module attributes {stable_mosaic.version = 11 : i64} {
  func.func @_conv_matmul_kernel(%arg0: i32, %arg1: i32, %arg2: memref<32x16xbf16, #tpu.memory_space<vmem>>, %arg3: memref<16x128xbf16, #tpu.memory_space<vmem>>, %arg4: memref<1x128xf32, #tpu.memory_space<vmem>>, %arg5: memref<1x128xf32, #tpu.memory_space<vmem>>, %arg6: memref<32x128xbf16, #tpu.memory_space<vmem>>, %arg7: memref<32x128xf32, #tpu.memory_space<vmem>>) attributes {dimension_semantics = [#tpu.dimension_semantics<parallel>, #tpu.dimension_semantics<arbitrary>], iteration_bounds = array<i64: 1, 1>, scalar_prefetch = 0 : i64, scratch_operands = 1 : i64, tpu.core_type = #tpu.core_type<tc>, window_params = [{transform_indices = @transform_0, window_bounds = array<i64: 32, 16>}, {transform_indices = @transform_1, window_bounds = array<i64: 16, 128>}, {pipeline_mode = #tpu.pipeline_mode<synchronous>, transform_indices = @transform_2, window_bounds = array<i64: 1, 128>}, {pipeline_mode = #tpu.pipeline_mode<synchronous>, transform_indices = @transform_3, window_bounds = array<i64: 1, 128>}, {transform_indices = @transform_4, window_bounds = array<i64: 32, 128>}]} {
    %c0_i32 = arith.constant 0 : i32
    %0 = arith.cmpi eq, %arg1, %c0_i32 : i32
    %1 = arith.extui %0 : i1 to i32
    %c0_i32_0 = arith.constant 0 : i32
    %2 = arith.cmpi ne, %1, %c0_i32_0 : i32
    scf.if %2 {
      %cst_10 = arith.constant 0.000000e+00 : f32
      %12 = vector.broadcast %cst_10 : f32 to vector<32x128xf32>
      %c0_11 = arith.constant 0 : index
      %c0_12 = arith.constant 0 : index
      %13 = vector.load %arg7[%c0_11, %c0_12] : memref<32x128xf32, #tpu.memory_space<vmem>>, vector<32x128xf32>
      tpu.vector_store %arg7[%c0_11, %c0_12], %12 {strides = array<i32>} : memref<32x128xf32, #tpu.memory_space<vmem>>, vector<32x128xf32>,
    } else {
    }
    %c0 = arith.constant 0 : index
    %c0_1 = arith.constant 0 : index
    %3 = vector.load %arg7[%c0, %c0_1] : memref<32x128xf32, #tpu.memory_space<vmem>>, vector<32x128xf32>
    %c0_2 = arith.constant 0 : index
    %c0_3 = arith.constant 0 : index
    %4 = vector.load %arg2[%c0_2, %c0_3] : memref<32x16xbf16, #tpu.memory_space<vmem>>, vector<32x16xbf16>
    %c0_4 = arith.constant 0 : index
    %c0_5 = arith.constant 0 : index
    %5 = vector.load %arg3[%c0_4, %c0_5] : memref<16x128xbf16, #tpu.memory_space<vmem>>, vector<16x128xbf16>
    %cst = arith.constant dense<0.000000e+00> : vector<32x128xf32>
    %6 = tpu.matmul %4, %5, %cst {dimension_numbers = #tpu.dot_dimension_numbers<[1], [0], [0], [1], [0, 0, 1, 1], [], []>} : vector<32x16xbf16>, vector<16x128xbf16>, vector<32x128xf32> -> vector<32x128xf32>
    %7 = arith.addf %3, %6 : vector<32x128xf32>
    %c0_6 = arith.constant 0 : index
    %c0_7 = arith.constant 0 : index
    %8 = vector.load %arg7[%c0_6, %c0_7] : memref<32x128xf32, #tpu.memory_space<vmem>>, vector<32x128xf32>
    tpu.vector_store %arg7[%c0_6, %c0_7], %7 {strides = array<i32>} : memref<32x128xf32, #tpu.memory_space<vmem>>, vector<32x128xf32>,
    %c0_i32_8 = arith.constant 0 : i32
    %9 = arith.cmpi eq, %arg1, %c0_i32_8 : i32
    %10 = arith.extui %9 : i1 to i32
    %c0_i32_9 = arith.constant 0 : i32
    %11 = arith.cmpi ne, %10, %c0_i32_9 : i32
    scf.if %11 {
      %c0_10 = arith.constant 0 : index
      %c0_11 = arith.constant 0 : index
      %12 = vector.load %arg7[%c0_10, %c0_11] : memref<32x128xf32, #tpu.memory_space<vmem>>, vector<32x128xf32>
      %c0_12 = arith.constant 0 : index
      %c0_13 = arith.constant 0 : index
      %13 = vector.load %arg4[%c0_12, %c0_13] : memref<1x128xf32, #tpu.memory_space<vmem>>, vector<1x128xf32>
      %14 = vector.broadcast %13 : vector<1x128xf32> to vector<32x128xf32>
      %15 = arith.mulf %12, %14 : vector<32x128xf32>
      %c0_14 = arith.constant 0 : index
      %c0_15 = arith.constant 0 : index
      %16 = vector.load %arg5[%c0_14, %c0_15] : memref<1x128xf32, #tpu.memory_space<vmem>>, vector<1x128xf32>
      %17 = vector.broadcast %16 : vector<1x128xf32> to vector<32x128xf32>
      %18 = arith.addf %15, %17 : vector<32x128xf32>
      %19 = arith.truncf %18 : vector<32x128xf32> to vector<32x128xbf16>
      %c0_16 = arith.constant 0 : index
      %c0_17 = arith.constant 0 : index
      %20 = vector.load %arg6[%c0_16, %c0_17] : memref<32x128xbf16, #tpu.memory_space<vmem>>, vector<32x128xbf16>
      tpu.vector_store %arg6[%c0_16, %c0_17], %19 {strides = array<i32>} : memref<32x128xbf16, #tpu.memory_space<vmem>>, vector<32x128xbf16>,
    } else {
    }
    return
  }
  func.func @transform_0(%arg0: i32, %arg1: i32) -> (i32, i32) {
    %c0_i32 = arith.constant 0 : i32
    return %arg0, %arg1 : i32, i32
  }
  func.func @transform_1(%arg0: i32, %arg1: i32) -> (i32, i32) {
    %c0_i32 = arith.constant 0 : i32
    %c0_i32_0 = arith.constant 0 : i32
    return %arg1, %c0_i32 : i32, i32
  }
  func.func @transform_2(%arg0: i32, %arg1: i32) -> (i32, i32) {
    %c0_i32 = arith.constant 0 : i32
    %c0_i32_0 = arith.constant 0 : i32
    %c0_i32_1 = arith.constant 0 : i32
    return %c0_i32, %c0_i32_0 : i32, i32
  }
  func.func @transform_3(%arg0: i32, %arg1: i32) -> (i32, i32) {
    %c0_i32 = arith.constant 0 : i32
    %c0_i32_0 = arith.constant 0 : i32
    %c0_i32_1 = arith.constant 0 : i32
    return %c0_i32, %c0_i32_0 : i32, i32
  }
  func.func @transform_4(%arg0: i32, %arg1: i32) -> (i32, i32) {
    %c0_i32 = arith.constant 0 : i32
    %c0_i32_0 = arith.constant 0 : i32
    return %arg0, %c0_i32 : i32, i32
  }
}

module attributes {stable_mosaic.version = 11 : i64} {
  func.func @_conv_matmul_kernel(%arg0: i32, %arg1: i32, %arg2: memref<32x288xbf16, #tpu.memory_space<vmem>>, %arg3: memref<288x128xbf16, #tpu.memory_space<vmem>>, %arg4: memref<1x128xf32, #tpu.memory_space<vmem>>, %arg5: memref<1x128xf32, #tpu.memory_space<vmem>>, %arg6: memref<32x128xbf16, #tpu.memory_space<vmem>>, %arg7: memref<32x128xbf16, #tpu.memory_space<vmem>>, %arg8: memref<32x128xf32, #tpu.memory_space<vmem>>) attributes {dimension_semantics = [#tpu.dimension_semantics<parallel>, #tpu.dimension_semantics<arbitrary>], iteration_bounds = array<i64: 1, 1>, scalar_prefetch = 0 : i64, scratch_operands = 1 : i64, tpu.core_type = #tpu.core_type<tc>, window_params = [{transform_indices = @transform_0, window_bounds = array<i64: 32, 288>}, {transform_indices = @transform_1, window_bounds = array<i64: 288, 128>}, {pipeline_mode = #tpu.pipeline_mode<synchronous>, transform_indices = @transform_2, window_bounds = array<i64: 1, 128>}, {pipeline_mode = #tpu.pipeline_mode<synchronous>, transform_indices = @transform_3, window_bounds = array<i64: 1, 128>}, {transform_indices = @transform_4, window_bounds = array<i64: 32, 128>}, {transform_indices = @transform_5, window_bounds = array<i64: 32, 128>}]} {
    %c0_i32 = arith.constant 0 : i32
    %0 = arith.cmpi eq, %arg1, %c0_i32 : i32
    %1 = arith.extui %0 : i1 to i32
    %c0_i32_0 = arith.constant 0 : i32
    %2 = arith.cmpi ne, %1, %c0_i32_0 : i32
    scf.if %2 {
      %cst_10 = arith.constant 0.000000e+00 : f32
      %12 = vector.broadcast %cst_10 : f32 to vector<32x128xf32>
      %c0_11 = arith.constant 0 : index
      %c0_12 = arith.constant 0 : index
      %13 = vector.load %arg8[%c0_11, %c0_12] : memref<32x128xf32, #tpu.memory_space<vmem>>, vector<32x128xf32>
      tpu.vector_store %arg8[%c0_11, %c0_12], %12 {strides = array<i32>} : memref<32x128xf32, #tpu.memory_space<vmem>>, vector<32x128xf32>,
    } else {
    }
    %c0 = arith.constant 0 : index
    %c0_1 = arith.constant 0 : index
    %3 = vector.load %arg8[%c0, %c0_1] : memref<32x128xf32, #tpu.memory_space<vmem>>, vector<32x128xf32>
    %c0_2 = arith.constant 0 : index
    %c0_3 = arith.constant 0 : index
    %4 = vector.load %arg2[%c0_2, %c0_3] : memref<32x288xbf16, #tpu.memory_space<vmem>>, vector<32x288xbf16>
    %c0_4 = arith.constant 0 : index
    %c0_5 = arith.constant 0 : index
    %5 = vector.load %arg3[%c0_4, %c0_5] : memref<288x128xbf16, #tpu.memory_space<vmem>>, vector<288x128xbf16>
    %cst = arith.constant dense<0.000000e+00> : vector<32x128xf32>
    %6 = tpu.matmul %4, %5, %cst {dimension_numbers = #tpu.dot_dimension_numbers<[1], [0], [0], [1], [0, 0, 1, 1], [], []>} : vector<32x288xbf16>, vector<288x128xbf16>, vector<32x128xf32> -> vector<32x128xf32>
    %7 = arith.addf %3, %6 : vector<32x128xf32>
    %c0_6 = arith.constant 0 : index
    %c0_7 = arith.constant 0 : index
    %8 = vector.load %arg8[%c0_6, %c0_7] : memref<32x128xf32, #tpu.memory_space<vmem>>, vector<32x128xf32>
    tpu.vector_store %arg8[%c0_6, %c0_7], %7 {strides = array<i32>} : memref<32x128xf32, #tpu.memory_space<vmem>>, vector<32x128xf32>,
    %c0_i32_8 = arith.constant 0 : i32
    %9 = arith.cmpi eq, %arg1, %c0_i32_8 : i32
    %10 = arith.extui %9 : i1 to i32
    %c0_i32_9 = arith.constant 0 : i32
    %11 = arith.cmpi ne, %10, %c0_i32_9 : i32
    scf.if %11 {
      %c0_10 = arith.constant 0 : index
      %c0_11 = arith.constant 0 : index
      %12 = vector.load %arg8[%c0_10, %c0_11] : memref<32x128xf32, #tpu.memory_space<vmem>>, vector<32x128xf32>
      %c0_12 = arith.constant 0 : index
      %c0_13 = arith.constant 0 : index
      %13 = vector.load %arg4[%c0_12, %c0_13] : memref<1x128xf32, #tpu.memory_space<vmem>>, vector<1x128xf32>
      %14 = vector.broadcast %13 : vector<1x128xf32> to vector<32x128xf32>
      %15 = arith.mulf %12, %14 : vector<32x128xf32>
      %c0_14 = arith.constant 0 : index
      %c0_15 = arith.constant 0 : index
      %16 = vector.load %arg5[%c0_14, %c0_15] : memref<1x128xf32, #tpu.memory_space<vmem>>, vector<1x128xf32>
      %17 = vector.broadcast %16 : vector<1x128xf32> to vector<32x128xf32>
      %18 = arith.addf %15, %17 : vector<32x128xf32>
      %c0_16 = arith.constant 0 : index
      %c0_17 = arith.constant 0 : index
      %19 = vector.load %arg6[%c0_16, %c0_17] : memref<32x128xbf16, #tpu.memory_space<vmem>>, vector<32x128xbf16>
      %20 = arith.extf %19 : vector<32x128xbf16> to vector<32x128xf32>
      %21 = arith.addf %18, %20 : vector<32x128xf32>
      %cst_18 = arith.constant 0.000000e+00 : f32
      %22 = vector.broadcast %cst_18 : f32 to vector<32x128xf32>
      %23 = arith.maximumf %21, %22 : vector<32x128xf32>
      %24 = arith.truncf %23 : vector<32x128xf32> to vector<32x128xbf16>
      %c0_19 = arith.constant 0 : index
      %c0_20 = arith.constant 0 : index
      %25 = vector.load %arg7[%c0_19, %c0_20] : memref<32x128xbf16, #tpu.memory_space<vmem>>, vector<32x128xbf16>
      tpu.vector_store %arg7[%c0_19, %c0_20], %24 {strides = array<i32>} : memref<32x128xbf16, #tpu.memory_space<vmem>>, vector<32x128xbf16>,
    } else {
    }
    return
  }
  func.func @transform_0(%arg0: i32, %arg1: i32) -> (i32, i32) {
    %c0_i32 = arith.constant 0 : i32
    return %arg0, %arg1 : i32, i32
  }
  func.func @transform_1(%arg0: i32, %arg1: i32) -> (i32, i32) {
    %c0_i32 = arith.constant 0 : i32
    %c0_i32_0 = arith.constant 0 : i32
    return %arg1, %c0_i32 : i32, i32
  }
  func.func @transform_2(%arg0: i32, %arg1: i32) -> (i32, i32) {
    %c0_i32 = arith.constant 0 : i32
    %c0_i32_0 = arith.constant 0 : i32
    %c0_i32_1 = arith.constant 0 : i32
    return %c0_i32, %c0_i32_0 : i32, i32
  }
  func.func @transform_3(%arg0: i32, %arg1: i32) -> (i32, i32) {
    %c0_i32 = arith.constant 0 : i32
    %c0_i32_0 = arith.constant 0 : i32
    %c0_i32_1 = arith.constant 0 : i32
    return %c0_i32, %c0_i32_0 : i32, i32
  }
  func.func @transform_4(%arg0: i32, %arg1: i32) -> (i32, i32) {
    %c0_i32 = arith.constant 0 : i32
    %c0_i32_0 = arith.constant 0 : i32
    return %arg0, %c0_i32 : i32, i32
  }
  func.func @transform_5(%arg0: i32, %arg1: i32) -> (i32, i32) {
    %c0_i32 = arith.constant 0 : i32
    %c0_i32_0 = arith.constant 0 : i32
    return %arg0, %c0_i32 : i32, i32
  }
}

module attributes {stable_mosaic.version = 11 : i64} {
  func.func @_conv_matmul_kernel(%arg0: i32, %arg1: i32, %arg2: memref<8x288xbf16, #tpu.memory_space<vmem>>, %arg3: memref<288x128xbf16, #tpu.memory_space<vmem>>, %arg4: memref<1x128xf32, #tpu.memory_space<vmem>>, %arg5: memref<1x128xf32, #tpu.memory_space<vmem>>, %arg6: memref<8x128xbf16, #tpu.memory_space<vmem>>, %arg7: memref<8x128xf32, #tpu.memory_space<vmem>>) attributes {dimension_semantics = [#tpu.dimension_semantics<parallel>, #tpu.dimension_semantics<arbitrary>], iteration_bounds = array<i64: 1, 1>, scalar_prefetch = 0 : i64, scratch_operands = 1 : i64, tpu.core_type = #tpu.core_type<tc>, window_params = [{transform_indices = @transform_0, window_bounds = array<i64: 8, 288>}, {transform_indices = @transform_1, window_bounds = array<i64: 288, 128>}, {pipeline_mode = #tpu.pipeline_mode<synchronous>, transform_indices = @transform_2, window_bounds = array<i64: 1, 128>}, {pipeline_mode = #tpu.pipeline_mode<synchronous>, transform_indices = @transform_3, window_bounds = array<i64: 1, 128>}, {transform_indices = @transform_4, window_bounds = array<i64: 8, 128>}]} {
    %c0_i32 = arith.constant 0 : i32
    %0 = arith.cmpi eq, %arg1, %c0_i32 : i32
    %1 = arith.extui %0 : i1 to i32
    %c0_i32_0 = arith.constant 0 : i32
    %2 = arith.cmpi ne, %1, %c0_i32_0 : i32
    scf.if %2 {
      %cst_10 = arith.constant 0.000000e+00 : f32
      %12 = vector.broadcast %cst_10 : f32 to vector<8x128xf32>
      %c0_11 = arith.constant 0 : index
      %c0_12 = arith.constant 0 : index
      %13 = vector.load %arg7[%c0_11, %c0_12] : memref<8x128xf32, #tpu.memory_space<vmem>>, vector<8x128xf32>
      tpu.vector_store %arg7[%c0_11, %c0_12], %12 {strides = array<i32>} : memref<8x128xf32, #tpu.memory_space<vmem>>, vector<8x128xf32>,
    } else {
    }
    %c0 = arith.constant 0 : index
    %c0_1 = arith.constant 0 : index
    %3 = vector.load %arg7[%c0, %c0_1] : memref<8x128xf32, #tpu.memory_space<vmem>>, vector<8x128xf32>
    %c0_2 = arith.constant 0 : index
    %c0_3 = arith.constant 0 : index
    %4 = vector.load %arg2[%c0_2, %c0_3] : memref<8x288xbf16, #tpu.memory_space<vmem>>, vector<8x288xbf16>
    %c0_4 = arith.constant 0 : index
    %c0_5 = arith.constant 0 : index
    %5 = vector.load %arg3[%c0_4, %c0_5] : memref<288x128xbf16, #tpu.memory_space<vmem>>, vector<288x128xbf16>
    %cst = arith.constant dense<0.000000e+00> : vector<8x128xf32>
    %6 = tpu.matmul %4, %5, %cst {dimension_numbers = #tpu.dot_dimension_numbers<[1], [0], [0], [1], [0, 0, 1, 1], [], []>} : vector<8x288xbf16>, vector<288x128xbf16>, vector<8x128xf32> -> vector<8x128xf32>
    %7 = arith.addf %3, %6 : vector<8x128xf32>
    %c0_6 = arith.constant 0 : index
    %c0_7 = arith.constant 0 : index
    %8 = vector.load %arg7[%c0_6, %c0_7] : memref<8x128xf32, #tpu.memory_space<vmem>>, vector<8x128xf32>
    tpu.vector_store %arg7[%c0_6, %c0_7], %7 {strides = array<i32>} : memref<8x128xf32, #tpu.memory_space<vmem>>, vector<8x128xf32>,
    %c0_i32_8 = arith.constant 0 : i32
    %9 = arith.cmpi eq, %arg1, %c0_i32_8 : i32
    %10 = arith.extui %9 : i1 to i32
    %c0_i32_9 = arith.constant 0 : i32
    %11 = arith.cmpi ne, %10, %c0_i32_9 : i32
    scf.if %11 {
      %c0_10 = arith.constant 0 : index
      %c0_11 = arith.constant 0 : index
      %12 = vector.load %arg7[%c0_10, %c0_11] : memref<8x128xf32, #tpu.memory_space<vmem>>, vector<8x128xf32>
      %c0_12 = arith.constant 0 : index
      %c0_13 = arith.constant 0 : index
      %13 = vector.load %arg4[%c0_12, %c0_13] : memref<1x128xf32, #tpu.memory_space<vmem>>, vector<1x128xf32>
      %14 = vector.broadcast %13 : vector<1x128xf32> to vector<8x128xf32>
      %15 = arith.mulf %12, %14 : vector<8x128xf32>
      %c0_14 = arith.constant 0 : index
      %c0_15 = arith.constant 0 : index
      %16 = vector.load %arg5[%c0_14, %c0_15] : memref<1x128xf32, #tpu.memory_space<vmem>>, vector<1x128xf32>
      %17 = vector.broadcast %16 : vector<1x128xf32> to vector<8x128xf32>
      %18 = arith.addf %15, %17 : vector<8x128xf32>
      %cst_16 = arith.constant 0.000000e+00 : f32
      %19 = vector.broadcast %cst_16 : f32 to vector<8x128xf32>
      %20 = arith.maximumf %18, %19 : vector<8x128xf32>
      %21 = arith.truncf %20 : vector<8x128xf32> to vector<8x128xbf16>
      %c0_17 = arith.constant 0 : index
      %c0_18 = arith.constant 0 : index
      %22 = vector.load %arg6[%c0_17, %c0_18] : memref<8x128xbf16, #tpu.memory_space<vmem>>, vector<8x128xbf16>
      tpu.vector_store %arg6[%c0_17, %c0_18], %21 {strides = array<i32>} : memref<8x128xbf16, #tpu.memory_space<vmem>>, vector<8x128xbf16>,
    } else {
    }
    return
  }
  func.func @transform_0(%arg0: i32, %arg1: i32) -> (i32, i32) {
    %c0_i32 = arith.constant 0 : i32
    return %arg0, %arg1 : i32, i32
  }
  func.func @transform_1(%arg0: i32, %arg1: i32) -> (i32, i32) {
    %c0_i32 = arith.constant 0 : i32
    %c0_i32_0 = arith.constant 0 : i32
    return %arg1, %c0_i32 : i32, i32
  }
  func.func @transform_2(%arg0: i32, %arg1: i32) -> (i32, i32) {
    %c0_i32 = arith.constant 0 : i32
    %c0_i32_0 = arith.constant 0 : i32
    %c0_i32_1 = arith.constant 0 : i32
    return %c0_i32, %c0_i32_0 : i32, i32
  }
  func.func @transform_3(%arg0: i32, %arg1: i32) -> (i32, i32) {
    %c0_i32 = arith.constant 0 : i32
    %c0_i32_0 = arith.constant 0 : i32
    %c0_i32_1 = arith.constant 0 : i32
    return %c0_i32, %c0_i32_0 : i32, i32
  }
  func.func @transform_4(%arg0: i32, %arg1: i32) -> (i32, i32) {
    %c0_i32 = arith.constant 0 : i32
    %c0_i32_0 = arith.constant 0 : i32
    return %arg0, %c0_i32 : i32, i32
  }
}

module attributes {stable_mosaic.version = 11 : i64} {
  func.func @_conv_matmul_kernel(%arg0: i32, %arg1: i32, %arg2: memref<8x32xbf16, #tpu.memory_space<vmem>>, %arg3: memref<32x128xbf16, #tpu.memory_space<vmem>>, %arg4: memref<1x128xf32, #tpu.memory_space<vmem>>, %arg5: memref<1x128xf32, #tpu.memory_space<vmem>>, %arg6: memref<8x128xbf16, #tpu.memory_space<vmem>>, %arg7: memref<8x128xf32, #tpu.memory_space<vmem>>) attributes {dimension_semantics = [#tpu.dimension_semantics<parallel>, #tpu.dimension_semantics<arbitrary>], iteration_bounds = array<i64: 1, 1>, scalar_prefetch = 0 : i64, scratch_operands = 1 : i64, tpu.core_type = #tpu.core_type<tc>, window_params = [{transform_indices = @transform_0, window_bounds = array<i64: 8, 32>}, {transform_indices = @transform_1, window_bounds = array<i64: 32, 128>}, {pipeline_mode = #tpu.pipeline_mode<synchronous>, transform_indices = @transform_2, window_bounds = array<i64: 1, 128>}, {pipeline_mode = #tpu.pipeline_mode<synchronous>, transform_indices = @transform_3, window_bounds = array<i64: 1, 128>}, {transform_indices = @transform_4, window_bounds = array<i64: 8, 128>}]} {
    %c0_i32 = arith.constant 0 : i32
    %0 = arith.cmpi eq, %arg1, %c0_i32 : i32
    %1 = arith.extui %0 : i1 to i32
    %c0_i32_0 = arith.constant 0 : i32
    %2 = arith.cmpi ne, %1, %c0_i32_0 : i32
    scf.if %2 {
      %cst_10 = arith.constant 0.000000e+00 : f32
      %12 = vector.broadcast %cst_10 : f32 to vector<8x128xf32>
      %c0_11 = arith.constant 0 : index
      %c0_12 = arith.constant 0 : index
      %13 = vector.load %arg7[%c0_11, %c0_12] : memref<8x128xf32, #tpu.memory_space<vmem>>, vector<8x128xf32>
      tpu.vector_store %arg7[%c0_11, %c0_12], %12 {strides = array<i32>} : memref<8x128xf32, #tpu.memory_space<vmem>>, vector<8x128xf32>,
    } else {
    }
    %c0 = arith.constant 0 : index
    %c0_1 = arith.constant 0 : index
    %3 = vector.load %arg7[%c0, %c0_1] : memref<8x128xf32, #tpu.memory_space<vmem>>, vector<8x128xf32>
    %c0_2 = arith.constant 0 : index
    %c0_3 = arith.constant 0 : index
    %4 = vector.load %arg2[%c0_2, %c0_3] : memref<8x32xbf16, #tpu.memory_space<vmem>>, vector<8x32xbf16>
    %c0_4 = arith.constant 0 : index
    %c0_5 = arith.constant 0 : index
    %5 = vector.load %arg3[%c0_4, %c0_5] : memref<32x128xbf16, #tpu.memory_space<vmem>>, vector<32x128xbf16>
    %cst = arith.constant dense<0.000000e+00> : vector<8x128xf32>
    %6 = tpu.matmul %4, %5, %cst {dimension_numbers = #tpu.dot_dimension_numbers<[1], [0], [0], [1], [0, 0, 1, 1], [], []>} : vector<8x32xbf16>, vector<32x128xbf16>, vector<8x128xf32> -> vector<8x128xf32>
    %7 = arith.addf %3, %6 : vector<8x128xf32>
    %c0_6 = arith.constant 0 : index
    %c0_7 = arith.constant 0 : index
    %8 = vector.load %arg7[%c0_6, %c0_7] : memref<8x128xf32, #tpu.memory_space<vmem>>, vector<8x128xf32>
    tpu.vector_store %arg7[%c0_6, %c0_7], %7 {strides = array<i32>} : memref<8x128xf32, #tpu.memory_space<vmem>>, vector<8x128xf32>,
    %c0_i32_8 = arith.constant 0 : i32
    %9 = arith.cmpi eq, %arg1, %c0_i32_8 : i32
    %10 = arith.extui %9 : i1 to i32
    %c0_i32_9 = arith.constant 0 : i32
    %11 = arith.cmpi ne, %10, %c0_i32_9 : i32
    scf.if %11 {
      %c0_10 = arith.constant 0 : index
      %c0_11 = arith.constant 0 : index
      %12 = vector.load %arg7[%c0_10, %c0_11] : memref<8x128xf32, #tpu.memory_space<vmem>>, vector<8x128xf32>
      %c0_12 = arith.constant 0 : index
      %c0_13 = arith.constant 0 : index
      %13 = vector.load %arg4[%c0_12, %c0_13] : memref<1x128xf32, #tpu.memory_space<vmem>>, vector<1x128xf32>
      %14 = vector.broadcast %13 : vector<1x128xf32> to vector<8x128xf32>
      %15 = arith.mulf %12, %14 : vector<8x128xf32>
      %c0_14 = arith.constant 0 : index
      %c0_15 = arith.constant 0 : index
      %16 = vector.load %arg5[%c0_14, %c0_15] : memref<1x128xf32, #tpu.memory_space<vmem>>, vector<1x128xf32>
      %17 = vector.broadcast %16 : vector<1x128xf32> to vector<8x128xf32>
      %18 = arith.addf %15, %17 : vector<8x128xf32>
      %19 = arith.truncf %18 : vector<8x128xf32> to vector<8x128xbf16>
      %c0_16 = arith.constant 0 : index
      %c0_17 = arith.constant 0 : index
      %20 = vector.load %arg6[%c0_16, %c0_17] : memref<8x128xbf16, #tpu.memory_space<vmem>>, vector<8x128xbf16>
      tpu.vector_store %arg6[%c0_16, %c0_17], %19 {strides = array<i32>} : memref<8x128xbf16, #tpu.memory_space<vmem>>, vector<8x128xbf16>,
    } else {
    }
    return
  }
  func.func @transform_0(%arg0: i32, %arg1: i32) -> (i32, i32) {
    %c0_i32 = arith.constant 0 : i32
    return %arg0, %arg1 : i32, i32
  }
  func.func @transform_1(%arg0: i32, %arg1: i32) -> (i32, i32) {
    %c0_i32 = arith.constant 0 : i32
    %c0_i32_0 = arith.constant 0 : i32
    return %arg1, %c0_i32 : i32, i32
  }
  func.func @transform_2(%arg0: i32, %arg1: i32) -> (i32, i32) {
    %c0_i32 = arith.constant 0 : i32
    %c0_i32_0 = arith.constant 0 : i32
    %c0_i32_1 = arith.constant 0 : i32
    return %c0_i32, %c0_i32_0 : i32, i32
  }
  func.func @transform_3(%arg0: i32, %arg1: i32) -> (i32, i32) {
    %c0_i32 = arith.constant 0 : i32
    %c0_i32_0 = arith.constant 0 : i32
    %c0_i32_1 = arith.constant 0 : i32
    return %c0_i32, %c0_i32_0 : i32, i32
  }
  func.func @transform_4(%arg0: i32, %arg1: i32) -> (i32, i32) {
    %c0_i32 = arith.constant 0 : i32
    %c0_i32_0 = arith.constant 0 : i32
    return %arg0, %c0_i32 : i32, i32
  }
}

module attributes {stable_mosaic.version = 11 : i64} {
  func.func @_conv_matmul_kernel(%arg0: i32, %arg1: i32, %arg2: memref<8x576xbf16, #tpu.memory_space<vmem>>, %arg3: memref<576x128xbf16, #tpu.memory_space<vmem>>, %arg4: memref<1x128xf32, #tpu.memory_space<vmem>>, %arg5: memref<1x128xf32, #tpu.memory_space<vmem>>, %arg6: memref<8x128xbf16, #tpu.memory_space<vmem>>, %arg7: memref<8x128xbf16, #tpu.memory_space<vmem>>, %arg8: memref<8x128xf32, #tpu.memory_space<vmem>>) attributes {dimension_semantics = [#tpu.dimension_semantics<parallel>, #tpu.dimension_semantics<arbitrary>], iteration_bounds = array<i64: 1, 1>, scalar_prefetch = 0 : i64, scratch_operands = 1 : i64, tpu.core_type = #tpu.core_type<tc>, window_params = [{transform_indices = @transform_0, window_bounds = array<i64: 8, 576>}, {transform_indices = @transform_1, window_bounds = array<i64: 576, 128>}, {pipeline_mode = #tpu.pipeline_mode<synchronous>, transform_indices = @transform_2, window_bounds = array<i64: 1, 128>}, {pipeline_mode = #tpu.pipeline_mode<synchronous>, transform_indices = @transform_3, window_bounds = array<i64: 1, 128>}, {transform_indices = @transform_4, window_bounds = array<i64: 8, 128>}, {transform_indices = @transform_5, window_bounds = array<i64: 8, 128>}]} {
    %c0_i32 = arith.constant 0 : i32
    %0 = arith.cmpi eq, %arg1, %c0_i32 : i32
    %1 = arith.extui %0 : i1 to i32
    %c0_i32_0 = arith.constant 0 : i32
    %2 = arith.cmpi ne, %1, %c0_i32_0 : i32
    scf.if %2 {
      %cst_10 = arith.constant 0.000000e+00 : f32
      %12 = vector.broadcast %cst_10 : f32 to vector<8x128xf32>
      %c0_11 = arith.constant 0 : index
      %c0_12 = arith.constant 0 : index
      %13 = vector.load %arg8[%c0_11, %c0_12] : memref<8x128xf32, #tpu.memory_space<vmem>>, vector<8x128xf32>
      tpu.vector_store %arg8[%c0_11, %c0_12], %12 {strides = array<i32>} : memref<8x128xf32, #tpu.memory_space<vmem>>, vector<8x128xf32>,
    } else {
    }
    %c0 = arith.constant 0 : index
    %c0_1 = arith.constant 0 : index
    %3 = vector.load %arg8[%c0, %c0_1] : memref<8x128xf32, #tpu.memory_space<vmem>>, vector<8x128xf32>
    %c0_2 = arith.constant 0 : index
    %c0_3 = arith.constant 0 : index
    %4 = vector.load %arg2[%c0_2, %c0_3] : memref<8x576xbf16, #tpu.memory_space<vmem>>, vector<8x576xbf16>
    %c0_4 = arith.constant 0 : index
    %c0_5 = arith.constant 0 : index
    %5 = vector.load %arg3[%c0_4, %c0_5] : memref<576x128xbf16, #tpu.memory_space<vmem>>, vector<576x128xbf16>
    %cst = arith.constant dense<0.000000e+00> : vector<8x128xf32>
    %6 = tpu.matmul %4, %5, %cst {dimension_numbers = #tpu.dot_dimension_numbers<[1], [0], [0], [1], [0, 0, 1, 1], [], []>} : vector<8x576xbf16>, vector<576x128xbf16>, vector<8x128xf32> -> vector<8x128xf32>
    %7 = arith.addf %3, %6 : vector<8x128xf32>
    %c0_6 = arith.constant 0 : index
    %c0_7 = arith.constant 0 : index
    %8 = vector.load %arg8[%c0_6, %c0_7] : memref<8x128xf32, #tpu.memory_space<vmem>>, vector<8x128xf32>
    tpu.vector_store %arg8[%c0_6, %c0_7], %7 {strides = array<i32>} : memref<8x128xf32, #tpu.memory_space<vmem>>, vector<8x128xf32>,
    %c0_i32_8 = arith.constant 0 : i32
    %9 = arith.cmpi eq, %arg1, %c0_i32_8 : i32
    %10 = arith.extui %9 : i1 to i32
    %c0_i32_9 = arith.constant 0 : i32
    %11 = arith.cmpi ne, %10, %c0_i32_9 : i32
    scf.if %11 {
      %c0_10 = arith.constant 0 : index
      %c0_11 = arith.constant 0 : index
      %12 = vector.load %arg8[%c0_10, %c0_11] : memref<8x128xf32, #tpu.memory_space<vmem>>, vector<8x128xf32>
      %c0_12 = arith.constant 0 : index
      %c0_13 = arith.constant 0 : index
      %13 = vector.load %arg4[%c0_12, %c0_13] : memref<1x128xf32, #tpu.memory_space<vmem>>, vector<1x128xf32>
      %14 = vector.broadcast %13 : vector<1x128xf32> to vector<8x128xf32>
      %15 = arith.mulf %12, %14 : vector<8x128xf32>
      %c0_14 = arith.constant 0 : index
      %c0_15 = arith.constant 0 : index
      %16 = vector.load %arg5[%c0_14, %c0_15] : memref<1x128xf32, #tpu.memory_space<vmem>>, vector<1x128xf32>
      %17 = vector.broadcast %16 : vector<1x128xf32> to vector<8x128xf32>
      %18 = arith.addf %15, %17 : vector<8x128xf32>
      %c0_16 = arith.constant 0 : index
      %c0_17 = arith.constant 0 : index
      %19 = vector.load %arg6[%c0_16, %c0_17] : memref<8x128xbf16, #tpu.memory_space<vmem>>, vector<8x128xbf16>
      %20 = arith.extf %19 : vector<8x128xbf16> to vector<8x128xf32>
      %21 = arith.addf %18, %20 : vector<8x128xf32>
      %cst_18 = arith.constant 0.000000e+00 : f32
      %22 = vector.broadcast %cst_18 : f32 to vector<8x128xf32>
      %23 = arith.maximumf %21, %22 : vector<8x128xf32>
      %24 = arith.truncf %23 : vector<8x128xf32> to vector<8x128xbf16>
      %c0_19 = arith.constant 0 : index
      %c0_20 = arith.constant 0 : index
      %25 = vector.load %arg7[%c0_19, %c0_20] : memref<8x128xbf16, #tpu.memory_space<vmem>>, vector<8x128xbf16>
      tpu.vector_store %arg7[%c0_19, %c0_20], %24 {strides = array<i32>} : memref<8x128xbf16, #tpu.memory_space<vmem>>, vector<8x128xbf16>,
    } else {
    }
    return
  }
  func.func @transform_0(%arg0: i32, %arg1: i32) -> (i32, i32) {
    %c0_i32 = arith.constant 0 : i32
    return %arg0, %arg1 : i32, i32
  }
  func.func @transform_1(%arg0: i32, %arg1: i32) -> (i32, i32) {
    %c0_i32 = arith.constant 0 : i32
    %c0_i32_0 = arith.constant 0 : i32
    return %arg1, %c0_i32 : i32, i32
  }
  func.func @transform_2(%arg0: i32, %arg1: i32) -> (i32, i32) {
    %c0_i32 = arith.constant 0 : i32
    %c0_i32_0 = arith.constant 0 : i32
    %c0_i32_1 = arith.constant 0 : i32
    return %c0_i32, %c0_i32_0 : i32, i32
  }
  func.func @transform_3(%arg0: i32, %arg1: i32) -> (i32, i32) {
    %c0_i32 = arith.constant 0 : i32
    %c0_i32_0 = arith.constant 0 : i32
    %c0_i32_1 = arith.constant 0 : i32
    return %c0_i32, %c0_i32_0 : i32, i32
  }
  func.func @transform_4(%arg0: i32, %arg1: i32) -> (i32, i32) {
    %c0_i32 = arith.constant 0 : i32
    %c0_i32_0 = arith.constant 0 : i32
    return %arg0, %c0_i32 : i32, i32
  }
  func.func @transform_5(%arg0: i32, %arg1: i32) -> (i32, i32) {
    %c0_i32 = arith.constant 0 : i32
    %c0_i32_0 = arith.constant 0 : i32
    return %arg0, %c0_i32 : i32, i32
  }
}

module attributes {stable_mosaic.version = 11 : i64} {
  func.func @_pool_fc_kernel(%arg0: memref<2x4x128xbf16, #tpu.memory_space<vmem>>, %arg1: memref<128x128xbf16, #tpu.memory_space<vmem>>, %arg2: memref<1x128xf32, #tpu.memory_space<vmem>>, %arg3: memref<2x128xf32, #tpu.memory_space<vmem>>, %arg4: memref<2x128xf32, #tpu.memory_space<vmem>>) attributes {dimension_semantics = [], scalar_prefetch = 0 : i64, scratch_operands = 0 : i64, tpu.core_type = #tpu.core_type<tc>} {
    %c0 = arith.constant 0 : index
    %c0_0 = arith.constant 0 : index
    %c0_1 = arith.constant 0 : index
    %0 = vector.load %arg0[%c0, %c0_0, %c0_1] : memref<2x4x128xbf16, #tpu.memory_space<vmem>>, vector<2x4x128xbf16>
    %1 = arith.extf %0 : vector<2x4x128xbf16> to vector<2x4x128xf32>
    %cst = arith.constant dense<0.000000e+00> : vector<2x128xf32>
    %2 = vector.multi_reduction <add>, %1, %cst [1] : vector<2x4x128xf32> to vector<2x128xf32>
    %cst_2 = arith.constant 2.500000e-01 : f32
    %3 = vector.broadcast %cst_2 : f32 to vector<2x128xf32>
    %4 = arith.mulf %2, %3 : vector<2x128xf32>
    %c0_3 = arith.constant 0 : index
    %c0_4 = arith.constant 0 : index
    %5 = vector.load %arg4[%c0_3, %c0_4] : memref<2x128xf32, #tpu.memory_space<vmem>>, vector<2x128xf32>
    tpu.vector_store %arg4[%c0_3, %c0_4], %4 {strides = array<i32>} : memref<2x128xf32, #tpu.memory_space<vmem>>, vector<2x128xf32>,
    %6 = arith.truncf %4 : vector<2x128xf32> to vector<2x128xbf16>
    %c0_5 = arith.constant 0 : index
    %c0_6 = arith.constant 0 : index
    %7 = vector.load %arg1[%c0_5, %c0_6] : memref<128x128xbf16, #tpu.memory_space<vmem>>, vector<128x128xbf16>
    %cst_7 = arith.constant dense<0.000000e+00> : vector<2x128xf32>
    %8 = tpu.matmul %6, %7, %cst_7 {dimension_numbers = #tpu.dot_dimension_numbers<[1], [0], [0], [1], [0, 0, 1, 1], [], []>} : vector<2x128xbf16>, vector<128x128xbf16>, vector<2x128xf32> -> vector<2x128xf32>
    %c0_8 = arith.constant 0 : index
    %c0_9 = arith.constant 0 : index
    %9 = vector.load %arg2[%c0_8, %c0_9] : memref<1x128xf32, #tpu.memory_space<vmem>>, vector<1x128xf32>
    %10 = vector.broadcast %9 : vector<1x128xf32> to vector<2x128xf32>
    %11 = arith.addf %8, %10 : vector<2x128xf32>
    %c0_10 = arith.constant 0 : index
    %c0_11 = arith.constant 0 : index
    %12 = vector.load %arg3[%c0_10, %c0_11] : memref<2x128xf32, #tpu.memory_space<vmem>>, vector<2x128xf32>
    tpu.vector_store %arg3[%c0_10, %c0_11], %11 {strides = array<i32>} : memref<2x128xf32, #tpu.memory_space<vmem>>, vector<2x128xf32>,
    return
  }
}

</mosaic_0001>

<llo_original>
// kernel: _lambda_.12
$region0: #{_lambda_.12}
  #allocation0 [shape = 'u32[]', space=smem, size = 0x4, offset = 0x4, fixed_abs, tag = 'smem constant byte address 0x4 - core index']
  #allocation1 [shape = 'u32[144,128]{1,0:T(1,128)}', space=vmem, size = 0x12000, scoped, tag = 'internal scratch']
  #allocation2 [shape = 'f32[8,18,128]{2,1,0:T(8,128)}', space=vmem, size = 0x18000, scoped, tag = 'scratch operand']
  %s0 = inlined_call_operand.vmem [shape: bf16[2,18,18,128], index: 0, kind: input, shape index: {}]
  %s1 = inlined_call_operand.vmem [shape: bf16[2,8,8,128], index: 1, kind: output, shape index: {}]
  %s2 = sld [smem:[#allocation0]]
  $region37: #{_lambda_.12} parent=0
    _
  %s4 = ssub.s32 1, %s2
  %s5 = scalar_select 0, %s4, %s2
  loop: start=0, step=1, limit=4
  $region2: #{_lambda_.12} parent=0 // loop_pre_header
    _
  $region3: #{_lambda_.12} parent=0 // loop_header
    %s7 = sphi 0, %s11
    %p8 = scmp.ge.s32.totalorder %s7, 4
    %s17 = sphi 0, %s19
    %s20 = sphi 0, %s17
    %s21 = sphi 0, %s20
    %s37 = sphi 0, %s21
    %s43 = sphi 0, %s45
    %s46 = sphi 0, %s43
    %s47 = sphi 0, %s46
    %s63 = sphi 0, %s47
  $region4: #{_lambda_.12} parent=0 // loop_header_branch
    %10 = sbr.rel (%p8) target = $region8
  $region5: #{_lambda_.12} parent=0 // loop_body
    %s12 = ssub.s32 %s7, 1
    %s13 = ssub.s32 %s7, 2
    %s14 = sadd.s32 %s7, 1
    %s15 = ssub.s32 %s7, %s14
    %p16 = scmp.eq.s32.totalorder %s15, 0
    %s18 = sadd.s32 %s17, 1
    %s19 = scalar_select %p16, %s17, %s18
    %p22 = pneg %p16
    %p23 = scmp.eq.s32.totalorder %s7, 1
    %p24 = por %p22, %p23
    %p25 = scmp.ne.s32.totalorder %s17, %s20
    %p26 = scmp.eq.s32.totalorder %s7, 0
    %p27 = por %p25, %p26
    %p28 = scmp.ne.s32.totalorder %s17, %s20
    %p29 = scmp.eq.s32.totalorder %s12, 1
    %p30 = por %p28, %p29
    %p31 = scmp.ne.s32.totalorder %s20, %s21
    %p32 = scmp.eq.s32.totalorder %s12, 0
    %p33 = por %p31, %p32
    %p34 = scmp.ne.s32.totalorder %s20, %s21
    %p35 = scmp.eq.s32.totalorder %s13, 1
    %p36 = por %p34, %p35
    %p38 = scmp.ne.s32.totalorder %s21, %s37
    %p39 = scmp.eq.s32.totalorder %s13, 0
    %p40 = por %p38, %p39
    %s41 = ssub.s32 %s7, %s14
    %p42 = scmp.eq.s32.totalorder %s41, 0
    %s44 = sadd.s32 %s43, 1
    %s45 = scalar_select %p42, %s43, %s44
    %p48 = pneg %p42
    %p49 = scmp.eq.s32.totalorder %s7, 1
    %p50 = por %p48, %p49
    %p51 = scmp.ne.s32.totalorder %s43, %s46
    %p52 = scmp.eq.s32.totalorder %s7, 0
    %p53 = por %p51, %p52
    %p54 = scmp.ne.s32.totalorder %s43, %s46
    %p55 = scmp.eq.s32.totalorder %s12, 1
    %p56 = por %p54, %p55
    %p57 = scmp.ne.s32.totalorder %s46, %s47
    %p58 = scmp.eq.s32.totalorder %s12, 0
    %p59 = por %p57, %p58
    %p60 = scmp.ne.s32.totalorder %s46, %s47
    %p61 = scmp.eq.s32.totalorder %s13, 1
    %p62 = por %p60, %p61
    %p64 = scmp.ne.s32.totalorder %s47, %s63
    %p65 = scmp.eq.s32.totalorder %s13, 0
    %p66 = por %p64, %p65
    %p67 = scmp.le.s32.totalorder 1, %s7
    %p68 = scmp.lt.s32.totalorder %s7, 3
    %p69 = pnand %p67, %p68
    %p70 = pneg %p69
    // Predicated region
    $region9: #{_lambda_.12} parent=5 // pred_check
      _
    $region10: #{_lambda_.12} parent=5 // pred_check_branch
      %72 = sbr.rel (%p69) target = $region12
    $region11: #{_lambda_.12} parent=5 // pred_region
      %s73 = ssub.s32 %s7, 1
    $region12: #{_lambda_.12} parent=5 // pred_fallthru
      _
    %p74 = scmp.lt.s32.totalorder %s7, 2
    // Predicated region
    $region13: #{_lambda_.12} parent=5 // pred_check
      %p75 = pneg %p74
    $region14: #{_lambda_.12} parent=5 // pred_check_branch
      %77 = sbr.rel (%p75) target = $region16
    $region15: #{_lambda_.12} parent=5 // pred_region
      // Predicated region
      $region17: #{_lambda_.12} parent=15 // pred_check
        %p78 = pneg %p27
      $region18: #{_lambda_.12} parent=15 // pred_check_branch
        %80 = sbr.rel (%p78) target = $region20
      $region19: #{_lambda_.12} parent=15 // pred_region
        %p81 = scmp.lt.s32.totalorder %s7, 1
        %s82 = scalar_select %p81, %s7, 1
        %s83 = smul.addr %s82, 54
        %s84 = smul.addr %s83, 4
        %s85 = scalar_lea.vmem %s0, %s84
      $region20: #{_lambda_.12} parent=15 // pred_fallthru
        _
    $region16: #{_lambda_.12} parent=5 // pred_fallthru
      _
    %p86 = scmp.le.s32.totalorder 1, %s7
    %p87 = scmp.lt.s32.totalorder %s7, 3
    %p88 = pnand %p86, %p87
    %p89 = pneg %p88
    // Predicated region
    $region21: #{_lambda_.12} parent=5 // pred_check
      _
    $region22: #{_lambda_.12} parent=5 // pred_check_branch
      %91 = sbr.rel (%p88) target = $region24
    $region23: #{_lambda_.12} parent=5 // pred_region
      %s92 = ssub.s32 %s7, 1
      %p93 = scmp.lt.s32.totalorder %s12, 1
      %s94 = scalar_select %p93, %s12, 1
      %s95 = smul.addr %s94, 54
      %s96 = smul.addr %s95, 4
      %s97 = scalar_lea.vmem %s0, %s96
      %p98 = pneg %p33
      %p99 = pneg %p30
      %p100 = pneg %p59
      %p101 = pneg %p56
      %p102 = scmp.lt.s32.totalorder %s12, 1
      %s103 = scalar_select %p102, %s12, 1
      %s104 = smul.addr %s103, 8
      %s105 = smul.addr %s104, 4
      %s106 = scalar_lea.vmem %s1, %s105
      %p107 = scmp.lt.s32.totalorder %s12, 1
      %s108 = scalar_select %p107, %s12, 1
      %s109 = smul.addr %s108, 54
      %s110 = smul.addr %s109, 4
      %s111 = scalar_lea.vmem %s0, %s110
      %p112 = scmp.lt.s32.totalorder %s12, 1
      %s113 = scalar_select %p112, %s12, 1
      %s114 = smul.addr %s113, 8
      %s115 = smul.addr %s114, 4
      %s116 = scalar_lea.vmem %s1, %s115
      %v117 = vld [vmem:[%s111] sm:$0xf]
      %v118 = vld [vmem:[%s111 + $0x4] sm:$0xf]
      %v119 = vld [vmem:[%s111 + $0x8] sm:$0x1]
      %v120 = vld [vmem:[%s111 + $0xc] sm:$0xf]
      %v121 = vld [vmem:[%s111 + $0x10] sm:$0xf]
      %v122 = vld [vmem:[%s111 + $0x14] sm:$0x1]
      %v123 = vld [vmem:[%s111 + $0x18] sm:$0xf]
      %v124 = vld [vmem:[%s111 + $0x1c] sm:$0xf]
      %v125 = vld [vmem:[%s111 + $0x20] sm:$0x1]
      %v126 = vunpack.c.l.bf16 %v117
      %v127 = vunpack.c.l.bf16 %v118
      %v128 = vunpack.c.l.bf16 %v119
      %v129 = vunpack.c.l.bf16 %v120
      %v130 = vunpack.c.l.bf16 %v121
      %v131 = vunpack.c.l.bf16 %v122
      %v132 = vunpack.c.l.bf16 %v123
      %v133 = vunpack.c.l.bf16 %v124
      %v134 = vunpack.c.l.bf16 %v125
      %v135 = vmax.f32 %v126, %v132
      %v136 = vmax.f32 %v135, %v129
      %v137 = vmax.f32 %v127, %v133
      %v138 = vmax.f32 %v137, %v130
      %vm139 = vcmask 1041408
      %v140 = vsel %vm139, %v128, -inf
      %v141 = vsel %vm139, %v131, -inf
      %v142 = vsel %vm139, %v134, -inf
      %v143 = vmax.f32 %v140, %v142
      %v144 = vmax.f32 %v143, %v141
      %145 = vst [vmem:[#allocation2] sm:$0xff] %v136
      %146 = vst [vmem:[#allocation2 + $0x8] sm:$0xff] %v138
      %147 = vst [vmem:[#allocation2 + $0x10] sm:$0x3] %v144
      %s148 = scalar_lea.vmem %s111, 24
      %v149 = vld [vmem:[%s148] sm:$0xf]
      %v150 = vld [vmem:[%s148 + $0x4] sm:$0xf]
      %v151 = vld [vmem:[%s148 + $0x8] sm:$0x1]
      %v152 = vld [vmem:[%s148 + $0xc] sm:$0xf]
      %v153 = vld [vmem:[%s148 + $0x10] sm:$0xf]
      %v154 = vld [vmem:[%s148 + $0x14] sm:$0x1]
      %v155 = vld [vmem:[%s148 + $0x18] sm:$0xf]
      %v156 = vld [vmem:[%s148 + $0x1c] sm:$0xf]
      %v157 = vld [vmem:[%s148 + $0x20] sm:$0x1]
      %v158 = vunpack.c.l.bf16 %v149
      %v159 = vunpack.c.l.bf16 %v150
      %v160 = vunpack.c.l.bf16 %v151
      %v161 = vunpack.c.l.bf16 %v152
      %v162 = vunpack.c.l.bf16 %v153
      %v163 = vunpack.c.l.bf16 %v154
      %v164 = vunpack.c.l.bf16 %v155
      %v165 = vunpack.c.l.bf16 %v156
      %v166 = vunpack.c.l.bf16 %v157
      %v167 = vmax.f32 %v158, %v164
      %v168 = vmax.f32 %v167, %v161
      %v169 = vmax.f32 %v159, %v165
      %v170 = vmax.f32 %v169, %v162
      %v171 = vsel %vm139, %v160, -inf
      %v172 = vsel %vm139, %v163, -inf
      %v173 = vsel %vm139, %v166, -inf
      %v174 = vmax.f32 %v171, %v173
      %v175 = vmax.f32 %v174, %v172
      %s176 = scalar_lea.vmem [#allocation2], 24
      %177 = vst [vmem:[%s176] sm:$0xff] %v168
      %178 = vst [vmem:[%s176 + $0x8] sm:$0xff] %v170
      %179 = vst [vmem:[%s176 + $0x10] sm:$0x3] %v175
      %s180 = scalar_lea.vmem %s111, 48
      %v181 = vld [vmem:[%s180] sm:$0xf]
      %v182 = vld [vmem:[%s180 + $0x4] sm:$0xf]
      %v183 = vld [vmem:[%s180 + $0x8] sm:$0x1]
      %v184 = vld [vmem:[%s180 + $0xc] sm:$0xf]
      %v185 = vld [vmem:[%s180 + $0x10] sm:$0xf]
      %v186 = vld [vmem:[%s180 + $0x14] sm:$0x1]
      %v187 = vld [vmem:[%s180 + $0x18] sm:$0xf]
      %v188 = vld [vmem:[%s180 + $0x1c] sm:$0xf]
      %v189 = vld [vmem:[%s180 + $0x20] sm:$0x1]
      %v190 = vunpack.c.l.bf16 %v181
      %v191 = vunpack.c.l.bf16 %v182
      %v192 = vunpack.c.l.bf16 %v183
      %v193 = vunpack.c.l.bf16 %v184
      %v194 = vunpack.c.l.bf16 %v185
      %v195 = vunpack.c.l.bf16 %v186
      %v196 = vunpack.c.l.bf16 %v187
      %v197 = vunpack.c.l.bf16 %v188
      %v198 = vunpack.c.l.bf16 %v189
      %v199 = vmax.f32 %v190, %v196
      %v200 = vmax.f32 %v199, %v193
      %v201 = vmax.f32 %v191, %v197
      %v202 = vmax.f32 %v201, %v194
      %v203 = vsel %vm139, %v192, -inf
      %v204 = vsel %vm139, %v195, -inf
      %v205 = vsel %vm139, %v198, -inf
      %v206 = vmax.f32 %v203, %v205
      %v207 = vmax.f32 %v206, %v204
      %s208 = scalar_lea.vmem [#allocation2], 48
      %209 = vst [vmem:[%s208] sm:$0xff] %v200
      %210 = vst [vmem:[%s208 + $0x8] sm:$0xff] %v202
      %211 = vst [vmem:[%s208 + $0x10] sm:$0x3] %v207
      %s212 = scalar_lea.vmem %s111, 72
      %v213 = vld [vmem:[%s212] sm:$0xf]
      %v214 = vld [vmem:[%s212 + $0x4] sm:$0xf]
      %v215 = vld [vmem:[%s212 + $0x8] sm:$0x1]
      %v216 = vld [vmem:[%s212 + $0xc] sm:$0xf]
      %v217 = vld [vmem:[%s212 + $0x10] sm:$0xf]
      %v218 = vld [vmem:[%s212 + $0x14] sm:$0x1]
      %v219 = vld [vmem:[%s212 + $0x18] sm:$0xf]
      %v220 = vld [vmem:[%s212 + $0x1c] sm:$0xf]
      %v221 = vld [vmem:[%s212 + $0x20] sm:$0x1]
      %v222 = vunpack.c.l.bf16 %v213
      %v223 = vunpack.c.l.bf16 %v214
      %v224 = vunpack.c.l.bf16 %v215
      %v225 = vunpack.c.l.bf16 %v216
      %v226 = vunpack.c.l.bf16 %v217
      %v227 = vunpack.c.l.bf16 %v218
      %v228 = vunpack.c.l.bf16 %v219
      %v229 = vunpack.c.l.bf16 %v220
      %v230 = vunpack.c.l.bf16 %v221
      %v231 = vmax.f32 %v222, %v228
      %v232 = vmax.f32 %v231, %v225
      %v233 = vmax.f32 %v223, %v229
      %v234 = vmax.f32 %v233, %v226
      %v235 = vsel %vm139, %v224, -inf
      %v236 = vsel %vm139, %v227, -inf
      %v237 = vsel %vm139, %v230, -inf
      %v238 = vmax.f32 %v235, %v237
      %v239 = vmax.f32 %v238, %v236
      %s240 = scalar_lea.vmem [#allocation2], 72
      %241 = vst [vmem:[%s240] sm:$0xff] %v232
      %242 = vst [vmem:[%s240 + $0x8] sm:$0xff] %v234
      %243 = vst [vmem:[%s240 + $0x10] sm:$0x3] %v239
      %s244 = scalar_lea.vmem %s111, 96
      %v245 = vld [vmem:[%s244] sm:$0xf]
      %v246 = vld [vmem:[%s244 + $0x4] sm:$0xf]
      %v247 = vld [vmem:[%s244 + $0x8] sm:$0x1]
      %v248 = vld [vmem:[%s244 + $0xc] sm:$0xf]
      %v249 = vld [vmem:[%s244 + $0x10] sm:$0xf]
      %v250 = vld [vmem:[%s244 + $0x14] sm:$0x1]
      %v251 = vld [vmem:[%s244 + $0x18] sm:$0xf]
      %v252 = vld [vmem:[%s244 + $0x1c] sm:$0xf]
      %v253 = vld [vmem:[%s244 + $0x20] sm:$0x1]
      %v254 = vunpack.c.l.bf16 %v245
      %v255 = vunpack.c.l.bf16 %v246
      %v256 = vunpack.c.l.bf16 %v247
      %v257 = vunpack.c.l.bf16 %v248
      %v258 = vunpack.c.l.bf16 %v249
      %v259 = vunpack.c.l.bf16 %v250
      %v260 = vunpack.c.l.bf16 %v251
      %v261 = vunpack.c.l.bf16 %v252
      %v262 = vunpack.c.l.bf16 %v253
      %v263 = vmax.f32 %v254, %v260
      %v264 = vmax.f32 %v263, %v257
      %v265 = vmax.f32 %v255, %v261
      %v266 = vmax.f32 %v265, %v258
      %v267 = vsel %vm139, %v256, -inf
      %v268 = vsel %vm139, %v259, -inf
      %v269 = vsel %vm139, %v262, -inf
      %v270 = vmax.f32 %v267, %v269
      %v271 = vmax.f32 %v270, %v268
      %s272 = scalar_lea.vmem [#allocation2], 96
      %273 = vst [vmem:[%s272] sm:$0xff] %v264
      %274 = vst [vmem:[%s272 + $0x8] sm:$0xff] %v266
      %275 = vst [vmem:[%s272 + $0x10] sm:$0x3] %v271
      %s276 = scalar_lea.vmem %s111, 120
      %v277 = vld [vmem:[%s276] sm:$0xf]
      %v278 = vld [vmem:[%s276 + $0x4] sm:$0xf]
      %v279 = vld [vmem:[%s276 + $0x8] sm:$0x1]
      %v280 = vld [vmem:[%s276 + $0xc] sm:$0xf]
      %v281 = vld [vmem:[%s276 + $0x10] sm:$0xf]
      %v282 = vld [vmem:[%s276 + $0x14] sm:$0x1]
      %v283 = vld [vmem:[%s276 + $0x18] sm:$0xf]
      %v284 = vld [vmem:[%s276 + $0x1c] sm:$0xf]
      %v285 = vld [vmem:[%s276 + $0x20] sm:$0x1]
      %v286 = vunpack.c.l.bf16 %v277
      %v287 = vunpack.c.l.bf16 %v278
      %v288 = vunpack.c.l.bf16 %v279
      %v289 = vunpack.c.l.bf16 %v280
      %v290 = vunpack.c.l.bf16 %v281
      %v291 = vunpack.c.l.bf16 %v282
      %v292 = vunpack.c.l.bf16 %v283
      %v293 = vunpack.c.l.bf16 %v284
      %v294 = vunpack.c.l.bf16 %v285
      %v295 = vmax.f32 %v286, %v292
      %v296 = vmax.f32 %v295, %v289
      %v297 = vmax.f32 %v287, %v293
      %v298 = vmax.f32 %v297, %v290
      %v299 = vsel %vm139, %v288, -inf
      %v300 = vsel %vm139, %v291, -inf
      %v301 = vsel %vm139, %v294, -inf
      %v302 = vmax.f32 %v299, %v301
      %v303 = vmax.f32 %v302, %v300
      %s304 = scalar_lea.vmem [#allocation2], 120
      %305 = vst [vmem:[%s304] sm:$0xff] %v296
      %306 = vst [vmem:[%s304 + $0x8] sm:$0xff] %v298
      %307 = vst [vmem:[%s304 + $0x10] sm:$0x3] %v303
      %s308 = scalar_lea.vmem %s111, 144
      %v309 = vld [vmem:[%s308] sm:$0xf]
      %v310 = vld [vmem:[%s308 + $0x4] sm:$0xf]
      %v311 = vld [vmem:[%s308 + $0x8] sm:$0x1]
      %v312 = vld [vmem:[%s308 + $0xc] sm:$0xf]
      %v313 = vld [vmem:[%s308 + $0x10] sm:$0xf]
      %v314 = vld [vmem:[%s308 + $0x14] sm:$0x1]
      %v315 = vld [vmem:[%s308 + $0x18] sm:$0xf]
      %v316 = vld [vmem:[%s308 + $0x1c] sm:$0xf]
      %v317 = vld [vmem:[%s308 + $0x20] sm:$0x1]
      %v318 = vunpack.c.l.bf16 %v309
      %v319 = vunpack.c.l.bf16 %v310
      %v320 = vunpack.c.l.bf16 %v311
      %v321 = vunpack.c.l.bf16 %v312
      %v322 = vunpack.c.l.bf16 %v313
      %v323 = vunpack.c.l.bf16 %v314
      %v324 = vunpack.c.l.bf16 %v315
      %v325 = vunpack.c.l.bf16 %v316
      %v326 = vunpack.c.l.bf16 %v317
      %v327 = vmax.f32 %v318, %v324
      %v328 = vmax.f32 %v327, %v321
      %v329 = vmax.f32 %v319, %v325
      %v330 = vmax.f32 %v329, %v322
      %v331 = vsel %vm139, %v320, -inf
      %v332 = vsel %vm139, %v323, -inf
      %v333 = vsel %vm139, %v326, -inf
      %v334 = vmax.f32 %v331, %v333
      %v335 = vmax.f32 %v334, %v332
      %s336 = scalar_lea.vmem [#allocation2], 144
      %337 = vst [vmem:[%s336] sm:$0xff] %v328
      %338 = vst [vmem:[%s336 + $0x8] sm:$0xff] %v330
      %339 = vst [vmem:[%s336 + $0x10] sm:$0x3] %v335
      %s340 = scalar_lea.vmem %s111, 168
      %v341 = vld [vmem:[%s340] sm:$0xf]
      %v342 = vld [vmem:[%s340 + $0x4] sm:$0xf]
      %v343 = vld [vmem:[%s340 + $0x8] sm:$0x1]
      %v344 = vld [vmem:[%s340 + $0xc] sm:$0xf]
      %v345 = vld [vmem:[%s340 + $0x10] sm:$0xf]
      %v346 = vld [vmem:[%s340 + $0x14] sm:$0x1]
      %v347 = vld [vmem:[%s340 + $0x18] sm:$0xf]
      %v348 = vld [vmem:[%s340 + $0x1c] sm:$0xf]
      %v349 = vld [vmem:[%s340 + $0x20] sm:$0x1]
      %v350 = vunpack.c.l.bf16 %v341
      %v351 = vunpack.c.l.bf16 %v342
      %v352 = vunpack.c.l.bf16 %v343
      %v353 = vunpack.c.l.bf16 %v344
      %v354 = vunpack.c.l.bf16 %v345
      %v355 = vunpack.c.l.bf16 %v346
      %v356 = vunpack.c.l.bf16 %v347
      %v357 = vunpack.c.l.bf16 %v348
      %v358 = vunpack.c.l.bf16 %v349
      %v359 = vmax.f32 %v350, %v356
      %v360 = vmax.f32 %v359, %v353
      %v361 = vmax.f32 %v351, %v357
      %v362 = vmax.f32 %v361, %v354
      %v363 = vsel %vm139, %v352, -inf
      %v364 = vsel %vm139, %v355, -inf
      %v365 = vsel %vm139, %v358, -inf
      %v366 = vmax.f32 %v363, %v365
      %v367 = vmax.f32 %v366, %v364
      %s368 = scalar_lea.vmem [#allocation2], 168
      %369 = vst [vmem:[%s368] sm:$0xff] %v360
      %370 = vst [vmem:[%s368 + $0x8] sm:$0xff] %v362
      %371 = vst [vmem:[%s368 + $0x10] sm:$0x3] %v367
      %v372 = vld [vmem:[#allocation2] ss:$2 sm:$0xff]
      %s373 = scalar_lea.vmem [#allocation2], 24
      %v374 = vld [vmem:[%s373] ss:$2 sm:$0xff]
      %s375 = scalar_lea.vmem [#allocation2], 48
      %v376 = vld [vmem:[%s375] ss:$2 sm:$0xff]
      %s377 = scalar_lea.vmem [#allocation2], 72
      %v378 = vld [vmem:[%s377] ss:$2 sm:$0xff]
      %s379 = scalar_lea.vmem [#allocation2], 96
      %v380 = vld [vmem:[%s379] ss:$2 sm:$0xff]
      %s381 = scalar_lea.vmem [#allocation2], 120
      %v382 = vld [vmem:[%s381] ss:$2 sm:$0xff]
      %s383 = scalar_lea.vmem [#allocation2], 144
      %v384 = vld [vmem:[%s383] ss:$2 sm:$0xff]
      %s385 = scalar_lea.vmem [#allocation2], 168
      %v386 = vld [vmem:[%s385] ss:$2 sm:$0xff]
      %s387 = scalar_lea.vmem [#allocation2], 1
      %v388 = vld [vmem:[%s387] ss:$2 sm:$0xff]
      %s389 = scalar_lea.vmem [#allocation2], 25
      %v390 = vld [vmem:[%s389] ss:$2 sm:$0xff]
      %s391 = scalar_lea.vmem [#allocation2], 49
      %v392 = vld [vmem:[%s391] ss:$2 sm:$0xff]
      %s393 = scalar_lea.vmem [#allocation2], 73
      %v394 = vld [vmem:[%s393] ss:$2 sm:$0xff]
      %s395 = scalar_lea.vmem [#allocation2], 97
      %v396 = vld [vmem:[%s395] ss:$2 sm:$0xff]
      %s397 = scalar_lea.vmem [#allocation2], 121
      %v398 = vld [vmem:[%s397] ss:$2 sm:$0xff]
      %s399 = scalar_lea.vmem [#allocation2], 145
      %v400 = vld [vmem:[%s399] ss:$2 sm:$0xff]
      %s401 = scalar_lea.vmem [#allocation2], 169
      %v402 = vld [vmem:[%s401] ss:$2 sm:$0xff]
      %v403 = vmax.f32 %v372, %v388
      %v404 = vmax.f32 %v374, %v390
      %v405 = vmax.f32 %v376, %v392
      %v406 = vmax.f32 %v378, %v394
      %v407 = vmax.f32 %v380, %v396
      %v408 = vmax.f32 %v382, %v398
      %v409 = vmax.f32 %v384, %v400
      %v410 = vmax.f32 %v386, %v402
      %s411 = scalar_lea.vmem [#allocation2], 2
      %v412 = vld [vmem:[%s411] ss:$2 sm:$0xff]
      %s413 = scalar_lea.vmem [#allocation2], 26
      %v414 = vld [vmem:[%s413] ss:$2 sm:$0xff]
      %s415 = scalar_lea.vmem [#allocation2], 50
      %v416 = vld [vmem:[%s415] ss:$2 sm:$0xff]
      %s417 = scalar_lea.vmem [#allocation2], 74
      %v418 = vld [vmem:[%s417] ss:$2 sm:$0xff]
      %s419 = scalar_lea.vmem [#allocation2], 98
      %v420 = vld [vmem:[%s419] ss:$2 sm:$0xff]
      %s421 = scalar_lea.vmem [#allocation2], 122
      %v422 = vld [vmem:[%s421] ss:$2 sm:$0xff]
      %s423 = scalar_lea.vmem [#allocation2], 146
      %v424 = vld [vmem:[%s423] ss:$2 sm:$0xff]
      %s425 = scalar_lea.vmem [#allocation2], 170
      %v426 = vld [vmem:[%s425] ss:$2 sm:$0xff]
      %v427 = vmax.f32 %v403, %v412
      %v428 = vmax.f32 %v404, %v414
      %v429 = vmax.f32 %v405, %v416
      %v430 = vmax.f32 %v406, %v418
      %v431 = vmax.f32 %v407, %v420
      %v432 = vmax.f32 %v408, %v422
      %v433 = vmax.f32 %v409, %v424
      %v434 = vmax.f32 %v410, %v426
      %v435 = vpack.c.bf16 %v427, %v427
      %v436 = vpack.c.bf16 %v428, %v428
      %v437 = vpack.c.bf16 %v429, %v429
      %v438 = vpack.c.bf16 %v430, %v430
      %v439 = vpack.c.bf16 %v431, %v431
      %v440 = vpack.c.bf16 %v432, %v432
      %v441 = vpack.c.bf16 %v433, %v433
      %v442 = vpack.c.bf16 %v434, %v434
      %443 = vst [vmem:[%s116] sm:$0xf] %v435
      %444 = vst [vmem:[%s116 + $0x4] sm:$0xf] %v436
      %445 = vst [vmem:[%s116 + $0x8] sm:$0xf] %v437
      %446 = vst [vmem:[%s116 + $0xc] sm:$0xf] %v438
      %447 = vst [vmem:[%s116 + $0x10] sm:$0xf] %v439
      %448 = vst [vmem:[%s116 + $0x14] sm:$0xf] %v440
      %449 = vst [vmem:[%s116 + $0x18] sm:$0xf] %v441
      %450 = vst [vmem:[%s116 + $0x1c] sm:$0xf] %v442
      %p451 = scmp.lt.s32.totalorder %s12, 1
      %s452 = scalar_select %p451, %s12, 1
      %s453 = smul.addr %s452, 8
      %s454 = smul.addr %s453, 4
      %s455 = scalar_lea.vmem %s1, %s454
      // Predicated region
      $region25: #{_lambda_.12} parent=23 // pred_check
        %p456 = pneg %p56
      $region26: #{_lambda_.12} parent=23 // pred_check_branch
        %458 = sbr.rel (%p456) target = $region28
      $region27: #{_lambda_.12} parent=23 // pred_region
        _
      $region28: #{_lambda_.12} parent=23 // pred_fallthru
        _
    $region24: #{_lambda_.12} parent=5 // pred_fallthru
      _
    %p459 = scmp.le.s32.totalorder 2, %s7
    // Predicated region
    $region29: #{_lambda_.12} parent=5 // pred_check
      %p460 = pneg %p459
    $region30: #{_lambda_.12} parent=5 // pred_check_branch
      %462 = sbr.rel (%p460) target = $region32
    $region31: #{_lambda_.12} parent=5 // pred_region
      %s463 = ssub.s32 %s7, 2
      // Predicated region
      $region33: #{_lambda_.12} parent=31 // pred_check
        %p464 = pneg %p62
      $region34: #{_lambda_.12} parent=31 // pred_check_branch
        %466 = sbr.rel (%p464) target = $region36
      $region35: #{_lambda_.12} parent=31 // pred_region
        %p467 = scmp.lt.s32.totalorder %s13, 1
        %s468 = scalar_select %p467, %s13, 1
        %s469 = smul.addr %s468, 8
        %s470 = smul.addr %s469, 4
        %s471 = scalar_lea.vmem %s1, %s470
      $region36: #{_lambda_.12} parent=31 // pred_fallthru
        _
    $region32: #{_lambda_.12} parent=5 // pred_fallthru
      _
  $region6: #{_lambda_.12} parent=0 // loop_footer
    %s11 = sadd.s32 1, %s7
  $region7: #{_lambda_.12} parent=0 // loop_footer_branch
    %6 = sbr.rel target = $region3
  $region8: #{_lambda_.12} parent=0 // loop_exit
    _

// kernel: _lambda_.11
$region0: #{_lambda_.11}
  #allocation0 [shape = 'u32[]', space=smem, size = 0x4, offset = 0x4, fixed_abs, tag = 'smem constant byte address 0x4 - core index']
  #allocation1 [shape = 'u32[144,128]{1,0:T(1,128)}', space=vmem, size = 0x12000, scoped, tag = 'internal scratch']
  #allocation2 [shape = 'f32[512,128]{1,0:T(8,128)}', space=vmem, size = 0x40000, scoped, tag = 'scratch operand']
  %s0 = inlined_call_operand.vmem [shape: bf16[512,152], index: 0, kind: input, shape index: {}]
  %s1 = inlined_call_operand.vmem [shape: bf16[152,128], index: 1, kind: input, shape index: {}]
  %s2 = inlined_call_operand.vmem [shape: f32[1,128], index: 2, kind: input, shape index: {}]
  %s3 = inlined_call_operand.vmem [shape: f32[1,128], index: 3, kind: input, shape index: {}]
  %s4 = inlined_call_operand.vmem [shape: bf16[512,128], index: 4, kind: output, shape index: {}]
  %s5 = sld [smem:[#allocation0]]
  $region34: #{_lambda_.11} parent=0
    _
  %s7 = ssub.s32 1, %s5
  %s8 = scalar_select 0, %s7, %s5
  // Predicated region
  $region2: #{_lambda_.11} parent=0 // pred_check
    _
  $region3: #{_lambda_.11} parent=0 // pred_check_branch
    %10 = sbr.rel (0) target = $region5
  $region4: #{_lambda_.11} parent=0 // pred_region
    _
  $region5: #{_lambda_.11} parent=0 // pred_fallthru
    _
  // Predicated region
  $region6: #{_lambda_.11} parent=0 // pred_check
    _
  $region7: #{_lambda_.11} parent=0 // pred_check_branch
    %12 = sbr.rel (0) target = $region9
  $region8: #{_lambda_.11} parent=0 // pred_region
    _
  $region9: #{_lambda_.11} parent=0 // pred_fallthru
    _
  // Predicated region
  $region10: #{_lambda_.11} parent=0 // pred_check
    _
  $region11: #{_lambda_.11} parent=0 // pred_check_branch
    %14 = sbr.rel (0) target = $region13
  $region12: #{_lambda_.11} parent=0 // pred_region
    _
  $region13: #{_lambda_.11} parent=0 // pred_fallthru
    _
  // Predicated region
  $region14: #{_lambda_.11} parent=0 // pred_check
    _
  $region15: #{_lambda_.11} parent=0 // pred_check_branch
    %16 = sbr.rel (0) target = $region17
  $region16: #{_lambda_.11} parent=0 // pred_region
    _
  $region17: #{_lambda_.11} parent=0 // pred_fallthru
    _
  %p18 = scmp.eq.s32.totalorder 0, 0
  // Predicated region
  $region18: #{_lambda_.11} parent=0 // pred_check
    %p19 = pneg %p18
  $region19: #{_lambda_.11} parent=0 // pred_check_branch
    %21 = sbr.rel (%p19) target = $region21
  $region20: #{_lambda_.11} parent=0 // pred_region
    %22 = vst [vmem:[#allocation2] sm:$0xff] 0.0
    %23 = vst [vmem:[#allocation2 + $0x8] sm:$0xff] 0.0
    %24 = vst [vmem:[#allocation2 + $0x10] sm:$0xff] 0.0
    %25 = vst [vmem:[#allocation2 + $0x18] sm:$0xff] 0.0
    %26 = vst [vmem:[#allocation2 + $0x20] sm:$0xff] 0.0
    %27 = vst [vmem:[#allocation2 + $0x28] sm:$0xff] 0.0
    %28 = vst [vmem:[#allocation2 + $0x30] sm:$0xff] 0.0
    %29 = vst [vmem:[#allocation2 + $0x38] sm:$0xff] 0.0
    %30 = vst [vmem:[#allocation2 + $0x40] sm:$0xff] 0.0
    %31 = vst [vmem:[#allocation2 + $0x48] sm:$0xff] 0.0
    %32 = vst [vmem:[#allocation2 + $0x50] sm:$0xff] 0.0
    %33 = vst [vmem:[#allocation2 + $0x58] sm:$0xff] 0.0
    %34 = vst [vmem:[#allocation2 + $0x60] sm:$0xff] 0.0
    %35 = vst [vmem:[#allocation2 + $0x68] sm:$0xff] 0.0
    %36 = vst [vmem:[#allocation2 + $0x70] sm:$0xff] 0.0
    %37 = vst [vmem:[#allocation2 + $0x78] sm:$0xff] 0.0
    %38 = vst [vmem:[#allocation2 + $0x80] sm:$0xff] 0.0
    %39 = vst [vmem:[#allocation2 + $0x88] sm:$0xff] 0.0
    %40 = vst [vmem:[#allocation2 + $0x90] sm:$0xff] 0.0
    %41 = vst [vmem:[#allocation2 + $0x98] sm:$0xff] 0.0
    %42 = vst [vmem:[#allocation2 + $0xa0] sm:$0xff] 0.0
    %43 = vst [vmem:[#allocation2 + $0xa8] sm:$0xff] 0.0
    %44 = vst [vmem:[#allocation2 + $0xb0] sm:$0xff] 0.0
    %45 = vst [vmem:[#allocation2 + $0xb8] sm:$0xff] 0.0
    %46 = vst [vmem:[#allocation2 + $0xc0] sm:$0xff] 0.0
    %47 = vst [vmem:[#allocation2 + $0xc8] sm:$0xff] 0.0
    %48 = vst [vmem:[#allocation2 + $0xd0] sm:$0xff] 0.0
    %49 = vst [vmem:[#allocation2 + $0xd8] sm:$0xff] 0.0
    %50 = vst [vmem:[#allocation2 + $0xe0] sm:$0xff] 0.0
    %51 = vst [vmem:[#allocation2 + $0xe8] sm:$0xff] 0.0
    %52 = vst [vmem:[#allocation2 + $0xf0] sm:$0xff] 0.0
    %53 = vst [vmem:[#allocation2 + $0xf8] sm:$0xff] 0.0
    %54 = vst [vmem:[#allocation2 + $0x100] sm:$0xff] 0.0
    %55 = vst [vmem:[#allocation2 + $0x108] sm:$0xff] 0.0
    %56 = vst [vmem:[#allocation2 + $0x110] sm:$0xff] 0.0
    %57 = vst [vmem:[#allocation2 + $0x118] sm:$0xff] 0.0
    %58 = vst [vmem:[#allocation2 + $0x120] sm:$0xff] 0.0
    %59 = vst [vmem:[#allocation2 + $0x128] sm:$0xff] 0.0
    %60 = vst [vmem:[#allocation2 + $0x130] sm:$0xff] 0.0
    %61 = vst [vmem:[#allocation2 + $0x138] sm:$0xff] 0.0
    %62 = vst [vmem:[#allocation2 + $0x140] sm:$0xff] 0.0
    %63 = vst [vmem:[#allocation2 + $0x148] sm:$0xff] 0.0
    %64 = vst [vmem:[#allocation2 + $0x150] sm:$0xff] 0.0
    %65 = vst [vmem:[#allocation2 + $0x158] sm:$0xff] 0.0
    %66 = vst [vmem:[#allocation2 + $0x160] sm:$0xff] 0.0
    %67 = vst [vmem:[#allocation2 + $0x168] sm:$0xff] 0.0
    %68 = vst [vmem:[#allocation2 + $0x170] sm:$0xff] 0.0
    %69 = vst [vmem:[#allocation2 + $0x178] sm:$0xff] 0.0
    %70 = vst [vmem:[#allocation2 + $0x180] sm:$0xff] 0.0
    %71 = vst [vmem:[#allocation2 + $0x188] sm:$0xff] 0.0
    %72 = vst [vmem:[#allocation2 + $0x190] sm:$0xff] 0.0
    %73 = vst [vmem:[#allocation2 + $0x198] sm:$0xff] 0.0
    %74 = vst [vmem:[#allocation2 + $0x1a0] sm:$0xff] 0.0
    %75 = vst [vmem:[#allocation2 + $0x1a8] sm:$0xff] 0.0
    %76 = vst [vmem:[#allocation2 + $0x1b0] sm:$0xff] 0.0
    %77 = vst [vmem:[#allocation2 + $0x1b8] sm:$0xff] 0.0
    %78 = vst [vmem:[#allocation2 + $0x1c0] sm:$0xff] 0.0
    %79 = vst [vmem:[#allocation2 + $0x1c8] sm:$0xff] 0.0
    %80 = vst [vmem:[#allocation2 + $0x1d0] sm:$0xff] 0.0
    %81 = vst [vmem:[#allocation2 + $0x1d8] sm:$0xff] 0.0
    %82 = vst [vmem:[#allocation2 + $0x1e0] sm:$0xff] 0.0
    %83 = vst [vmem:[#allocation2 + $0x1e8] sm:$0xff] 0.0
    %84 = vst [vmem:[#allocation2 + $0x1f0] sm:$0xff] 0.0
    %85 = vst [vmem:[#allocation2 + $0x1f8] sm:$0xff] 0.0
  $region21: #{_lambda_.11} parent=0 // pred_fallthru
    _
  %v86 = vld [vmem:[#allocation2] sm:$0xff]
  %v87 = vld [vmem:[#allocation2 + $0x8] sm:$0xff]
  %v88 = vld [vmem:[#allocation2 + $0x10] sm:$0xff]
  %v89 = vld [vmem:[#allocation2 + $0x18] sm:$0xff]
  %v90 = vld [vmem:[#allocation2 + $0x20] sm:$0xff]
  %v91 = vld [vmem:[#allocation2 + $0x28] sm:$0xff]
  %v92 = vld [vmem:[#allocation2 + $0x30] sm:$0xff]
  %v93 = vld [vmem:[#allocation2 + $0x38] sm:$0xff]
  %v94 = vld [vmem:[#allocation2 + $0x40] sm:$0xff]
  %v95 = vld [vmem:[#allocation2 + $0x48] sm:$0xff]
  %v96 = vld [vmem:[#allocation2 + $0x50] sm:$0xff]
  %v97 = vld [vmem:[#allocation2 + $0x58] sm:$0xff]
  %v98 = vld [vmem:[#allocation2 + $0x60] sm:$0xff]
  %v99 = vld [vmem:[#allocation2 + $0x68] sm:$0xff]
  %v100 = vld [vmem:[#allocation2 + $0x70] sm:$0xff]
  %v101 = vld [vmem:[#allocation2 + $0x78] sm:$0xff]
  %v102 = vld [vmem:[#allocation2 + $0x80] sm:$0xff]
  %v103 = vld [vmem:[#allocation2 + $0x88] sm:$0xff]
  %v104 = vld [vmem:[#allocation2 + $0x90] sm:$0xff]
  %v105 = vld [vmem:[#allocation2 + $0x98] sm:$0xff]
  %v106 = vld [vmem:[#allocation2 + $0xa0] sm:$0xff]
  %v107 = vld [vmem:[#allocation2 + $0xa8] sm:$0xff]
  %v108 = vld [vmem:[#allocation2 + $0xb0] sm:$0xff]
  %v109 = vld [vmem:[#allocation2 + $0xb8] sm:$0xff]
  %v110 = vld [vmem:[#allocation2 + $0xc0] sm:$0xff]
  %v111 = vld [vmem:[#allocation2 + $0xc8] sm:$0xff]
  %v112 = vld [vmem:[#allocation2 + $0xd0] sm:$0xff]
  %v113 = vld [vmem:[#allocation2 + $0xd8] sm:$0xff]
  %v114 = vld [vmem:[#allocation2 + $0xe0] sm:$0xff]
  %v115 = vld [vmem:[#allocation2 + $0xe8] sm:$0xff]
  %v116 = vld [vmem:[#allocation2 + $0xf0] sm:$0xff]
  %v117 = vld [vmem:[#allocation2 + $0xf8] sm:$0xff]
  %v118 = vld [vmem:[#allocation2 + $0x100] sm:$0xff]
  %v119 = vld [vmem:[#allocation2 + $0x108] sm:$0xff]
  %v120 = vld [vmem:[#allocation2 + $0x110] sm:$0xff]
  %v121 = vld [vmem:[#allocation2 + $0x118] sm:$0xff]
  %v122 = vld [vmem:[#allocation2 + $0x120] sm:$0xff]
  %v123 = vld [vmem:[#allocation2 + $0x128] sm:$0xff]
  %v124 = vld [vmem:[#allocation2 + $0x130] sm:$0xff]
  %v125 = vld [vmem:[#allocation2 + $0x138] sm:$0xff]
  %v126 = vld [vmem:[#allocation2 + $0x140] sm:$0xff]
  %v127 = vld [vmem:[#allocation2 + $0x148] sm:$0xff]
  %v128 = vld [vmem:[#allocation2 + $0x150] sm:$0xff]
  %v129 = vld [vmem:[#allocation2 + $0x158] sm:$0xff]
  %v130 = vld [vmem:[#allocation2 + $0x160] sm:$0xff]
  %v131 = vld [vmem:[#allocation2 + $0x168] sm:$0xff]
  %v132 = vld [vmem:[#allocation2 + $0x170] sm:$0xff]
  %v133 = vld [vmem:[#allocation2 + $0x178] sm:$0xff]
  %v134 = vld [vmem:[#allocation2 + $0x180] sm:$0xff]
  %v135 = vld [vmem:[#allocation2 + $0x188] sm:$0xff]
  %v136 = vld [vmem:[#allocation2 + $0x190] sm:$0xff]
  %v137 = vld [vmem:[#allocation2 + $0x198] sm:$0xff]
  %v138 = vld [vmem:[#allocation2 + $0x1a0] sm:$0xff]
  %v139 = vld [vmem:[#allocation2 + $0x1a8] sm:$0xff]
  %v140 = vld [vmem:[#allocation2 + $0x1b0] sm:$0xff]
  %v141 = vld [vmem:[#allocation2 + $0x1b8] sm:$0xff]
  %v142 = vld [vmem:[#allocation2 + $0x1c0] sm:$0xff]
  %v143 = vld [vmem:[#allocation2 + $0x1c8] sm:$0xff]
  %v144 = vld [vmem:[#allocation2 + $0x1d0] sm:$0xff]
  %v145 = vld [vmem:[#allocation2 + $0x1d8] sm:$0xff]
  %v146 = vld [vmem:[#allocation2 + $0x1e0] sm:$0xff]
  %v147 = vld [vmem:[#allocation2 + $0x1e8] sm:$0xff]
  %v148 = vld [vmem:[#allocation2 + $0x1f0] sm:$0xff]
  %v149 = vld [vmem:[#allocation2 + $0x1f8] sm:$0xff]
  %v150 = vld [vmem:[%s0] sm:$0xff]
  %v151 = vld [vmem:[%s0 + $0x8] sm:$0xff]
  %v152 = vld [vmem:[%s0 + $0x10] sm:$0xff]
  %v153 = vld [vmem:[%s0 + $0x18] sm:$0xff]
  %v154 = vld [vmem:[%s0 + $0x20] sm:$0xff]
  %v155 = vld [vmem:[%s0 + $0x28] sm:$0xff]
  %v156 = vld [vmem:[%s0 + $0x30] sm:$0xff]
  %v157 = vld [vmem:[%s0 + $0x38] sm:$0xff]
  %v158 = vld [vmem:[%s0 + $0x40] sm:$0xff]
  %v159 = vld [vmem:[%s0 + $0x48] sm:$0xff]
  %v160 = vld [vmem:[%s0 + $0x50] sm:$0xff]
  %v161 = vld [vmem:[%s0 + $0x58] sm:$0xff]
  %v162 = vld [vmem:[%s0 + $0x60] sm:$0xff]
  %v163 = vld [vmem:[%s0 + $0x68] sm:$0xff]
  %v164 = vld [vmem:[%s0 + $0x70] sm:$0xff]
  %v165 = vld [vmem:[%s0 + $0x78] sm:$0xff]
  %v166 = vld [vmem:[%s0 + $0x80] sm:$0xff]
  %v167 = vld [vmem:[%s0 + $0x88] sm:$0xff]
  %v168 = vld [vmem:[%s0 + $0x90] sm:$0xff]
  %v169 = vld [vmem:[%s0 + $0x98] sm:$0xff]
  %v170 = vld [vmem:[%s0 + $0xa0] sm:$0xff]
  %v171 = vld [vmem:[%s0 + $0xa8] sm:$0xff]
  %v172 = vld [vmem:[%s0 + $0xb0] sm:$0xff]
  %v173 = vld [vmem:[%s0 + $0xb8] sm:$0xff]
  %v174 = vld [vmem:[%s0 + $0xc0] sm:$0xff]
  %v175 = vld [vmem:[%s0 + $0xc8] sm:$0xff]
  %v176 = vld [vmem:[%s0 + $0xd0] sm:$0xff]
  %v177 = vld [vmem:[%s0 + $0xd8] sm:$0xff]
  %v178 = vld [vmem:[%s0 + $0xe0] sm:$0xff]
  %v179 = vld [vmem:[%s0 + $0xe8] sm:$0xff]
  %v180 = vld [vmem:[%s0 + $0xf0] sm:$0xff]
  %v181 = vld [vmem:[%s0 + $0xf8] sm:$0xff]
  %v182 = vld [vmem:[%s0 + $0x100] sm:$0xff]
  %v183 = vld [vmem:[%s0 + $0x108] sm:$0xff]
  %v184 = vld [vmem:[%s0 + $0x110] sm:$0xff]
  %v185 = vld [vmem:[%s0 + $0x118] sm:$0xff]
  %v186 = vld [vmem:[%s0 + $0x120] sm:$0xff]
  %v187 = vld [vmem:[%s0 + $0x128] sm:$0xff]
  %v188 = vld [vmem:[%s0 + $0x130] sm:$0xff]
  %v189 = vld [vmem:[%s0 + $0x138] sm:$0xff]
  %v190 = vld [vmem:[%s0 + $0x140] sm:$0xff]
  %v191 = vld [vmem:[%s0 + $0x148] sm:$0xff]
  %v192 = vld [vmem:[%s0 + $0x150] sm:$0xff]
  %v193 = vld [vmem:[%s0 + $0x158] sm:$0xff]
  %v194 = vld [vmem:[%s0 + $0x160] sm:$0xff]
  %v195 = vld [vmem:[%s0 + $0x168] sm:$0xff]
  %v196 = vld [vmem:[%s0 + $0x170] sm:$0xff]
  %v197 = vld [vmem:[%s0 + $0x178] sm:$0xff]
  %v198 = vld [vmem:[%s0 + $0x180] sm:$0xff]
  %v199 = vld [vmem:[%s0 + $0x188] sm:$0xff]
  %v200 = vld [vmem:[%s0 + $0x190] sm:$0xff]
  %v201 = vld [vmem:[%s0 + $0x198] sm:$0xff]
  %v202 = vld [vmem:[%s0 + $0x1a0] sm:$0xff]
  %v203 = vld [vmem:[%s0 + $0x1a8] sm:$0xff]
  %v204 = vld [vmem:[%s0 + $0x1b0] sm:$0xff]
  %v205 = vld [vmem:[%s0 + $0x1b8] sm:$0xff]
  %v206 = vld [vmem:[%s0 + $0x1c0] sm:$0xff]
  %v207 = vld [vmem:[%s0 + $0x1c8] sm:$0xff]
  %v208 = vld [vmem:[%s0 + $0x1d0] sm:$0xff]
  %v209 = vld [vmem:[%s0 + $0x1d8] sm:$0xff]
  %v210 = vld [vmem:[%s0 + $0x1e0] sm:$0xff]
  %v211 = vld [vmem:[%s0 + $0x1e8] sm:$0xff]
  %v212 = vld [vmem:[%s0 + $0x1f0] sm:$0xff]
  %v213 = vld [vmem:[%s0 + $0x1f8] sm:$0xff]
  %v214 = vld [vmem:[%s1] sm:$0xf]
  %v215 = vld [vmem:[%s1 + $0x4] sm:$0xf]
  %v216 = vld [vmem:[%s1 + $0x8] sm:$0xf]
  %v217 = vld [vmem:[%s1 + $0xc] sm:$0xf]
  %v218 = vld [vmem:[%s1 + $0x10] sm:$0xf]
  %v219 = vld [vmem:[%s1 + $0x14] sm:$0xf]
  %v220 = vld [vmem:[%s1 + $0x18] sm:$0xf]
  %v221 = vld [vmem:[%s1 + $0x1c] sm:$0xf]
  %v222 = vld [vmem:[%s1 + $0x20] sm:$0xf]
  %v223 = vld [vmem:[%s1 + $0x24] sm:$0xf]
  %v224 = vld [vmem:[%s1 + $0x28] sm:$0xf]
  %v225 = vld [vmem:[%s1 + $0x2c] sm:$0xf]
  %v226 = vld [vmem:[%s1 + $0x30] sm:$0xf]
  %v227 = vld [vmem:[%s1 + $0x34] sm:$0xf]
  %v228 = vld [vmem:[%s1 + $0x38] sm:$0xf]
  %v229 = vld [vmem:[%s1 + $0x3c] sm:$0xf]
  %v230 = vld [vmem:[%s1 + $0x40] sm:$0xf]
  %v231 = vld [vmem:[%s1 + $0x44] sm:$0xf]
  %v232 = vld [vmem:[%s1 + $0x48] sm:$0xf]
  %v297 = vunpack.c.l.b16 %v150
  %v298 = vunpack.c.h.b16 %v150
  %v299 = vunpack.c.l.b16 %v151
  %v300 = vunpack.c.h.b16 %v151
  %v301 = vunpack.c.l.b16 %v152
  %v302 = vunpack.c.h.b16 %v152
  %v303 = vunpack.c.l.b16 %v153
  %v304 = vunpack.c.h.b16 %v153
  %v305 = vunpack.c.l.b16 %v154
  %v306 = vunpack.c.h.b16 %v154
  %v307 = vunpack.c.l.b16 %v155
  %v308 = vunpack.c.h.b16 %v155
  %v309 = vunpack.c.l.b16 %v156
  %v310 = vunpack.c.h.b16 %v156
  %v311 = vunpack.c.l.b16 %v157
  %v312 = vunpack.c.h.b16 %v157
  %v313 = vunpack.c.l.b16 %v158
  %v314 = vunpack.c.h.b16 %v158
  %v315 = vunpack.c.l.b16 %v159
  %v316 = vunpack.c.h.b16 %v159
  %v317 = vunpack.c.l.b16 %v160
  %v318 = vunpack.c.h.b16 %v160
  %v319 = vunpack.c.l.b16 %v161
  %v320 = vunpack.c.h.b16 %v161
  %v321 = vunpack.c.l.b16 %v162
  %v322 = vunpack.c.h.b16 %v162
  %v323 = vunpack.c.l.b16 %v163
  %v324 = vunpack.c.h.b16 %v163
  %v325 = vunpack.c.l.b16 %v164
  %v326 = vunpack.c.h.b16 %v164
  %v327 = vunpack.c.l.b16 %v165
  %v328 = vunpack.c.h.b16 %v165
  %v329 = vunpack.c.l.b16 %v166
  %v330 = vunpack.c.h.b16 %v166
  %v331 = vunpack.c.l.b16 %v167
  %v332 = vunpack.c.h.b16 %v167
  %v333 = vunpack.c.l.b16 %v168
  %v334 = vunpack.c.h.b16 %v168
  %v335 = vunpack.c.l.b16 %v169
  %v336 = vunpack.c.h.b16 %v169
  %v337 = vunpack.c.l.b16 %v170
  %v338 = vunpack.c.h.b16 %v170
  %v339 = vunpack.c.l.b16 %v171
  %v340 = vunpack.c.h.b16 %v171
  %v341 = vunpack.c.l.b16 %v172
  %v342 = vunpack.c.h.b16 %v172
  %v343 = vunpack.c.l.b16 %v173
  %v344 = vunpack.c.h.b16 %v173
  %v345 = vunpack.c.l.b16 %v174
  %v346 = vunpack.c.h.b16 %v174
  %v347 = vunpack.c.l.b16 %v175
  %v348 = vunpack.c.h.b16 %v175
  %v349 = vunpack.c.l.b16 %v176
  %v350 = vunpack.c.h.b16 %v176
  %v351 = vunpack.c.l.b16 %v177
  %v352 = vunpack.c.h.b16 %v177
  %v353 = vunpack.c.l.b16 %v178
  %v354 = vunpack.c.h.b16 %v178
  %v355 = vunpack.c.l.b16 %v179
  %v356 = vunpack.c.h.b16 %v179
  %v357 = vunpack.c.l.b16 %v180
  %v358 = vunpack.c.h.b16 %v180
  %v359 = vunpack.c.l.b16 %v181
  %v360 = vunpack.c.h.b16 %v181
  %v361 = vunpack.c.l.b16 %v182
  %v362 = vunpack.c.h.b16 %v182
  %v363 = vunpack.c.l.b16 %v183
  %v364 = vunpack.c.h.b16 %v183
  %v365 = vunpack.c.l.b16 %v184
  %v366 = vunpack.c.h.b16 %v184
  %v367 = vunpack.c.l.b16 %v185
  %v368 = vunpack.c.h.b16 %v185
  %v369 = vunpack.c.l.b16 %v186
  %v370 = vunpack.c.h.b16 %v186
  %v371 = vunpack.c.l.b16 %v187
  %v372 = vunpack.c.h.b16 %v187
  %v373 = vunpack.c.l.b16 %v188
  %v374 = vunpack.c.h.b16 %v188
  %v375 = vunpack.c.l.b16 %v189
  %v376 = vunpack.c.h.b16 %v189
  %v377 = vunpack.c.l.b16 %v190
  %v378 = vunpack.c.h.b16 %v190
  %v379 = vunpack.c.l.b16 %v191
  %v380 = vunpack.c.h.b16 %v191
  %v381 = vunpack.c.l.b16 %v192
  %v382 = vunpack.c.h.b16 %v192
  %v383 = vunpack.c.l.b16 %v193
  %v384 = vunpack.c.h.b16 %v193
  %v385 = vunpack.c.l.b16 %v194
  %v386 = vunpack.c.h.b16 %v194
  %v387 = vunpack.c.l.b16 %v195
  %v388 = vunpack.c.h.b16 %v195
  %v389 = vunpack.c.l.b16 %v196
  %v390 = vunpack.c.h.b16 %v196
  %v391 = vunpack.c.l.b16 %v197
  %v392 = vunpack.c.h.b16 %v197
  %v393 = vunpack.c.l.b16 %v198
  %v394 = vunpack.c.h.b16 %v198
  %v395 = vunpack.c.l.b16 %v199
  %v396 = vunpack.c.h.b16 %v199
  %v397 = vunpack.c.l.b16 %v200
  %v398 = vunpack.c.h.b16 %v200
  %v399 = vunpack.c.l.b16 %v201
  %v400 = vunpack.c.h.b16 %v201
  %v401 = vunpack.c.l.b16 %v202
  %v402 = vunpack.c.h.b16 %v202
  %v403 = vunpack.c.l.b16 %v203
  %v404 = vunpack.c.h.b16 %v203
  %v405 = vunpack.c.l.b16 %v204
  %v406 = vunpack.c.h.b16 %v204
  %v407 = vunpack.c.l.b16 %v205
  %v408 = vunpack.c.h.b16 %v205
  %v409 = vunpack.c.l.b16 %v206
  %v410 = vunpack.c.h.b16 %v206
  %v411 = vunpack.c.l.b16 %v207
  %v412 = vunpack.c.h.b16 %v207
  %v413 = vunpack.c.l.b16 %v208
  %v414 = vunpack.c.h.b16 %v208
  %v415 = vunpack.c.l.b16 %v209
  %v416 = vunpack.c.h.b16 %v209
  %v417 = vunpack.c.l.b16 %v210
  %v418 = vunpack.c.h.b16 %v210
  %v419 = vunpack.c.l.b16 %v211
  %v420 = vunpack.c.h.b16 %v211
  %v421 = vunpack.c.l.b16 %v212
  %v422 = vunpack.c.h.b16 %v212
  %v423 = vunpack.c.l.b16 %v213
  %v424 = vunpack.c.h.b16 %v213
  %v425 = vpack.c.b16 %v299, %v297
  %v426 = vpack.c.b16 %v300, %v298
  %v427 = vpack.c.b16 %v303, %v301
  %v428 = vpack.c.b16 %v304, %v302
  %v429 = vpack.c.b16 %v307, %v305
  %v430 = vpack.c.b16 %v308, %v306
  %v431 = vpack.c.b16 %v311, %v309
  %v432 = vpack.c.b16 %v312, %v310
  %v433 = vpack.c.b16 %v315, %v313
  %v434 = vpack.c.b16 %v316, %v314
  %v435 = vpack.c.b16 %v319, %v317
  %v436 = vpack.c.b16 %v320, %v318
  %v437 = vpack.c.b16 %v323, %v321
  %v438 = vpack.c.b16 %v324, %v322
  %v439 = vpack.c.b16 %v327, %v325
  %v440 = vpack.c.b16 %v328, %v326
  %v441 = vpack.c.b16 %v331, %v329
  %v442 = vpack.c.b16 %v332, %v330
  %v443 = vpack.c.b16 %v335, %v333
  %v444 = vpack.c.b16 %v336, %v334
  %v445 = vpack.c.b16 %v339, %v337
  %v446 = vpack.c.b16 %v340, %v338
  %v447 = vpack.c.b16 %v343, %v341
  %v448 = vpack.c.b16 %v344, %v342
  %v449 = vpack.c.b16 %v347, %v345
  %v450 = vpack.c.b16 %v348, %v346
  %v451 = vpack.c.b16 %v351, %v349
  %v452 = vpack.c.b16 %v352, %v350
  %v453 = vpack.c.b16 %v355, %v353
  %v454 = vpack.c.b16 %v356, %v354
  %v455 = vpack.c.b16 %v359, %v357
  %v456 = vpack.c.b16 %v360, %v358
  %v457 = vpack.c.b16 %v363, %v361
  %v458 = vpack.c.b16 %v364, %v362
  %v459 = vpack.c.b16 %v367, %v365
  %v460 = vpack.c.b16 %v368, %v366
  %v461 = vpack.c.b16 %v371, %v369
  %v462 = vpack.c.b16 %v372, %v370
  %v463 = vpack.c.b16 %v375, %v373
  %v464 = vpack.c.b16 %v376, %v374
  %v465 = vpack.c.b16 %v379, %v377
  %v466 = vpack.c.b16 %v380, %v378
  %v467 = vpack.c.b16 %v383, %v381
  %v468 = vpack.c.b16 %v384, %v382
  %v469 = vpack.c.b16 %v387, %v385
  %v470 = vpack.c.b16 %v388, %v386
  %v471 = vpack.c.b16 %v391, %v389
  %v472 = vpack.c.b16 %v392, %v390
  %v473 = vpack.c.b16 %v395, %v393
  %v474 = vpack.c.b16 %v396, %v394
  %v475 = vpack.c.b16 %v399, %v397
  %v476 = vpack.c.b16 %v400, %v398
  %v477 = vpack.c.b16 %v403, %v401
  %v478 = vpack.c.b16 %v404, %v402
  %v479 = vpack.c.b16 %v407, %v405
  %v480 = vpack.c.b16 %v408, %v406
  %v481 = vpack.c.b16 %v411, %v409
  %v482 = vpack.c.b16 %v412, %v410
  %v483 = vpack.c.b16 %v415, %v413
  %v484 = vpack.c.b16 %v416, %v414
  %v485 = vpack.c.b16 %v419, %v417
  %v486 = vpack.c.b16 %v420, %v418
  %v487 = vpack.c.b16 %v423, %v421
  %v488 = vpack.c.b16 %v424, %v422
  %v540 = vunpack.c.l.b16 %v214
  %v541 = vunpack.c.l.b16 %v215
  %v542 = vunpack.c.l.b16 %v216
  %v543 = vunpack.c.l.b16 %v217
  %v544 = vunpack.c.l.b16 %v218
  %v545 = vunpack.c.l.b16 %v219
  %v546 = vunpack.c.l.b16 %v220
  %v547 = vunpack.c.l.b16 %v221
  %v548 = vunpack.c.l.b16 %v222
  %v549 = vunpack.c.l.b16 %v223
  %v550 = vunpack.c.l.b16 %v224
  %v551 = vunpack.c.l.b16 %v225
  %v552 = vunpack.c.l.b16 %v226
  %v553 = vunpack.c.l.b16 %v227
  %v554 = vunpack.c.l.b16 %v228
  %v555 = vunpack.c.l.b16 %v229
  %v556 = vunpack.c.l.b16 %v230
  %v557 = vunpack.c.l.b16 %v231
  %v558 = vunpack.c.l.b16 %v232
  %v559 = vpack.c.b16 %v541, %v540
  %v560 = vpack.c.b16 %v543, %v542
  %v561 = vpack.c.b16 %v545, %v544
  %v562 = vpack.c.b16 %v547, %v546
  %v563 = vpack.c.b16 %v549, %v548
  %v564 = vpack.c.b16 %v551, %v550
  %v565 = vpack.c.b16 %v553, %v552
  %v566 = vpack.c.b16 %v555, %v554
  %v567 = vpack.c.b16 %v557, %v556
  %v568 = vpack.c.b16 %v558, %v558
  %vm578 = vcmask 195584
  %v580 = vsel %vm578, %v426, 0
  %v583 = vsel %vm578, %v428, 0
  %v586 = vsel %vm578, %v430, 0
  %v589 = vsel %vm578, %v432, 0
  %v592 = vsel %vm578, %v434, 0
  %v595 = vsel %vm578, %v436, 0
  %v598 = vsel %vm578, %v438, 0
  %v601 = vsel %vm578, %v440, 0
  %v604 = vsel %vm578, %v442, 0
  %v607 = vsel %vm578, %v444, 0
  %v610 = vsel %vm578, %v446, 0
  %v613 = vsel %vm578, %v448, 0
  %v616 = vsel %vm578, %v450, 0
  %v619 = vsel %vm578, %v452, 0
  %v622 = vsel %vm578, %v454, 0
  %v625 = vsel %vm578, %v456, 0
  %v628 = vsel %vm578, %v458, 0
  %v631 = vsel %vm578, %v460, 0
  %v634 = vsel %vm578, %v462, 0
  %v637 = vsel %vm578, %v464, 0
  %v640 = vsel %vm578, %v466, 0
  %v643 = vsel %vm578, %v468, 0
  %v646 = vsel %vm578, %v470, 0
  %v649 = vsel %vm578, %v472, 0
  %v652 = vsel %vm578, %v474, 0
  %v655 = vsel %vm578, %v476, 0
  %v658 = vsel %vm578, %v478, 0
  %v661 = vsel %vm578, %v480, 0
  %v664 = vsel %vm578, %v482, 0
  %v667 = vsel %vm578, %v484, 0
  %v670 = vsel %vm578, %v486, 0
  %v673 = vsel %vm578, %v488, 0
  %vm675 = vcmask 1043456
  %v677 = vsel %vm675, %v568, 0
  %679 = vmatprep.subr.bf16.mxu0 0
  %680 = vmatpush1.bf16.msra.mxu0 %v559
  %681 = vmatprep.subr.bf16.mxu0 0
  %682 = vmatpush1.bf16.msra.mxu0 %v560
  %683 = vmatprep.subr.bf16.mxu0 0
  %684 = vmatpush1.bf16.msra.mxu0 %v561
  %685 = vmatprep.subr.bf16.mxu0 0
  %686 = vmatpush1.bf16.msra.mxu0 %v562
  %687 = vmatprep.subr.bf16.mxu0 0
  %688 = vmatpush1.bf16.msra.mxu0 %v563
  %689 = vmatprep.subr.bf16.mxu0 0
  %690 = vmatpush1.bf16.msra.mxu0 %v564
  %691 = vmatprep.subr.bf16.mxu0 0
  %692 = vmatpush1.bf16.msra.mxu0 %v565
  %693 = vmatprep.subr.bf16.mxu0 0
  %694 = vmatpush1.bf16.msra.mxu0 %v566
  %695 = vmatprep.subr.bf16.mxu0 0
  %696 = vmatpush1.bf16.msra.mxu0 %v567
  %697 = vmatprep.subr.bf16.mxu0 0
  %698 = vmatpush1.bf16.msra.mxu0 %v677
  %699 = vmatprep.subr.bf16.mxu0 0
  %700 = vmatpush1.bf16.msra.mxu0 0
  %701 = vmatprep.subr.bf16.mxu0 0
  %702 = vmatpush1.bf16.msra.mxu0 0
  %703 = vmatprep.subr.bf16.mxu0 0
  %704 = vmatpush1.bf16.msra.mxu0 0
  %705 = vmatprep.subr.bf16.mxu0 0
  %706 = vmatpush1.bf16.msra.mxu0 0
  %707 = vmatprep.subr.bf16.mxu0 0
  %708 = vmatpush1.bf16.msra.mxu0 0
  %709 = vmatprep.subr.bf16.mxu0 0
  %710 = vmatpush1.bf16.msra.mxu0 0
  %711 = vmatprep.mubr.bf16.mxu0 %v580
  %712 = vmatmul.mubr.bf16.gmra.mrb[0].mxu0 %v425
  %v713 = vpop.f32.mrb[0].mxu0
  %v714 = vadd.f32 0.0, %v713
  %v715 = vpop.f32.mrb[0].mxu0
  %v716 = vpop.f32.mrb[0].mxu0
  %v717 = vadd.f32 0.0, %v716
  %v718 = vpop.f32.mrb[0].mxu0
  %719 = vmatprep.mubr.bf16.mxu0 %v583
  %720 = vmatmul.mubr.bf16.gmra.mrb[0].mxu0 %v427
  %v721 = vpop.f32.mrb[0].mxu0
  %v722 = vadd.f32 0.0, %v721
  %v723 = vpop.f32.mrb[0].mxu0
  %v724 = vpop.f32.mrb[0].mxu0
  %v725 = vadd.f32 0.0, %v724
  %v726 = vpop.f32.mrb[0].mxu0
  %727 = vmatprep.mubr.bf16.mxu0 %v586
  %728 = vmatmul.mubr.bf16.gmra.mrb[0].mxu0 %v429
  %v729 = vpop.f32.mrb[0].mxu0
  %v730 = vadd.f32 0.0, %v729
  %v731 = vpop.f32.mrb[0].mxu0
  %v732 = vpop.f32.mrb[0].mxu0
  %v733 = vadd.f32 0.0, %v732
  %v734 = vpop.f32.mrb[0].mxu0
  %735 = vmatprep.mubr.bf16.mxu0 %v589
  %736 = vmatmul.mubr.bf16.gmra.mrb[0].mxu0 %v431
  %v737 = vpop.f32.mrb[0].mxu0
  %v738 = vadd.f32 0.0, %v737
  %v739 = vpop.f32.mrb[0].mxu0
  %v740 = vpop.f32.mrb[0].mxu0
  %v741 = vadd.f32 0.0, %v740
  %v742 = vpop.f32.mrb[0].mxu0
  %743 = vmatprep.mubr.bf16.mxu0 %v592
  %744 = vmatmul.mubr.bf16.gmra.mrb[0].mxu0 %v433
  %v745 = vpop.f32.mrb[0].mxu0
  %v746 = vadd.f32 0.0, %v745
  %v747 = vpop.f32.mrb[0].mxu0
  %v748 = vpop.f32.mrb[0].mxu0
  %v749 = vadd.f32 0.0, %v748
  %v750 = vpop.f32.mrb[0].mxu0
  %751 = vmatprep.mubr.bf16.mxu0 %v595
  %752 = vmatmul.mubr.bf16.gmra.mrb[0].mxu0 %v435
  %v753 = vpop.f32.mrb[0].mxu0
  %v754 = vadd.f32 0.0, %v753
  %v755 = vpop.f32.mrb[0].mxu0
  %v756 = vpop.f32.mrb[0].mxu0
  %v757 = vadd.f32 0.0, %v756
  %v758 = vpop.f32.mrb[0].mxu0
  %759 = vmatprep.mubr.bf16.mxu0 %v598
  %760 = vmatmul.mubr.bf16.gmra.mrb[0].mxu0 %v437
  %v761 = vpop.f32.mrb[0].mxu0
  %v762 = vadd.f32 0.0, %v761
  %v763 = vpop.f32.mrb[0].mxu0
  %v764 = vpop.f32.mrb[0].mxu0
  %v765 = vadd.f32 0.0, %v764
  %v766 = vpop.f32.mrb[0].mxu0
  %767 = vmatprep.mubr.bf16.mxu0 %v601
  %768 = vmatmul.mubr.bf16.gmra.mrb[0].mxu0 %v439
  %v769 = vpop.f32.mrb[0].mxu0
  %v770 = vadd.f32 0.0, %v769
  %v771 = vpop.f32.mrb[0].mxu0
  %v772 = vpop.f32.mrb[0].mxu0
  %v773 = vadd.f32 0.0, %v772
  %v774 = vpop.f32.mrb[0].mxu0
  %775 = vmatprep.mubr.bf16.mxu0 %v604
  %776 = vmatmul.mubr.bf16.gmra.mrb[0].mxu0 %v441
  %v777 = vpop.f32.mrb[0].mxu0
  %v778 = vadd.f32 0.0, %v777
  %v779 = vpop.f32.mrb[0].mxu0
  %v780 = vpop.f32.mrb[0].mxu0
  %v781 = vadd.f32 0.0, %v780
  %v782 = vpop.f32.mrb[0].mxu0
  %783 = vmatprep.mubr.bf16.mxu0 %v607
  %784 = vmatmul.mubr.bf16.gmra.mrb[0].mxu0 %v443
  %v785 = vpop.f32.mrb[0].mxu0
  %v786 = vadd.f32 0.0, %v785
  %v787 = vpop.f32.mrb[0].mxu0
  %v788 = vpop.f32.mrb[0].mxu0
  %v789 = vadd.f32 0.0, %v788
  %v790 = vpop.f32.mrb[0].mxu0
  %791 = vmatprep.mubr.bf16.mxu0 %v610
  %792 = vmatmul.mubr.bf16.gmra.mrb[0].mxu0 %v445
  %v793 = vpop.f32.mrb[0].mxu0
  %v794 = vadd.f32 0.0, %v793
  %v795 = vpop.f32.mrb[0].mxu0
  %v796 = vpop.f32.mrb[0].mxu0
  %v797 = vadd.f32 0.0, %v796
  %v798 = vpop.f32.mrb[0].mxu0
  %799 = vmatprep.mubr.bf16.mxu0 %v613
  %800 = vmatmul.mubr.bf16.gmra.mrb[0].mxu0 %v447
  %v801 = vpop.f32.mrb[0].mxu0
  %v802 = vadd.f32 0.0, %v801
  %v803 = vpop.f32.mrb[0].mxu0
  %v804 = vpop.f32.mrb[0].mxu0
  %v805 = vadd.f32 0.0, %v804
  %v806 = vpop.f32.mrb[0].mxu0
  %807 = vmatprep.mubr.bf16.mxu0 %v616
  %808 = vmatmul.mubr.bf16.gmra.mrb[0].mxu0 %v449
  %v809 = vpop.f32.mrb[0].mxu0
  %v810 = vadd.f32 0.0, %v809
  %v811 = vpop.f32.mrb[0].mxu0
  %v812 = vpop.f32.mrb[0].mxu0
  %v813 = vadd.f32 0.0, %v812
  %v814 = vpop.f32.mrb[0].mxu0
  %815 = vmatprep.mubr.bf16.mxu0 %v619
  %816 = vmatmul.mubr.bf16.gmra.mrb[0].mxu0 %v451
  %v817 = vpop.f32.mrb[0].mxu0
  %v818 = vadd.f32 0.0, %v817
  %v819 = vpop.f32.mrb[0].mxu0
  %v820 = vpop.f32.mrb[0].mxu0
  %v821 = vadd.f32 0.0, %v820
  %v822 = vpop.f32.mrb[0].mxu0
  %823 = vmatprep.mubr.bf16.mxu0 %v622
  %824 = vmatmul.mubr.bf16.gmra.mrb[0].mxu0 %v453
  %v825 = vpop.f32.mrb[0].mxu0
  %v826 = vadd.f32 0.0, %v825
  %v827 = vpop.f32.mrb[0].mxu0
  %v828 = vpop.f32.mrb[0].mxu0
  %v829 = vadd.f32 0.0, %v828
  %v830 = vpop.f32.mrb[0].mxu0
  %831 = vmatprep.mubr.bf16.mxu0 %v625
  %832 = vmatmul.mubr.bf16.gmra.mrb[0].mxu0 %v455
  %v833 = vpop.f32.mrb[0].mxu0
  %v834 = vadd.f32 0.0, %v833
  %v835 = vpop.f32.mrb[0].mxu0
  %v836 = vpop.f32.mrb[0].mxu0
  %v837 = vadd.f32 0.0, %v836
  %v838 = vpop.f32.mrb[0].mxu0
  %839 = vmatprep.mubr.bf16.mxu0 %v628
  %840 = vmatmul.mubr.bf16.gmra.mrb[0].mxu0 %v457
  %v841 = vpop.f32.mrb[0].mxu0
  %v842 = vadd.f32 0.0, %v841
  %v843 = vpop.f32.mrb[0].mxu0
  %v844 = vpop.f32.mrb[0].mxu0
  %v845 = vadd.f32 0.0, %v844
  %v846 = vpop.f32.mrb[0].mxu0
  %847 = vmatprep.mubr.bf16.mxu0 %v631
  %848 = vmatmul.mubr.bf16.gmra.mrb[0].mxu0 %v459
  %v849 = vpop.f32.mrb[0].mxu0
  %v850 = vadd.f32 0.0, %v849
  %v851 = vpop.f32.mrb[0].mxu0
  %v852 = vpop.f32.mrb[0].mxu0
  %v853 = vadd.f32 0.0, %v852
  %v854 = vpop.f32.mrb[0].mxu0
  %855 = vmatprep.mubr.bf16.mxu0 %v634
  %856 = vmatmul.mubr.bf16.gmra.mrb[0].mxu0 %v461
  %v857 = vpop.f32.mrb[0].mxu0
  %v858 = vadd.f32 0.0, %v857
  %v859 = vpop.f32.mrb[0].mxu0
  %v860 = vpop.f32.mrb[0].mxu0
  %v861 = vadd.f32 0.0, %v860
  %v862 = vpop.f32.mrb[0].mxu0
  %863 = vmatprep.mubr.bf16.mxu0 %v637
  %864 = vmatmul.mubr.bf16.gmra.mrb[0].mxu0 %v463
  %v865 = vpop.f32.mrb[0].mxu0
  %v866 = vadd.f32 0.0, %v865
  %v867 = vpop.f32.mrb[0].mxu0
  %v868 = vpop.f32.mrb[0].mxu0
  %v869 = vadd.f32 0.0, %v868
  %v870 = vpop.f32.mrb[0].mxu0
  %871 = vmatprep.mubr.bf16.mxu0 %v640
  %872 = vmatmul.mubr.bf16.gmra.mrb[0].mxu0 %v465
  %v873 = vpop.f32.mrb[0].mxu0
  %v874 = vadd.f32 0.0, %v873
  %v875 = vpop.f32.mrb[0].mxu0
  %v876 = vpop.f32.mrb[0].mxu0
  %v877 = vadd.f32 0.0, %v876
  %v878 = vpop.f32.mrb[0].mxu0
  %879 = vmatprep.mubr.bf16.mxu0 %v643
  %880 = vmatmul.mubr.bf16.gmra.mrb[0].mxu0 %v467
  %v881 = vpop.f32.mrb[0].mxu0
  %v882 = vadd.f32 0.0, %v881
  %v883 = vpop.f32.mrb[0].mxu0
  %v884 = vpop.f32.mrb[0].mxu0
  %v885 = vadd.f32 0.0, %v884
  %v886 = vpop.f32.mrb[0].mxu0
  %887 = vmatprep.mubr.bf16.mxu0 %v646
  %888 = vmatmul.mubr.bf16.gmra.mrb[0].mxu0 %v469
  %v889 = vpop.f32.mrb[0].mxu0
  %v890 = vadd.f32 0.0, %v889
  %v891 = vpop.f32.mrb[0].mxu0
  %v892 = vpop.f32.mrb[0].mxu0
  %v893 = vadd.f32 0.0, %v892
  %v894 = vpop.f32.mrb[0].mxu0
  %895 = vmatprep.mubr.bf16.mxu0 %v649
  %896 = vmatmul.mubr.bf16.gmra.mrb[0].mxu0 %v471
  %v897 = vpop.f32.mrb[0].mxu0
  %v898 = vadd.f32 0.0, %v897
  %v899 = vpop.f32.mrb[0].mxu0
  %v900 = vpop.f32.mrb[0].mxu0
  %v901 = vadd.f32 0.0, %v900
  %v902 = vpop.f32.mrb[0].mxu0
  %903 = vmatprep.mubr.bf16.mxu0 %v652
  %904 = vmatmul.mubr.bf16.gmra.mrb[0].mxu0 %v473
  %v905 = vpop.f32.mrb[0].mxu0
  %v906 = vadd.f32 0.0, %v905
  %v907 = vpop.f32.mrb[0].mxu0
  %v908 = vpop.f32.mrb[0].mxu0
  %v909 = vadd.f32 0.0, %v908
  %v910 = vpop.f32.mrb[0].mxu0
  %911 = vmatprep.mubr.bf16.mxu0 %v655
  %912 = vmatmul.mubr.bf16.gmra.mrb[0].mxu0 %v475
  %v913 = vpop.f32.mrb[0].mxu0
  %v914 = vadd.f32 0.0, %v913
  %v915 = vpop.f32.mrb[0].mxu0
  %v916 = vpop.f32.mrb[0].mxu0
  %v917 = vadd.f32 0.0, %v916
  %v918 = vpop.f32.mrb[0].mxu0
  %919 = vmatprep.mubr.bf16.mxu0 %v658
  %920 = vmatmul.mubr.bf16.gmra.mrb[0].mxu0 %v477
  %v921 = vpop.f32.mrb[0].mxu0
  %v922 = vadd.f32 0.0, %v921
  %v923 = vpop.f32.mrb[0].mxu0
  %v924 = vpop.f32.mrb[0].mxu0
  %v925 = vadd.f32 0.0, %v924
  %v926 = vpop.f32.mrb[0].mxu0
  %927 = vmatprep.mubr.bf16.mxu0 %v661
  %928 = vmatmul.mubr.bf16.gmra.mrb[0].mxu0 %v479
  %v929 = vpop.f32.mrb[0].mxu0
  %v930 = vadd.f32 0.0, %v929
  %v931 = vpop.f32.mrb[0].mxu0
  %v932 = vpop.f32.mrb[0].mxu0
  %v933 = vadd.f32 0.0, %v932
  %v934 = vpop.f32.mrb[0].mxu0
  %935 = vmatprep.mubr.bf16.mxu0 %v664
  %936 = vmatmul.mubr.bf16.gmra.mrb[0].mxu0 %v481
  %v937 = vpop.f32.mrb[0].mxu0
  %v938 = vadd.f32 0.0, %v937
  %v939 = vpop.f32.mrb[0].mxu0
  %v940 = vpop.f32.mrb[0].mxu0
  %v941 = vadd.f32 0.0, %v940
  %v942 = vpop.f32.mrb[0].mxu0
  %943 = vmatprep.mubr.bf16.mxu0 %v667
  %944 = vmatmul.mubr.bf16.gmra.mrb[0].mxu0 %v483
  %v945 = vpop.f32.mrb[0].mxu0
  %v946 = vadd.f32 0.0, %v945
  %v947 = vpop.f32.mrb[0].mxu0
  %v948 = vpop.f32.mrb[0].mxu0
  %v949 = vadd.f32 0.0, %v948
  %v950 = vpop.f32.mrb[0].mxu0
  %951 = vmatprep.mubr.bf16.mxu0 %v670
  %952 = vmatmul.mubr.bf16.gmra.mrb[0].mxu0 %v485
  %v953 = vpop.f32.mrb[0].mxu0
  %v954 = vadd.f32 0.0, %v953
  %v955 = vpop.f32.mrb[0].mxu0
  %v956 = vpop.f32.mrb[0].mxu0
  %v957 = vadd.f32 0.0, %v956
  %v958 = vpop.f32.mrb[0].mxu0
  %959 = vmatprep.mubr.bf16.mxu0 %v673
  %960 = vmatmul.mubr.bf16.gmra.mrb[0].mxu0 %v487
  %v961 = vpop.f32.mrb[0].mxu0
  %v962 = vadd.f32 0.0, %v961
  %v963 = vpop.f32.mrb[0].mxu0
  %v964 = vpop.f32.mrb[0].mxu0
  %v965 = vadd.f32 0.0, %v964
  %v966 = vpop.f32.mrb[0].mxu0
  %967 = vdwg.mxu0
  %v968 = vadd.f32 %v86, %v714
  %v969 = vadd.f32 %v87, %v717
  %v970 = vadd.f32 %v88, %v722
  %v971 = vadd.f32 %v89, %v725
  %v972 = vadd.f32 %v90, %v730
  %v973 = vadd.f32 %v91, %v733
  %v974 = vadd.f32 %v92, %v738
  %v975 = vadd.f32 %v93, %v741
  %v976 = vadd.f32 %v94, %v746
  %v977 = vadd.f32 %v95, %v749
  %v978 = vadd.f32 %v96, %v754
  %v979 = vadd.f32 %v97, %v757
  %v980 = vadd.f32 %v98, %v762
  %v981 = vadd.f32 %v99, %v765
  %v982 = vadd.f32 %v100, %v770
  %v983 = vadd.f32 %v101, %v773
  %v984 = vadd.f32 %v102, %v778
  %v985 = vadd.f32 %v103, %v781
  %v986 = vadd.f32 %v104, %v786
  %v987 = vadd.f32 %v105, %v789
  %v988 = vadd.f32 %v106, %v794
  %v989 = vadd.f32 %v107, %v797
  %v990 = vadd.f32 %v108, %v802
  %v991 = vadd.f32 %v109, %v805
  %v992 = vadd.f32 %v110, %v810
  %v993 = vadd.f32 %v111, %v813
  %v994 = vadd.f32 %v112, %v818
  %v995 = vadd.f32 %v113, %v821
  %v996 = vadd.f32 %v114, %v826
  %v997 = vadd.f32 %v115, %v829
  %v998 = vadd.f32 %v116, %v834
  %v999 = vadd.f32 %v117, %v837
  %v1000 = vadd.f32 %v118, %v842
  %v1001 = vadd.f32 %v119, %v845
  %v1002 = vadd.f32 %v120, %v850
  %v1003 = vadd.f32 %v121, %v853
  %v1004 = vadd.f32 %v122, %v858
  %v1005 = vadd.f32 %v123, %v861
  %v1006 = vadd.f32 %v124, %v866
  %v1007 = vadd.f32 %v125, %v869
  %v1008 = vadd.f32 %v126, %v874
  %v1009 = vadd.f32 %v127, %v877
  %v1010 = vadd.f32 %v128, %v882
  %v1011 = vadd.f32 %v129, %v885
  %v1012 = vadd.f32 %v130, %v890
  %v1013 = vadd.f32 %v131, %v893
  %v1014 = vadd.f32 %v132, %v898
  %v1015 = vadd.f32 %v133, %v901
  %v1016 = vadd.f32 %v134, %v906
  %v1017 = vadd.f32 %v135, %v909
  %v1018 = vadd.f32 %v136, %v914
  %v1019 = vadd.f32 %v137, %v917
  %v1020 = vadd.f32 %v138, %v922
  %v1021 = vadd.f32 %v139, %v925
  %v1022 = vadd.f32 %v140, %v930
  %v1023 = vadd.f32 %v141, %v933
  %v1024 = vadd.f32 %v142, %v938
  %v1025 = vadd.f32 %v143, %v941
  %v1026 = vadd.f32 %v144, %v946
  %v1027 = vadd.f32 %v145, %v949
  %v1028 = vadd.f32 %v146, %v954
  %v1029 = vadd.f32 %v147, %v957
  %v1030 = vadd.f32 %v148, %v962
  %v1031 = vadd.f32 %v149, %v965
  %1032 = vst [vmem:[#allocation2] sm:$0xff] %v968
  %1033 = vst [vmem:[#allocation2 + $0x8] sm:$0xff] %v969
  %1034 = vst [vmem:[#allocation2 + $0x10] sm:$0xff] %v970
  %1035 = vst [vmem:[#allocation2 + $0x18] sm:$0xff] %v971
  %1036 = vst [vmem:[#allocation2 + $0x20] sm:$0xff] %v972
  %1037 = vst [vmem:[#allocation2 + $0x28] sm:$0xff] %v973
  %1038 = vst [vmem:[#allocation2 + $0x30] sm:$0xff] %v974
  %1039 = vst [vmem:[#allocation2 + $0x38] sm:$0xff] %v975
  %1040 = vst [vmem:[#allocation2 + $0x40] sm:$0xff] %v976
  %1041 = vst [vmem:[#allocation2 + $0x48] sm:$0xff] %v977
  %1042 = vst [vmem:[#allocation2 + $0x50] sm:$0xff] %v978
  %1043 = vst [vmem:[#allocation2 + $0x58] sm:$0xff] %v979
  %1044 = vst [vmem:[#allocation2 + $0x60] sm:$0xff] %v980
  %1045 = vst [vmem:[#allocation2 + $0x68] sm:$0xff] %v981
  %1046 = vst [vmem:[#allocation2 + $0x70] sm:$0xff] %v982
  %1047 = vst [vmem:[#allocation2 + $0x78] sm:$0xff] %v983
  %1048 = vst [vmem:[#allocation2 + $0x80] sm:$0xff] %v984
  %1049 = vst [vmem:[#allocation2 + $0x88] sm:$0xff] %v985
  %1050 = vst [vmem:[#allocation2 + $0x90] sm:$0xff] %v986
  %1051 = vst [vmem:[#allocation2 + $0x98] sm:$0xff] %v987
  %1052 = vst [vmem:[#allocation2 + $0xa0] sm:$0xff] %v988
  %1053 = vst [vmem:[#allocation2 + $0xa8] sm:$0xff] %v989
  %1054 = vst [vmem:[#allocation2 + $0xb0] sm:$0xff] %v990
  %1055 = vst [vmem:[#allocation2 + $0xb8] sm:$0xff] %v991
  %1056 = vst [vmem:[#allocation2 + $0xc0] sm:$0xff] %v992
  %1057 = vst [vmem:[#allocation2 + $0xc8] sm:$0xff] %v993
  %1058 = vst [vmem:[#allocation2 + $0xd0] sm:$0xff] %v994
  %1059 = vst [vmem:[#allocation2 + $0xd8] sm:$0xff] %v995
  %1060 = vst [vmem:[#allocation2 + $0xe0] sm:$0xff] %v996
  %1061 = vst [vmem:[#allocation2 + $0xe8] sm:$0xff] %v997
  %1062 = vst [vmem:[#allocation2 + $0xf0] sm:$0xff] %v998
  %1063 = vst [vmem:[#allocation2 + $0xf8] sm:$0xff] %v999
  %1064 = vst [vmem:[#allocation2 + $0x100] sm:$0xff] %v1000
  %1065 = vst [vmem:[#allocation2 + $0x108] sm:$0xff] %v1001
  %1066 = vst [vmem:[#allocation2 + $0x110] sm:$0xff] %v1002
  %1067 = vst [vmem:[#allocation2 + $0x118] sm:$0xff] %v1003
  %1068 = vst [vmem:[#allocation2 + $0x120] sm:$0xff] %v1004
  %1069 = vst [vmem:[#allocation2 + $0x128] sm:$0xff] %v1005
  %1070 = vst [vmem:[#allocation2 + $0x130] sm:$0xff] %v1006
  %1071 = vst [vmem:[#allocation2 + $0x138] sm:$0xff] %v1007
  %1072 = vst [vmem:[#allocation2 + $0x140] sm:$0xff] %v1008
  %1073 = vst [vmem:[#allocation2 + $0x148] sm:$0xff] %v1009
  %1074 = vst [vmem:[#allocation2 + $0x150] sm:$0xff] %v1010
  %1075 = vst [vmem:[#allocation2 + $0x158] sm:$0xff] %v1011
  %1076 = vst [vmem:[#allocation2 + $0x160] sm:$0xff] %v1012
  %1077 = vst [vmem:[#allocation2 + $0x168] sm:$0xff] %v1013
  %1078 = vst [vmem:[#allocation2 + $0x170] sm:$0xff] %v1014
  %1079 = vst [vmem:[#allocation2 + $0x178] sm:$0xff] %v1015
  %1080 = vst [vmem:[#allocation2 + $0x180] sm:$0xff] %v1016
  %1081 = vst [vmem:[#allocation2 + $0x188] sm:$0xff] %v1017
  %1082 = vst [vmem:[#allocation2 + $0x190] sm:$0xff] %v1018
  %1083 = vst [vmem:[#allocation2 + $0x198] sm:$0xff] %v1019
  %1084 = vst [vmem:[#allocation2 + $0x1a0] sm:$0xff] %v1020
  %1085 = vst [vmem:[#allocation2 + $0x1a8] sm:$0xff] %v1021
  %1086 = vst [vmem:[#allocation2 + $0x1b0] sm:$0xff] %v1022
  %1087 = vst [vmem:[#allocation2 + $0x1b8] sm:$0xff] %v1023
  %1088 = vst [vmem:[#allocation2 + $0x1c0] sm:$0xff] %v1024
  %1089 = vst [vmem:[#allocation2 + $0x1c8] sm:$0xff] %v1025
  %1090 = vst [vmem:[#allocation2 + $0x1d0] sm:$0xff] %v1026
  %1091 = vst [vmem:[#allocation2 + $0x1d8] sm:$0xff] %v1027
  %1092 = vst [vmem:[#allocation2 + $0x1e0] sm:$0xff] %v1028
  %1093 = vst [vmem:[#allocation2 + $0x1e8] sm:$0xff] %v1029
  %1094 = vst [vmem:[#allocation2 + $0x1f0] sm:$0xff] %v1030
  %1095 = vst [vmem:[#allocation2 + $0x1f8] sm:$0xff] %v1031
  // Predicated region
  $region22: #{_lambda_.11} parent=0 // pred_check
    %p1096 = pneg %p18
  $region23: #{_lambda_.11} parent=0 // pred_check_branch
    %1098 = sbr.rel (%p1096) target = $region25
  $region24: #{_lambda_.11} parent=0 // pred_region
    %v1099 = vld [vmem:[#allocation2] sm:$0xff]
    %v1100 = vld [vmem:[#allocation2 + $0x8] sm:$0xff]
    %v1101 = vld [vmem:[#allocation2 + $0x10] sm:$0xff]
    %v1102 = vld [vmem:[#allocation2 + $0x18] sm:$0xff]
    %v1103 = vld [vmem:[#allocation2 + $0x20] sm:$0xff]
    %v1104 = vld [vmem:[#allocation2 + $0x28] sm:$0xff]
    %v1105 = vld [vmem:[#allocation2 + $0x30] sm:$0xff]
    %v1106 = vld [vmem:[#allocation2 + $0x38] sm:$0xff]
    %v1107 = vld [vmem:[#allocation2 + $0x40] sm:$0xff]
    %v1108 = vld [vmem:[#allocation2 + $0x48] sm:$0xff]
    %v1109 = vld [vmem:[#allocation2 + $0x50] sm:$0xff]
    %v1110 = vld [vmem:[#allocation2 + $0x58] sm:$0xff]
    %v1111 = vld [vmem:[#allocation2 + $0x60] sm:$0xff]
    %v1112 = vld [vmem:[#allocation2 + $0x68] sm:$0xff]
    %v1113 = vld [vmem:[#allocation2 + $0x70] sm:$0xff]
    %v1114 = vld [vmem:[#allocation2 + $0x78] sm:$0xff]
    %v1115 = vld [vmem:[#allocation2 + $0x80] sm:$0xff]
    %v1116 = vld [vmem:[#allocation2 + $0x88] sm:$0xff]
    %v1117 = vld [vmem:[#allocation2 + $0x90] sm:$0xff]
    %v1118 = vld [vmem:[#allocation2 + $0x98] sm:$0xff]
    %v1119 = vld [vmem:[#allocation2 + $0xa0] sm:$0xff]
    %v1120 = vld [vmem:[#allocation2 + $0xa8] sm:$0xff]
    %v1121 = vld [vmem:[#allocation2 + $0xb0] sm:$0xff]
    %v1122 = vld [vmem:[#allocation2 + $0xb8] sm:$0xff]
    %v1123 = vld [vmem:[#allocation2 + $0xc0] sm:$0xff]
    %v1124 = vld [vmem:[#allocation2 + $0xc8] sm:$0xff]
    %v1125 = vld [vmem:[#allocation2 + $0xd0] sm:$0xff]
    %v1126 = vld [vmem:[#allocation2 + $0xd8] sm:$0xff]
    %v1127 = vld [vmem:[#allocation2 + $0xe0] sm:$0xff]
    %v1128 = vld [vmem:[#allocation2 + $0xe8] sm:$0xff]
    %v1129 = vld [vmem:[#allocation2 + $0xf0] sm:$0xff]
    %v1130 = vld [vmem:[#allocation2 + $0xf8] sm:$0xff]
    %v1131 = vld [vmem:[#allocation2 + $0x100] sm:$0xff]
    %v1132 = vld [vmem:[#allocation2 + $0x108] sm:$0xff]
    %v1133 = vld [vmem:[#allocation2 + $0x110] sm:$0xff]
    %v1134 = vld [vmem:[#allocation2 + $0x118] sm:$0xff]
    %v1135 = vld [vmem:[#allocation2 + $0x120] sm:$0xff]
    %v1136 = vld [vmem:[#allocation2 + $0x128] sm:$0xff]
    %v1137 = vld [vmem:[#allocation2 + $0x130] sm:$0xff]
    %v1138 = vld [vmem:[#allocation2 + $0x138] sm:$0xff]
    %v1139 = vld [vmem:[#allocation2 + $0x140] sm:$0xff]
    %v1140 = vld [vmem:[#allocation2 + $0x148] sm:$0xff]
    %v1141 = vld [vmem:[#allocation2 + $0x150] sm:$0xff]
    %v1142 = vld [vmem:[#allocation2 + $0x158] sm:$0xff]
    %v1143 = vld [vmem:[#allocation2 + $0x160] sm:$0xff]
    %v1144 = vld [vmem:[#allocation2 + $0x168] sm:$0xff]
    %v1145 = vld [vmem:[#allocation2 + $0x170] sm:$0xff]
    %v1146 = vld [vmem:[#allocation2 + $0x178] sm:$0xff]
    %v1147 = vld [vmem:[#allocation2 + $0x180] sm:$0xff]
    %v1148 = vld [vmem:[#allocation2 + $0x188] sm:$0xff]
    %v1149 = vld [vmem:[#allocation2 + $0x190] sm:$0xff]
    %v1150 = vld [vmem:[#allocation2 + $0x198] sm:$0xff]
    %v1151 = vld [vmem:[#allocation2 + $0x1a0] sm:$0xff]
    %v1152 = vld [vmem:[#allocation2 + $0x1a8] sm:$0xff]
    %v1153 = vld [vmem:[#allocation2 + $0x1b0] sm:$0xff]
    %v1154 = vld [vmem:[#allocation2 + $0x1b8] sm:$0xff]
    %v1155 = vld [vmem:[#allocation2 + $0x1c0] sm:$0xff]
    %v1156 = vld [vmem:[#allocation2 + $0x1c8] sm:$0xff]
    %v1157 = vld [vmem:[#allocation2 + $0x1d0] sm:$0xff]
    %v1158 = vld [vmem:[#allocation2 + $0x1d8] sm:$0xff]
    %v1159 = vld [vmem:[#allocation2 + $0x1e0] sm:$0xff]
    %v1160 = vld [vmem:[#allocation2 + $0x1e8] sm:$0xff]
    %v1161 = vld [vmem:[#allocation2 + $0x1f0] sm:$0xff]
    %v1162 = vld [vmem:[#allocation2 + $0x1f8] sm:$0xff]
    %v1163 = vld [vmem:[%s2] sm:$0x1]
    %v1165 = vlaneseq
    %v1166 = vshrl.u32 %v1165, 7
    %v1167 = vsub.s32 0, %v1166
    %v1168 = vrot.slane %v1163, %v1167
    %v1170 = vmul.f32 %v1099, %v1168
    %v1171 = vmul.f32 %v1100, %v1168
    %v1172 = vmul.f32 %v1101, %v1168
    %v1173 = vmul.f32 %v1102, %v1168
    %v1174 = vmul.f32 %v1103, %v1168
    %v1175 = vmul.f32 %v1104, %v1168
    %v1176 = vmul.f32 %v1105, %v1168
    %v1177 = vmul.f32 %v1106, %v1168
    %v1178 = vmul.f32 %v1107, %v1168
    %v1179 = vmul.f32 %v1108, %v1168
    %v1180 = vmul.f32 %v1109, %v1168
    %v1181 = vmul.f32 %v1110, %v1168
    %v1182 = vmul.f32 %v1111, %v1168
    %v1183 = vmul.f32 %v1112, %v1168
    %v1184 = vmul.f32 %v1113, %v1168
    %v1185 = vmul.f32 %v1114, %v1168
    %v1186 = vmul.f32 %v1115, %v1168
    %v1187 = vmul.f32 %v1116, %v1168
    %v1188 = vmul.f32 %v1117, %v1168
    %v1189 = vmul.f32 %v1118, %v1168
    %v1190 = vmul.f32 %v1119, %v1168
    %v1191 = vmul.f32 %v1120, %v1168
    %v1192 = vmul.f32 %v1121, %v1168
    %v1193 = vmul.f32 %v1122, %v1168
    %v1194 = vmul.f32 %v1123, %v1168
    %v1195 = vmul.f32 %v1124, %v1168
    %v1196 = vmul.f32 %v1125, %v1168
    %v1197 = vmul.f32 %v1126, %v1168
    %v1198 = vmul.f32 %v1127, %v1168
    %v1199 = vmul.f32 %v1128, %v1168
    %v1200 = vmul.f32 %v1129, %v1168
    %v1201 = vmul.f32 %v1130, %v1168
    %v1202 = vmul.f32 %v1131, %v1168
    %v1203 = vmul.f32 %v1132, %v1168
    %v1204 = vmul.f32 %v1133, %v1168
    %v1205 = vmul.f32 %v1134, %v1168
    %v1206 = vmul.f32 %v1135, %v1168
    %v1207 = vmul.f32 %v1136, %v1168
    %v1208 = vmul.f32 %v1137, %v1168
    %v1209 = vmul.f32 %v1138, %v1168
    %v1210 = vmul.f32 %v1139, %v1168
    %v1211 = vmul.f32 %v1140, %v1168
    %v1212 = vmul.f32 %v1141, %v1168
    %v1213 = vmul.f32 %v1142, %v1168
    %v1214 = vmul.f32 %v1143, %v1168
    %v1215 = vmul.f32 %v1144, %v1168
    %v1216 = vmul.f32 %v1145, %v1168
    %v1217 = vmul.f32 %v1146, %v1168
    %v1218 = vmul.f32 %v1147, %v1168
    %v1219 = vmul.f32 %v1148, %v1168
    %v1220 = vmul.f32 %v1149, %v1168
    %v1221 = vmul.f32 %v1150, %v1168
    %v1222 = vmul.f32 %v1151, %v1168
    %v1223 = vmul.f32 %v1152, %v1168
    %v1224 = vmul.f32 %v1153, %v1168
    %v1225 = vmul.f32 %v1154, %v1168
    %v1226 = vmul.f32 %v1155, %v1168
    %v1227 = vmul.f32 %v1156, %v1168
    %v1228 = vmul.f32 %v1157, %v1168
    %v1229 = vmul.f32 %v1158, %v1168
    %v1230 = vmul.f32 %v1159, %v1168
    %v1231 = vmul.f32 %v1160, %v1168
    %v1232 = vmul.f32 %v1161, %v1168
    %v1233 = vmul.f32 %v1162, %v1168
    %v1234 = vld [vmem:[%s3] sm:$0x1]
    %v1236 = vlaneseq
    %v1237 = vshrl.u32 %v1236, 7
    %v1238 = vsub.s32 0, %v1237
    %v1239 = vrot.slane %v1234, %v1238
    %v1241 = vadd.f32 %v1170, %v1239
    %v1242 = vadd.f32 %v1171, %v1239
    %v1243 = vadd.f32 %v1172, %v1239
    %v1244 = vadd.f32 %v1173, %v1239
    %v1245 = vadd.f32 %v1174, %v1239
    %v1246 = vadd.f32 %v1175, %v1239
    %v1247 = vadd.f32 %v1176, %v1239
    %v1248 = vadd.f32 %v1177, %v1239
    %v1249 = vadd.f32 %v1178, %v1239
    %v1250 = vadd.f32 %v1179, %v1239
    %v1251 = vadd.f32 %v1180, %v1239
    %v1252 = vadd.f32 %v1181, %v1239
    %v1253 = vadd.f32 %v1182, %v1239
    %v1254 = vadd.f32 %v1183, %v1239
    %v1255 = vadd.f32 %v1184, %v1239
    %v1256 = vadd.f32 %v1185, %v1239
    %v1257 = vadd.f32 %v1186, %v1239
    %v1258 = vadd.f32 %v1187, %v1239
    %v1259 = vadd.f32 %v1188, %v1239
    %v1260 = vadd.f32 %v1189, %v1239
    %v1261 = vadd.f32 %v1190, %v1239
    %v1262 = vadd.f32 %v1191, %v1239
    %v1263 = vadd.f32 %v1192, %v1239
    %v1264 = vadd.f32 %v1193, %v1239
    %v1265 = vadd.f32 %v1194, %v1239
    %v1266 = vadd.f32 %v1195, %v1239
    %v1267 = vadd.f32 %v1196, %v1239
    %v1268 = vadd.f32 %v1197, %v1239
    %v1269 = vadd.f32 %v1198, %v1239
    %v1270 = vadd.f32 %v1199, %v1239
    %v1271 = vadd.f32 %v1200, %v1239
    %v1272 = vadd.f32 %v1201, %v1239
    %v1273 = vadd.f32 %v1202, %v1239
    %v1274 = vadd.f32 %v1203, %v1239
    %v1275 = vadd.f32 %v1204, %v1239
    %v1276 = vadd.f32 %v1205, %v1239
    %v1277 = vadd.f32 %v1206, %v1239
    %v1278 = vadd.f32 %v1207, %v1239
    %v1279 = vadd.f32 %v1208, %v1239
    %v1280 = vadd.f32 %v1209, %v1239
    %v1281 = vadd.f32 %v1210, %v1239
    %v1282 = vadd.f32 %v1211, %v1239
    %v1283 = vadd.f32 %v1212, %v1239
    %v1284 = vadd.f32 %v1213, %v1239
    %v1285 = vadd.f32 %v1214, %v1239
    %v1286 = vadd.f32 %v1215, %v1239
    %v1287 = vadd.f32 %v1216, %v1239
    %v1288 = vadd.f32 %v1217, %v1239
    %v1289 = vadd.f32 %v1218, %v1239
    %v1290 = vadd.f32 %v1219, %v1239
    %v1291 = vadd.f32 %v1220, %v1239
    %v1292 = vadd.f32 %v1221, %v1239
    %v1293 = vadd.f32 %v1222, %v1239
    %v1294 = vadd.f32 %v1223, %v1239
    %v1295 = vadd.f32 %v1224, %v1239
    %v1296 = vadd.f32 %v1225, %v1239
    %v1297 = vadd.f32 %v1226, %v1239
    %v1298 = vadd.f32 %v1227, %v1239
    %v1299 = vadd.f32 %v1228, %v1239
    %v1300 = vadd.f32 %v1229, %v1239
    %v1301 = vadd.f32 %v1230, %v1239
    %v1302 = vadd.f32 %v1231, %v1239
    %v1303 = vadd.f32 %v1232, %v1239
    %v1304 = vadd.f32 %v1233, %v1239
    %v1305 = vmax.f32 %v1241, 0.0
    %v1306 = vmax.f32 %v1242, 0.0
    %v1307 = vmax.f32 %v1243, 0.0
    %v1308 = vmax.f32 %v1244, 0.0
    %v1309 = vmax.f32 %v1245, 0.0
    %v1310 = vmax.f32 %v1246, 0.0
    %v1311 = vmax.f32 %v1247, 0.0
    %v1312 = vmax.f32 %v1248, 0.0
    %v1313 = vmax.f32 %v1249, 0.0
    %v1314 = vmax.f32 %v1250, 0.0
    %v1315 = vmax.f32 %v1251, 0.0
    %v1316 = vmax.f32 %v1252, 0.0
    %v1317 = vmax.f32 %v1253, 0.0
    %v1318 = vmax.f32 %v1254, 0.0
    %v1319 = vmax.f32 %v1255, 0.0
    %v1320 = vmax.f32 %v1256, 0.0
    %v1321 = vmax.f32 %v1257, 0.0
    %v1322 = vmax.f32 %v1258, 0.0
    %v1323 = vmax.f32 %v1259, 0.0
    %v1324 = vmax.f32 %v1260, 0.0
    %v1325 = vmax.f32 %v1261, 0.0
    %v1326 = vmax.f32 %v1262, 0.0
    %v1327 = vmax.f32 %v1263, 0.0
    %v1328 = vmax.f32 %v1264, 0.0
    %v1329 = vmax.f32 %v1265, 0.0
    %v1330 = vmax.f32 %v1266, 0.0
    %v1331 = vmax.f32 %v1267, 0.0
    %v1332 = vmax.f32 %v1268, 0.0
    %v1333 = vmax.f32 %v1269, 0.0
    %v1334 = vmax.f32 %v1270, 0.0
    %v1335 = vmax.f32 %v1271, 0.0
    %v1336 = vmax.f32 %v1272, 0.0
    %v1337 = vmax.f32 %v1273, 0.0
    %v1338 = vmax.f32 %v1274, 0.0
    %v1339 = vmax.f32 %v1275, 0.0
    %v1340 = vmax.f32 %v1276, 0.0
    %v1341 = vmax.f32 %v1277, 0.0
    %v1342 = vmax.f32 %v1278, 0.0
    %v1343 = vmax.f32 %v1279, 0.0
    %v1344 = vmax.f32 %v1280, 0.0
    %v1345 = vmax.f32 %v1281, 0.0
    %v1346 = vmax.f32 %v1282, 0.0
    %v1347 = vmax.f32 %v1283, 0.0
    %v1348 = vmax.f32 %v1284, 0.0
    %v1349 = vmax.f32 %v1285, 0.0
    %v1350 = vmax.f32 %v1286, 0.0
    %v1351 = vmax.f32 %v1287, 0.0
    %v1352 = vmax.f32 %v1288, 0.0
    %v1353 = vmax.f32 %v1289, 0.0
    %v1354 = vmax.f32 %v1290, 0.0
    %v1355 = vmax.f32 %v1291, 0.0
    %v1356 = vmax.f32 %v1292, 0.0
    %v1357 = vmax.f32 %v1293, 0.0
    %v1358 = vmax.f32 %v1294, 0.0
    %v1359 = vmax.f32 %v1295, 0.0
    %v1360 = vmax.f32 %v1296, 0.0
    %v1361 = vmax.f32 %v1297, 0.0
    %v1362 = vmax.f32 %v1298, 0.0
    %v1363 = vmax.f32 %v1299, 0.0
    %v1364 = vmax.f32 %v1300, 0.0
    %v1365 = vmax.f32 %v1301, 0.0
    %v1366 = vmax.f32 %v1302, 0.0
    %v1367 = vmax.f32 %v1303, 0.0
    %v1368 = vmax.f32 %v1304, 0.0
    %v1369 = vpack.c.bf16 %v1306, %v1305
    %v1370 = vpack.c.bf16 %v1308, %v1307
    %v1371 = vpack.c.bf16 %v1310, %v1309
    %v1372 = vpack.c.bf16 %v1312, %v1311
    %v1373 = vpack.c.bf16 %v1314, %v1313
    %v1374 = vpack.c.bf16 %v1316, %v1315
    %v1375 = vpack.c.bf16 %v1318, %v1317
    %v1376 = vpack.c.bf16 %v1320, %v1319
    %v1377 = vpack.c.bf16 %v1322, %v1321
    %v1378 = vpack.c.bf16 %v1324, %v1323
    %v1379 = vpack.c.bf16 %v1326, %v1325
    %v1380 = vpack.c.bf16 %v1328, %v1327
    %v1381 = vpack.c.bf16 %v1330, %v1329
    %v1382 = vpack.c.bf16 %v1332, %v1331
    %v1383 = vpack.c.bf16 %v1334, %v1333
    %v1384 = vpack.c.bf16 %v1336, %v1335
    %v1385 = vpack.c.bf16 %v1338, %v1337
    %v1386 = vpack.c.bf16 %v1340, %v1339
    %v1387 = vpack.c.bf16 %v1342, %v1341
    %v1388 = vpack.c.bf16 %v1344, %v1343
    %v1389 = vpack.c.bf16 %v1346, %v1345
    %v1390 = vpack.c.bf16 %v1348, %v1347
    %v1391 = vpack.c.bf16 %v1350, %v1349
    %v1392 = vpack.c.bf16 %v1352, %v1351
    %v1393 = vpack.c.bf16 %v1354, %v1353
    %v1394 = vpack.c.bf16 %v1356, %v1355
    %v1395 = vpack.c.bf16 %v1358, %v1357
    %v1396 = vpack.c.bf16 %v1360, %v1359
    %v1397 = vpack.c.bf16 %v1362, %v1361
    %v1398 = vpack.c.bf16 %v1364, %v1363
    %v1399 = vpack.c.bf16 %v1366, %v1365
    %v1400 = vpack.c.bf16 %v1368, %v1367
    %v1433 = vunpack.c.l.b16 %v1369
    %v1434 = vunpack.c.h.b16 %v1369
    %v1435 = vunpack.c.l.b16 %v1370
    %v1436 = vunpack.c.h.b16 %v1370
    %v1437 = vunpack.c.l.b16 %v1371
    %v1438 = vunpack.c.h.b16 %v1371
    %v1439 = vunpack.c.l.b16 %v1372
    %v1440 = vunpack.c.h.b16 %v1372
    %v1441 = vunpack.c.l.b16 %v1373
    %v1442 = vunpack.c.h.b16 %v1373
    %v1443 = vunpack.c.l.b16 %v1374
    %v1444 = vunpack.c.h.b16 %v1374
    %v1445 = vunpack.c.l.b16 %v1375
    %v1446 = vunpack.c.h.b16 %v1375
    %v1447 = vunpack.c.l.b16 %v1376
    %v1448 = vunpack.c.h.b16 %v1376
    %v1449 = vunpack.c.l.b16 %v1377
    %v1450 = vunpack.c.h.b16 %v1377
    %v1451 = vunpack.c.l.b16 %v1378
    %v1452 = vunpack.c.h.b16 %v1378
    %v1453 = vunpack.c.l.b16 %v1379
    %v1454 = vunpack.c.h.b16 %v1379
    %v1455 = vunpack.c.l.b16 %v1380
    %v1456 = vunpack.c.h.b16 %v1380
    %v1457 = vunpack.c.l.b16 %v1381
    %v1458 = vunpack.c.h.b16 %v1381
    %v1459 = vunpack.c.l.b16 %v1382
    %v1460 = vunpack.c.h.b16 %v1382
    %v1461 = vunpack.c.l.b16 %v1383
    %v1462 = vunpack.c.h.b16 %v1383
    %v1463 = vunpack.c.l.b16 %v1384
    %v1464 = vunpack.c.h.b16 %v1384
    %v1465 = vunpack.c.l.b16 %v1385
    %v1466 = vunpack.c.h.b16 %v1385
    %v1467 = vunpack.c.l.b16 %v1386
    %v1468 = vunpack.c.h.b16 %v1386
    %v1469 = vunpack.c.l.b16 %v1387
    %v1470 = vunpack.c.h.b16 %v1387
    %v1471 = vunpack.c.l.b16 %v1388
    %v1472 = vunpack.c.h.b16 %v1388
    %v1473 = vunpack.c.l.b16 %v1389
    %v1474 = vunpack.c.h.b16 %v1389
    %v1475 = vunpack.c.l.b16 %v1390
    %v1476 = vunpack.c.h.b16 %v1390
    %v1477 = vunpack.c.l.b16 %v1391
    %v1478 = vunpack.c.h.b16 %v1391
    %v1479 = vunpack.c.l.b16 %v1392
    %v1480 = vunpack.c.h.b16 %v1392
    %v1481 = vunpack.c.l.b16 %v1393
    %v1482 = vunpack.c.h.b16 %v1393
    %v1483 = vunpack.c.l.b16 %v1394
    %v1484 = vunpack.c.h.b16 %v1394
    %v1485 = vunpack.c.l.b16 %v1395
    %v1486 = vunpack.c.h.b16 %v1395
    %v1487 = vunpack.c.l.b16 %v1396
    %v1488 = vunpack.c.h.b16 %v1396
    %v1489 = vunpack.c.l.b16 %v1397
    %v1490 = vunpack.c.h.b16 %v1397
    %v1491 = vunpack.c.l.b16 %v1398
    %v1492 = vunpack.c.h.b16 %v1398
    %v1493 = vunpack.c.l.b16 %v1399
    %v1494 = vunpack.c.h.b16 %v1399
    %v1495 = vunpack.c.l.b16 %v1400
    %v1496 = vunpack.c.h.b16 %v1400
    %v1497 = vpack.c.b16 %v1433, %v1433
    %v1498 = vpack.c.b16 %v1434, %v1434
    %v1499 = vpack.c.b16 %v1435, %v1435
    %v1500 = vpack.c.b16 %v1436, %v1436
    %v1501 = vpack.c.b16 %v1437, %v1437
    %v1502 = vpack.c.b16 %v1438, %v1438
    %v1503 = vpack.c.b16 %v1439, %v1439
    %v1504 = vpack.c.b16 %v1440, %v1440
    %v1505 = vpack.c.b16 %v1441, %v1441
    %v1506 = vpack.c.b16 %v1442, %v1442
    %v1507 = vpack.c.b16 %v1443, %v1443
    %v1508 = vpack.c.b16 %v1444, %v1444
    %v1509 = vpack.c.b16 %v1445, %v1445
    %v1510 = vpack.c.b16 %v1446, %v1446
    %v1511 = vpack.c.b16 %v1447, %v1447
    %v1512 = vpack.c.b16 %v1448, %v1448
    %v1513 = vpack.c.b16 %v1449, %v1449
    %v1514 = vpack.c.b16 %v1450, %v1450
    %v1515 = vpack.c.b16 %v1451, %v1451
    %v1516 = vpack.c.b16 %v1452, %v1452
    %v1517 = vpack.c.b16 %v1453, %v1453
    %v1518 = vpack.c.b16 %v1454, %v1454
    %v1519 = vpack.c.b16 %v1455, %v1455
    %v1520 = vpack.c.b16 %v1456, %v1456
    %v1521 = vpack.c.b16 %v1457, %v1457
    %v1522 = vpack.c.b16 %v1458, %v1458
    %v1523 = vpack.c.b16 %v1459, %v1459
    %v1524 = vpack.c.b16 %v1460, %v1460
    %v1525 = vpack.c.b16 %v1461, %v1461
    %v1526 = vpack.c.b16 %v1462, %v1462
    %v1527 = vpack.c.b16 %v1463, %v1463
    %v1528 = vpack.c.b16 %v1464, %v1464
    %v1529 = vpack.c.b16 %v1465, %v1465
    %v1530 = vpack.c.b16 %v1466, %v1466
    %v1531 = vpack.c.b16 %v1467, %v1467
    %v1532 = vpack.c.b16 %v1468, %v1468
    %v1533 = vpack.c.b16 %v1469, %v1469
    %v1534 = vpack.c.b16 %v1470, %v1470
    %v1535 = vpack.c.b16 %v1471, %v1471
    %v1536 = vpack.c.b16 %v1472, %v1472
    %v1537 = vpack.c.b16 %v1473, %v1473
    %v1538 = vpack.c.b16 %v1474, %v1474
    %v1539 = vpack.c.b16 %v1475, %v1475
    %v1540 = vpack.c.b16 %v1476, %v1476
    %v1541 = vpack.c.b16 %v1477, %v1477
    %v1542 = vpack.c.b16 %v1478, %v1478
    %v1543 = vpack.c.b16 %v1479, %v1479
    %v1544 = vpack.c.b16 %v1480, %v1480
    %v1545 = vpack.c.b16 %v1481, %v1481
    %v1546 = vpack.c.b16 %v1482, %v1482
    %v1547 = vpack.c.b16 %v1483, %v1483
    %v1548 = vpack.c.b16 %v1484, %v1484
    %v1549 = vpack.c.b16 %v1485, %v1485
    %v1550 = vpack.c.b16 %v1486, %v1486
    %v1551 = vpack.c.b16 %v1487, %v1487
    %v1552 = vpack.c.b16 %v1488, %v1488
    %v1553 = vpack.c.b16 %v1489, %v1489
    %v1554 = vpack.c.b16 %v1490, %v1490
    %v1555 = vpack.c.b16 %v1491, %v1491
    %v1556 = vpack.c.b16 %v1492, %v1492
    %v1557 = vpack.c.b16 %v1493, %v1493
    %v1558 = vpack.c.b16 %v1494, %v1494
    %v1559 = vpack.c.b16 %v1495, %v1495
    %v1560 = vpack.c.b16 %v1496, %v1496
    %1625 = vst [vmem:[%s4] sm:$0xf] %v1497
    %1626 = vst [vmem:[%s4 + $0x4] sm:$0xf] %v1498
    %1627 = vst [vmem:[%s4 + $0x8] sm:$0xf] %v1499
    %1628 = vst [vmem:[%s4 + $0xc] sm:$0xf] %v1500
    %1629 = vst [vmem:[%s4 + $0x10] sm:$0xf] %v1501
    %1630 = vst [vmem:[%s4 + $0x14] sm:$0xf] %v1502
    %1631 = vst [vmem:[%s4 + $0x18] sm:$0xf] %v1503
    %1632 = vst [vmem:[%s4 + $0x1c] sm:$0xf] %v1504
    %1633 = vst [vmem:[%s4 + $0x20] sm:$0xf] %v1505
    %1634 = vst [vmem:[%s4 + $0x24] sm:$0xf] %v1506
    %1635 = vst [vmem:[%s4 + $0x28] sm:$0xf] %v1507
    %1636 = vst [vmem:[%s4 + $0x2c] sm:$0xf] %v1508
    %1637 = vst [vmem:[%s4 + $0x30] sm:$0xf] %v1509
    %1638 = vst [vmem:[%s4 + $0x34] sm:$0xf] %v1510
    %1639 = vst [vmem:[%s4 + $0x38] sm:$0xf] %v1511
    %1640 = vst [vmem:[%s4 + $0x3c] sm:$0xf] %v1512
    %1641 = vst [vmem:[%s4 + $0x40] sm:$0xf] %v1513
    %1642 = vst [vmem:[%s4 + $0x44] sm:$0xf] %v1514
    %1643 = vst [vmem:[%s4 + $0x48] sm:$0xf] %v1515
    %1644 = vst [vmem:[%s4 + $0x4c] sm:$0xf] %v1516
    %1645 = vst [vmem:[%s4 + $0x50] sm:$0xf] %v1517
    %1646 = vst [vmem:[%s4 + $0x54] sm:$0xf] %v1518
    %1647 = vst [vmem:[%s4 + $0x58] sm:$0xf] %v1519
    %1648 = vst [vmem:[%s4 + $0x5c] sm:$0xf] %v1520
    %1649 = vst [vmem:[%s4 + $0x60] sm:$0xf] %v1521
    %1650 = vst [vmem:[%s4 + $0x64] sm:$0xf] %v1522
    %1651 = vst [vmem:[%s4 + $0x68] sm:$0xf] %v1523
    %1652 = vst [vmem:[%s4 + $0x6c] sm:$0xf] %v1524
    %1653 = vst [vmem:[%s4 + $0x70] sm:$0xf] %v1525
    %1654 = vst [vmem:[%s4 + $0x74] sm:$0xf] %v1526
    %1655 = vst [vmem:[%s4 + $0x78] sm:$0xf] %v1527
    %1656 = vst [vmem:[%s4 + $0x7c] sm:$0xf] %v1528
    %1657 = vst [vmem:[%s4 + $0x80] sm:$0xf] %v1529
    %1658 = vst [vmem:[%s4 + $0x84] sm:$0xf] %v1530
    %1659 = vst [vmem:[%s4 + $0x88] sm:$0xf] %v1531
    %1660 = vst [vmem:[%s4 + $0x8c] sm:$0xf] %v1532
    %1661 = vst [vmem:[%s4 + $0x90] sm:$0xf] %v1533
    %1662 = vst [vmem:[%s4 + $0x94] sm:$0xf] %v1534
    %1663 = vst [vmem:[%s4 + $0x98] sm:$0xf] %v1535
    %1664 = vst [vmem:[%s4 + $0x9c] sm:$0xf] %v1536
    %1665 = vst [vmem:[%s4 + $0xa0] sm:$0xf] %v1537
    %1666 = vst [vmem:[%s4 + $0xa4] sm:$0xf] %v1538
    %1667 = vst [vmem:[%s4 + $0xa8] sm:$0xf] %v1539
    %1668 = vst [vmem:[%s4 + $0xac] sm:$0xf] %v1540
    %1669 = vst [vmem:[%s4 + $0xb0] sm:$0xf] %v1541
    %1670 = vst [vmem:[%s4 + $0xb4] sm:$0xf] %v1542
    %1671 = vst [vmem:[%s4 + $0xb8] sm:$0xf] %v1543
    %1672 = vst [vmem:[%s4 + $0xbc] sm:$0xf] %v1544
    %1673 = vst [vmem:[%s4 + $0xc0] sm:$0xf] %v1545
    %1674 = vst [vmem:[%s4 + $0xc4] sm:$0xf] %v1546
    %1675 = vst [vmem:[%s4 + $0xc8] sm:$0xf] %v1547
    %1676 = vst [vmem:[%s4 + $0xcc] sm:$0xf] %v1548
    %1677 = vst [vmem:[%s4 + $0xd0] sm:$0xf] %v1549
    %1678 = vst [vmem:[%s4 + $0xd4] sm:$0xf] %v1550
    %1679 = vst [vmem:[%s4 + $0xd8] sm:$0xf] %v1551
    %1680 = vst [vmem:[%s4 + $0xdc] sm:$0xf] %v1552
    %1681 = vst [vmem:[%s4 + $0xe0] sm:$0xf] %v1553
    %1682 = vst [vmem:[%s4 + $0xe4] sm:$0xf] %v1554
    %1683 = vst [vmem:[%s4 + $0xe8] sm:$0xf] %v1555
    %1684 = vst [vmem:[%s4 + $0xec] sm:$0xf] %v1556
    %1685 = vst [vmem:[%s4 + $0xf0] sm:$0xf] %v1557
    %1686 = vst [vmem:[%s4 + $0xf4] sm:$0xf] %v1558
    %1687 = vst [vmem:[%s4 + $0xf8] sm:$0xf] %v1559
    %1688 = vst [vmem:[%s4 + $0xfc] sm:$0xf] %v1560
  $region25: #{_lambda_.11} parent=0 // pred_fallthru
    _
  // Predicated region
  $region26: #{_lambda_.11} parent=0 // pred_check
    _
  $region27: #{_lambda_.11} parent=0 // pred_check_branch
    %1690 = sbr.rel (0) target = $region29
  $region28: #{_lambda_.11} parent=0 // pred_region
    _
  $region29: #{_lambda_.11} parent=0 // pred_fallthru
    _
  // Predicated region
  $region30: #{_lambda_.11} parent=0 // pred_check
    _
  $region31: #{_lambda_.11} parent=0 // pred_check_branch
    %1692 = sbr.rel (0) target = $region33
  $region32: #{_lambda_.11} parent=0 // pred_region
    _
  $region33: #{_lambda_.11} parent=0 // pred_fallthru
    _

// kernel: _lambda_.13
$region0: #{_lambda_.13}
  #allocation0 [shape = 'u32[]', space=smem, size = 0x4, offset = 0x4, fixed_abs, tag = 'smem constant byte address 0x4 - core index']
  #allocation1 [shape = 'u32[144,128]{1,0:T(1,128)}', space=vmem, size = 0x12000, scoped, tag = 'internal scratch']
  #allocation2 [shape = 'f32[128,128]{1,0:T(8,128)}', space=vmem, size = 0x10000, scoped, tag = 'scratch operand']
  %s0 = inlined_call_operand.vmem [shape: bf16[128,144], index: 0, kind: input, shape index: {}]
  %s1 = inlined_call_operand.vmem [shape: bf16[144,128], index: 1, kind: input, shape index: {}]
  %s2 = inlined_call_operand.vmem [shape: f32[1,128], index: 2, kind: input, shape index: {}]
  %s3 = inlined_call_operand.vmem [shape: f32[1,128], index: 3, kind: input, shape index: {}]
  %s4 = inlined_call_operand.vmem [shape: bf16[128,128], index: 4, kind: output, shape index: {}]
  %s5 = sld [smem:[#allocation0]]
  $region34: #{_lambda_.13} parent=0
    _
  %s7 = ssub.s32 1, %s5
  %s8 = scalar_select 0, %s7, %s5
  // Predicated region
  $region2: #{_lambda_.13} parent=0 // pred_check
    _
  $region3: #{_lambda_.13} parent=0 // pred_check_branch
    %10 = sbr.rel (0) target = $region5
  $region4: #{_lambda_.13} parent=0 // pred_region
    _
  $region5: #{_lambda_.13} parent=0 // pred_fallthru
    _
  // Predicated region
  $region6: #{_lambda_.13} parent=0 // pred_check
    _
  $region7: #{_lambda_.13} parent=0 // pred_check_branch
    %12 = sbr.rel (0) target = $region9
  $region8: #{_lambda_.13} parent=0 // pred_region
    _
  $region9: #{_lambda_.13} parent=0 // pred_fallthru
    _
  // Predicated region
  $region10: #{_lambda_.13} parent=0 // pred_check
    _
  $region11: #{_lambda_.13} parent=0 // pred_check_branch
    %14 = sbr.rel (0) target = $region13
  $region12: #{_lambda_.13} parent=0 // pred_region
    _
  $region13: #{_lambda_.13} parent=0 // pred_fallthru
    _
  // Predicated region
  $region14: #{_lambda_.13} parent=0 // pred_check
    _
  $region15: #{_lambda_.13} parent=0 // pred_check_branch
    %16 = sbr.rel (0) target = $region17
  $region16: #{_lambda_.13} parent=0 // pred_region
    _
  $region17: #{_lambda_.13} parent=0 // pred_fallthru
    _
  %p18 = scmp.eq.s32.totalorder 0, 0
  // Predicated region
  $region18: #{_lambda_.13} parent=0 // pred_check
    %p19 = pneg %p18
  $region19: #{_lambda_.13} parent=0 // pred_check_branch
    %21 = sbr.rel (%p19) target = $region21
  $region20: #{_lambda_.13} parent=0 // pred_region
    %22 = vst [vmem:[#allocation2] sm:$0xff] 0.0
    %23 = vst [vmem:[#allocation2 + $0x8] sm:$0xff] 0.0
    %24 = vst [vmem:[#allocation2 + $0x10] sm:$0xff] 0.0
    %25 = vst [vmem:[#allocation2 + $0x18] sm:$0xff] 0.0
    %26 = vst [vmem:[#allocation2 + $0x20] sm:$0xff] 0.0
    %27 = vst [vmem:[#allocation2 + $0x28] sm:$0xff] 0.0
    %28 = vst [vmem:[#allocation2 + $0x30] sm:$0xff] 0.0
    %29 = vst [vmem:[#allocation2 + $0x38] sm:$0xff] 0.0
    %30 = vst [vmem:[#allocation2 + $0x40] sm:$0xff] 0.0
    %31 = vst [vmem:[#allocation2 + $0x48] sm:$0xff] 0.0
    %32 = vst [vmem:[#allocation2 + $0x50] sm:$0xff] 0.0
    %33 = vst [vmem:[#allocation2 + $0x58] sm:$0xff] 0.0
    %34 = vst [vmem:[#allocation2 + $0x60] sm:$0xff] 0.0
    %35 = vst [vmem:[#allocation2 + $0x68] sm:$0xff] 0.0
    %36 = vst [vmem:[#allocation2 + $0x70] sm:$0xff] 0.0
    %37 = vst [vmem:[#allocation2 + $0x78] sm:$0xff] 0.0
  $region21: #{_lambda_.13} parent=0 // pred_fallthru
    _
  %v38 = vld [vmem:[#allocation2] sm:$0xff]
  %v39 = vld [vmem:[#allocation2 + $0x8] sm:$0xff]
  %v40 = vld [vmem:[#allocation2 + $0x10] sm:$0xff]
  %v41 = vld [vmem:[#allocation2 + $0x18] sm:$0xff]
  %v42 = vld [vmem:[#allocation2 + $0x20] sm:$0xff]
  %v43 = vld [vmem:[#allocation2 + $0x28] sm:$0xff]
  %v44 = vld [vmem:[#allocation2 + $0x30] sm:$0xff]
  %v45 = vld [vmem:[#allocation2 + $0x38] sm:$0xff]
  %v46 = vld [vmem:[#allocation2 + $0x40] sm:$0xff]
  %v47 = vld [vmem:[#allocation2 + $0x48] sm:$0xff]
  %v48 = vld [vmem:[#allocation2 + $0x50] sm:$0xff]
  %v49 = vld [vmem:[#allocation2 + $0x58] sm:$0xff]
  %v50 = vld [vmem:[#allocation2 + $0x60] sm:$0xff]
  %v51 = vld [vmem:[#allocation2 + $0x68] sm:$0xff]
  %v52 = vld [vmem:[#allocation2 + $0x70] sm:$0xff]
  %v53 = vld [vmem:[#allocation2 + $0x78] sm:$0xff]
  %v54 = vld [vmem:[%s0] sm:$0xff]
  %v55 = vld [vmem:[%s0 + $0x8] sm:$0xff]
  %v56 = vld [vmem:[%s0 + $0x10] sm:$0xff]
  %v57 = vld [vmem:[%s0 + $0x18] sm:$0xff]
  %v58 = vld [vmem:[%s0 + $0x20] sm:$0xff]
  %v59 = vld [vmem:[%s0 + $0x28] sm:$0xff]
  %v60 = vld [vmem:[%s0 + $0x30] sm:$0xff]
  %v61 = vld [vmem:[%s0 + $0x38] sm:$0xff]
  %v62 = vld [vmem:[%s0 + $0x40] sm:$0xff]
  %v63 = vld [vmem:[%s0 + $0x48] sm:$0xff]
  %v64 = vld [vmem:[%s0 + $0x50] sm:$0xff]
  %v65 = vld [vmem:[%s0 + $0x58] sm:$0xff]
  %v66 = vld [vmem:[%s0 + $0x60] sm:$0xff]
  %v67 = vld [vmem:[%s0 + $0x68] sm:$0xff]
  %v68 = vld [vmem:[%s0 + $0x70] sm:$0xff]
  %v69 = vld [vmem:[%s0 + $0x78] sm:$0xff]
  %v70 = vld [vmem:[%s1] sm:$0xf]
  %v71 = vld [vmem:[%s1 + $0x4] sm:$0xf]
  %v72 = vld [vmem:[%s1 + $0x8] sm:$0xf]
  %v73 = vld [vmem:[%s1 + $0xc] sm:$0xf]
  %v74 = vld [vmem:[%s1 + $0x10] sm:$0xf]
  %v75 = vld [vmem:[%s1 + $0x14] sm:$0xf]
  %v76 = vld [vmem:[%s1 + $0x18] sm:$0xf]
  %v77 = vld [vmem:[%s1 + $0x1c] sm:$0xf]
  %v78 = vld [vmem:[%s1 + $0x20] sm:$0xf]
  %v79 = vld [vmem:[%s1 + $0x24] sm:$0xf]
  %v80 = vld [vmem:[%s1 + $0x28] sm:$0xf]
  %v81 = vld [vmem:[%s1 + $0x2c] sm:$0xf]
  %v82 = vld [vmem:[%s1 + $0x30] sm:$0xf]
  %v83 = vld [vmem:[%s1 + $0x34] sm:$0xf]
  %v84 = vld [vmem:[%s1 + $0x38] sm:$0xf]
  %v85 = vld [vmem:[%s1 + $0x3c] sm:$0xf]
  %v86 = vld [vmem:[%s1 + $0x40] sm:$0xf]
  %v87 = vld [vmem:[%s1 + $0x44] sm:$0xf]
  %v104 = vunpack.c.l.b16 %v54
  %v105 = vunpack.c.h.b16 %v54
  %v106 = vunpack.c.l.b16 %v55
  %v107 = vunpack.c.h.b16 %v55
  %v108 = vunpack.c.l.b16 %v56
  %v109 = vunpack.c.h.b16 %v56
  %v110 = vunpack.c.l.b16 %v57
  %v111 = vunpack.c.h.b16 %v57
  %v112 = vunpack.c.l.b16 %v58
  %v113 = vunpack.c.h.b16 %v58
  %v114 = vunpack.c.l.b16 %v59
  %v115 = vunpack.c.h.b16 %v59
  %v116 = vunpack.c.l.b16 %v60
  %v117 = vunpack.c.h.b16 %v60
  %v118 = vunpack.c.l.b16 %v61
  %v119 = vunpack.c.h.b16 %v61
  %v120 = vunpack.c.l.b16 %v62
  %v121 = vunpack.c.h.b16 %v62
  %v122 = vunpack.c.l.b16 %v63
  %v123 = vunpack.c.h.b16 %v63
  %v124 = vunpack.c.l.b16 %v64
  %v125 = vunpack.c.h.b16 %v64
  %v126 = vunpack.c.l.b16 %v65
  %v127 = vunpack.c.h.b16 %v65
  %v128 = vunpack.c.l.b16 %v66
  %v129 = vunpack.c.h.b16 %v66
  %v130 = vunpack.c.l.b16 %v67
  %v131 = vunpack.c.h.b16 %v67
  %v132 = vunpack.c.l.b16 %v68
  %v133 = vunpack.c.h.b16 %v68
  %v134 = vunpack.c.l.b16 %v69
  %v135 = vunpack.c.h.b16 %v69
  %v136 = vpack.c.b16 %v106, %v104
  %v137 = vpack.c.b16 %v107, %v105
  %v138 = vpack.c.b16 %v110, %v108
  %v139 = vpack.c.b16 %v111, %v109
  %v140 = vpack.c.b16 %v114, %v112
  %v141 = vpack.c.b16 %v115, %v113
  %v142 = vpack.c.b16 %v118, %v116
  %v143 = vpack.c.b16 %v119, %v117
  %v144 = vpack.c.b16 %v122, %v120
  %v145 = vpack.c.b16 %v123, %v121
  %v146 = vpack.c.b16 %v126, %v124
  %v147 = vpack.c.b16 %v127, %v125
  %v148 = vpack.c.b16 %v130, %v128
  %v149 = vpack.c.b16 %v131, %v129
  %v150 = vpack.c.b16 %v134, %v132
  %v151 = vpack.c.b16 %v135, %v133
  %v178 = vunpack.c.l.b16 %v70
  %v179 = vunpack.c.l.b16 %v71
  %v180 = vunpack.c.l.b16 %v72
  %v181 = vunpack.c.l.b16 %v73
  %v182 = vunpack.c.l.b16 %v74
  %v183 = vunpack.c.l.b16 %v75
  %v184 = vunpack.c.l.b16 %v76
  %v185 = vunpack.c.l.b16 %v77
  %v186 = vunpack.c.l.b16 %v78
  %v187 = vunpack.c.l.b16 %v79
  %v188 = vunpack.c.l.b16 %v80
  %v189 = vunpack.c.l.b16 %v81
  %v190 = vunpack.c.l.b16 %v82
  %v191 = vunpack.c.l.b16 %v83
  %v192 = vunpack.c.l.b16 %v84
  %v193 = vunpack.c.l.b16 %v85
  %v194 = vunpack.c.l.b16 %v86
  %v195 = vunpack.c.l.b16 %v87
  %v196 = vpack.c.b16 %v179, %v178
  %v197 = vpack.c.b16 %v181, %v180
  %v198 = vpack.c.b16 %v183, %v182
  %v199 = vpack.c.b16 %v185, %v184
  %v200 = vpack.c.b16 %v187, %v186
  %v201 = vpack.c.b16 %v189, %v188
  %v202 = vpack.c.b16 %v191, %v190
  %v203 = vpack.c.b16 %v193, %v192
  %v204 = vpack.c.b16 %v195, %v194
  %vm214 = vcmask 130048
  %v216 = vsel %vm214, %v137, 0
  %v219 = vsel %vm214, %v139, 0
  %v222 = vsel %vm214, %v141, 0
  %v225 = vsel %vm214, %v143, 0
  %v228 = vsel %vm214, %v145, 0
  %v231 = vsel %vm214, %v147, 0
  %v234 = vsel %vm214, %v149, 0
  %v237 = vsel %vm214, %v151, 0
  %239 = vmatprep.subr.bf16.mxu0 0
  %240 = vmatpush1.bf16.msra.mxu0 %v196
  %241 = vmatprep.subr.bf16.mxu0 0
  %242 = vmatpush1.bf16.msra.mxu0 %v197
  %243 = vmatprep.subr.bf16.mxu0 0
  %244 = vmatpush1.bf16.msra.mxu0 %v198
  %245 = vmatprep.subr.bf16.mxu0 0
  %246 = vmatpush1.bf16.msra.mxu0 %v199
  %247 = vmatprep.subr.bf16.mxu0 0
  %248 = vmatpush1.bf16.msra.mxu0 %v200
  %249 = vmatprep.subr.bf16.mxu0 0
  %250 = vmatpush1.bf16.msra.mxu0 %v201
  %251 = vmatprep.subr.bf16.mxu0 0
  %252 = vmatpush1.bf16.msra.mxu0 %v202
  %253 = vmatprep.subr.bf16.mxu0 0
  %254 = vmatpush1.bf16.msra.mxu0 %v203
  %255 = vmatprep.subr.bf16.mxu0 0
  %256 = vmatpush1.bf16.msra.mxu0 %v204
  %257 = vmatprep.subr.bf16.mxu0 0
  %258 = vmatpush1.bf16.msra.mxu0 0
  %259 = vmatprep.subr.bf16.mxu0 0
  %260 = vmatpush1.bf16.msra.mxu0 0
  %261 = vmatprep.subr.bf16.mxu0 0
  %262 = vmatpush1.bf16.msra.mxu0 0
  %263 = vmatprep.subr.bf16.mxu0 0
  %264 = vmatpush1.bf16.msra.mxu0 0
  %265 = vmatprep.subr.bf16.mxu0 0
  %266 = vmatpush1.bf16.msra.mxu0 0
  %267 = vmatprep.subr.bf16.mxu0 0
  %268 = vmatpush1.bf16.msra.mxu0 0
  %269 = vmatprep.subr.bf16.mxu0 0
  %270 = vmatpush1.bf16.msra.mxu0 0
  %271 = vmatprep.mubr.bf16.mxu0 %v216
  %272 = vmatmul.mubr.bf16.gmra.mrb[0].mxu0 %v136
  %v273 = vpop.f32.mrb[0].mxu0
  %v274 = vadd.f32 0.0, %v273
  %v275 = vpop.f32.mrb[0].mxu0
  %v276 = vpop.f32.mrb[0].mxu0
  %v277 = vadd.f32 0.0, %v276
  %v278 = vpop.f32.mrb[0].mxu0
  %279 = vmatprep.mubr.bf16.mxu0 %v219
  %280 = vmatmul.mubr.bf16.gmra.mrb[0].mxu0 %v138
  %v281 = vpop.f32.mrb[0].mxu0
  %v282 = vadd.f32 0.0, %v281
  %v283 = vpop.f32.mrb[0].mxu0
  %v284 = vpop.f32.mrb[0].mxu0
  %v285 = vadd.f32 0.0, %v284
  %v286 = vpop.f32.mrb[0].mxu0
  %287 = vmatprep.mubr.bf16.mxu0 %v222
  %288 = vmatmul.mubr.bf16.gmra.mrb[0].mxu0 %v140
  %v289 = vpop.f32.mrb[0].mxu0
  %v290 = vadd.f32 0.0, %v289
  %v291 = vpop.f32.mrb[0].mxu0
  %v292 = vpop.f32.mrb[0].mxu0
  %v293 = vadd.f32 0.0, %v292
  %v294 = vpop.f32.mrb[0].mxu0
  %295 = vmatprep.mubr.bf16.mxu0 %v225
  %296 = vmatmul.mubr.bf16.gmra.mrb[0].mxu0 %v142
  %v297 = vpop.f32.mrb[0].mxu0
  %v298 = vadd.f32 0.0, %v297
  %v299 = vpop.f32.mrb[0].mxu0
  %v300 = vpop.f32.mrb[0].mxu0
  %v301 = vadd.f32 0.0, %v300
  %v302 = vpop.f32.mrb[0].mxu0
  %303 = vmatprep.mubr.bf16.mxu0 %v228
  %304 = vmatmul.mubr.bf16.gmra.mrb[0].mxu0 %v144
  %v305 = vpop.f32.mrb[0].mxu0
  %v306 = vadd.f32 0.0, %v305
  %v307 = vpop.f32.mrb[0].mxu0
  %v308 = vpop.f32.mrb[0].mxu0
  %v309 = vadd.f32 0.0, %v308
  %v310 = vpop.f32.mrb[0].mxu0
  %311 = vmatprep.mubr.bf16.mxu0 %v231
  %312 = vmatmul.mubr.bf16.gmra.mrb[0].mxu0 %v146
  %v313 = vpop.f32.mrb[0].mxu0
  %v314 = vadd.f32 0.0, %v313
  %v315 = vpop.f32.mrb[0].mxu0
  %v316 = vpop.f32.mrb[0].mxu0
  %v317 = vadd.f32 0.0, %v316
  %v318 = vpop.f32.mrb[0].mxu0
  %319 = vmatprep.mubr.bf16.mxu0 %v234
  %320 = vmatmul.mubr.bf16.gmra.mrb[0].mxu0 %v148
  %v321 = vpop.f32.mrb[0].mxu0
  %v322 = vadd.f32 0.0, %v321
  %v323 = vpop.f32.mrb[0].mxu0
  %v324 = vpop.f32.mrb[0].mxu0
  %v325 = vadd.f32 0.0, %v324
  %v326 = vpop.f32.mrb[0].mxu0
  %327 = vmatprep.mubr.bf16.mxu0 %v237
  %328 = vmatmul.mubr.bf16.gmra.mrb[0].mxu0 %v150
  %v329 = vpop.f32.mrb[0].mxu0
  %v330 = vadd.f32 0.0, %v329
  %v331 = vpop.f32.mrb[0].mxu0
  %v332 = vpop.f32.mrb[0].mxu0
  %v333 = vadd.f32 0.0, %v332
  %v334 = vpop.f32.mrb[0].mxu0
  %335 = vdwg.mxu0
  %v336 = vadd.f32 %v38, %v274
  %v337 = vadd.f32 %v39, %v277
  %v338 = vadd.f32 %v40, %v282
  %v339 = vadd.f32 %v41, %v285
  %v340 = vadd.f32 %v42, %v290
  %v341 = vadd.f32 %v43, %v293
  %v342 = vadd.f32 %v44, %v298
  %v343 = vadd.f32 %v45, %v301
  %v344 = vadd.f32 %v46, %v306
  %v345 = vadd.f32 %v47, %v309
  %v346 = vadd.f32 %v48, %v314
  %v347 = vadd.f32 %v49, %v317
  %v348 = vadd.f32 %v50, %v322
  %v349 = vadd.f32 %v51, %v325
  %v350 = vadd.f32 %v52, %v330
  %v351 = vadd.f32 %v53, %v333
  %352 = vst [vmem:[#allocation2] sm:$0xff] %v336
  %353 = vst [vmem:[#allocation2 + $0x8] sm:$0xff] %v337
  %354 = vst [vmem:[#allocation2 + $0x10] sm:$0xff] %v338
  %355 = vst [vmem:[#allocation2 + $0x18] sm:$0xff] %v339
  %356 = vst [vmem:[#allocation2 + $0x20] sm:$0xff] %v340
  %357 = vst [vmem:[#allocation2 + $0x28] sm:$0xff] %v341
  %358 = vst [vmem:[#allocation2 + $0x30] sm:$0xff] %v342
  %359 = vst [vmem:[#allocation2 + $0x38] sm:$0xff] %v343
  %360 = vst [vmem:[#allocation2 + $0x40] sm:$0xff] %v344
  %361 = vst [vmem:[#allocation2 + $0x48] sm:$0xff] %v345
  %362 = vst [vmem:[#allocation2 + $0x50] sm:$0xff] %v346
  %363 = vst [vmem:[#allocation2 + $0x58] sm:$0xff] %v347
  %364 = vst [vmem:[#allocation2 + $0x60] sm:$0xff] %v348
  %365 = vst [vmem:[#allocation2 + $0x68] sm:$0xff] %v349
  %366 = vst [vmem:[#allocation2 + $0x70] sm:$0xff] %v350
  %367 = vst [vmem:[#allocation2 + $0x78] sm:$0xff] %v351
  // Predicated region
  $region22: #{_lambda_.13} parent=0 // pred_check
    %p368 = pneg %p18
  $region23: #{_lambda_.13} parent=0 // pred_check_branch
    %370 = sbr.rel (%p368) target = $region25
  $region24: #{_lambda_.13} parent=0 // pred_region
    %v371 = vld [vmem:[#allocation2] sm:$0xff]
    %v372 = vld [vmem:[#allocation2 + $0x8] sm:$0xff]
    %v373 = vld [vmem:[#allocation2 + $0x10] sm:$0xff]
    %v374 = vld [vmem:[#allocation2 + $0x18] sm:$0xff]
    %v375 = vld [vmem:[#allocation2 + $0x20] sm:$0xff]
    %v376 = vld [vmem:[#allocation2 + $0x28] sm:$0xff]
    %v377 = vld [vmem:[#allocation2 + $0x30] sm:$0xff]
    %v378 = vld [vmem:[#allocation2 + $0x38] sm:$0xff]
    %v379 = vld [vmem:[#allocation2 + $0x40] sm:$0xff]
    %v380 = vld [vmem:[#allocation2 + $0x48] sm:$0xff]
    %v381 = vld [vmem:[#allocation2 + $0x50] sm:$0xff]
    %v382 = vld [vmem:[#allocation2 + $0x58] sm:$0xff]
    %v383 = vld [vmem:[#allocation2 + $0x60] sm:$0xff]
    %v384 = vld [vmem:[#allocation2 + $0x68] sm:$0xff]
    %v385 = vld [vmem:[#allocation2 + $0x70] sm:$0xff]
    %v386 = vld [vmem:[#allocation2 + $0x78] sm:$0xff]
    %v387 = vld [vmem:[%s2] sm:$0x1]
    %v389 = vlaneseq
    %v390 = vshrl.u32 %v389, 7
    %v391 = vsub.s32 0, %v390
    %v392 = vrot.slane %v387, %v391
    %v394 = vmul.f32 %v371, %v392
    %v395 = vmul.f32 %v372, %v392
    %v396 = vmul.f32 %v373, %v392
    %v397 = vmul.f32 %v374, %v392
    %v398 = vmul.f32 %v375, %v392
    %v399 = vmul.f32 %v376, %v392
    %v400 = vmul.f32 %v377, %v392
    %v401 = vmul.f32 %v378, %v392
    %v402 = vmul.f32 %v379, %v392
    %v403 = vmul.f32 %v380, %v392
    %v404 = vmul.f32 %v381, %v392
    %v405 = vmul.f32 %v382, %v392
    %v406 = vmul.f32 %v383, %v392
    %v407 = vmul.f32 %v384, %v392
    %v408 = vmul.f32 %v385, %v392
    %v409 = vmul.f32 %v386, %v392
    %v410 = vld [vmem:[%s3] sm:$0x1]
    %v412 = vlaneseq
    %v413 = vshrl.u32 %v412, 7
    %v414 = vsub.s32 0, %v413
    %v415 = vrot.slane %v410, %v414
    %v417 = vadd.f32 %v394, %v415
    %v418 = vadd.f32 %v395, %v415
    %v419 = vadd.f32 %v396, %v415
    %v420 = vadd.f32 %v397, %v415
    %v421 = vadd.f32 %v398, %v415
    %v422 = vadd.f32 %v399, %v415
    %v423 = vadd.f32 %v400, %v415
    %v424 = vadd.f32 %v401, %v415
    %v425 = vadd.f32 %v402, %v415
    %v426 = vadd.f32 %v403, %v415
    %v427 = vadd.f32 %v404, %v415
    %v428 = vadd.f32 %v405, %v415
    %v429 = vadd.f32 %v406, %v415
    %v430 = vadd.f32 %v407, %v415
    %v431 = vadd.f32 %v408, %v415
    %v432 = vadd.f32 %v409, %v415
    %v433 = vmax.f32 %v417, 0.0
    %v434 = vmax.f32 %v418, 0.0
    %v435 = vmax.f32 %v419, 0.0
    %v436 = vmax.f32 %v420, 0.0
    %v437 = vmax.f32 %v421, 0.0
    %v438 = vmax.f32 %v422, 0.0
    %v439 = vmax.f32 %v423, 0.0
    %v440 = vmax.f32 %v424, 0.0
    %v441 = vmax.f32 %v425, 0.0
    %v442 = vmax.f32 %v426, 0.0
    %v443 = vmax.f32 %v427, 0.0
    %v444 = vmax.f32 %v428, 0.0
    %v445 = vmax.f32 %v429, 0.0
    %v446 = vmax.f32 %v430, 0.0
    %v447 = vmax.f32 %v431, 0.0
    %v448 = vmax.f32 %v432, 0.0
    %v449 = vpack.c.bf16 %v434, %v433
    %v450 = vpack.c.bf16 %v436, %v435
    %v451 = vpack.c.bf16 %v438, %v437
    %v452 = vpack.c.bf16 %v440, %v439
    %v453 = vpack.c.bf16 %v442, %v441
    %v454 = vpack.c.bf16 %v444, %v443
    %v455 = vpack.c.bf16 %v446, %v445
    %v456 = vpack.c.bf16 %v448, %v447
    %v465 = vunpack.c.l.b16 %v449
    %v466 = vunpack.c.h.b16 %v449
    %v467 = vunpack.c.l.b16 %v450
    %v468 = vunpack.c.h.b16 %v450
    %v469 = vunpack.c.l.b16 %v451
    %v470 = vunpack.c.h.b16 %v451
    %v471 = vunpack.c.l.b16 %v452
    %v472 = vunpack.c.h.b16 %v452
    %v473 = vunpack.c.l.b16 %v453
    %v474 = vunpack.c.h.b16 %v453
    %v475 = vunpack.c.l.b16 %v454
    %v476 = vunpack.c.h.b16 %v454
    %v477 = vunpack.c.l.b16 %v455
    %v478 = vunpack.c.h.b16 %v455
    %v479 = vunpack.c.l.b16 %v456
    %v480 = vunpack.c.h.b16 %v456
    %v481 = vpack.c.b16 %v465, %v465
    %v482 = vpack.c.b16 %v466, %v466
    %v483 = vpack.c.b16 %v467, %v467
    %v484 = vpack.c.b16 %v468, %v468
    %v485 = vpack.c.b16 %v469, %v469
    %v486 = vpack.c.b16 %v470, %v470
    %v487 = vpack.c.b16 %v471, %v471
    %v488 = vpack.c.b16 %v472, %v472
    %v489 = vpack.c.b16 %v473, %v473
    %v490 = vpack.c.b16 %v474, %v474
    %v491 = vpack.c.b16 %v475, %v475
    %v492 = vpack.c.b16 %v476, %v476
    %v493 = vpack.c.b16 %v477, %v477
    %v494 = vpack.c.b16 %v478, %v478
    %v495 = vpack.c.b16 %v479, %v479
    %v496 = vpack.c.b16 %v480, %v480
    %513 = vst [vmem:[%s4] sm:$0xf] %v481
    %514 = vst [vmem:[%s4 + $0x4] sm:$0xf] %v482
    %515 = vst [vmem:[%s4 + $0x8] sm:$0xf] %v483
    %516 = vst [vmem:[%s4 + $0xc] sm:$0xf] %v484
    %517 = vst [vmem:[%s4 + $0x10] sm:$0xf] %v485
    %518 = vst [vmem:[%s4 + $0x14] sm:$0xf] %v486
    %519 = vst [vmem:[%s4 + $0x18] sm:$0xf] %v487
    %520 = vst [vmem:[%s4 + $0x1c] sm:$0xf] %v488
    %521 = vst [vmem:[%s4 + $0x20] sm:$0xf] %v489
    %522 = vst [vmem:[%s4 + $0x24] sm:$0xf] %v490
    %523 = vst [vmem:[%s4 + $0x28] sm:$0xf] %v491
    %524 = vst [vmem:[%s4 + $0x2c] sm:$0xf] %v492
    %525 = vst [vmem:[%s4 + $0x30] sm:$0xf] %v493
    %526 = vst [vmem:[%s4 + $0x34] sm:$0xf] %v494
    %527 = vst [vmem:[%s4 + $0x38] sm:$0xf] %v495
    %528 = vst [vmem:[%s4 + $0x3c] sm:$0xf] %v496
  $region25: #{_lambda_.13} parent=0 // pred_fallthru
    _
  // Predicated region
  $region26: #{_lambda_.13} parent=0 // pred_check
    _
  $region27: #{_lambda_.13} parent=0 // pred_check_branch
    %530 = sbr.rel (0) target = $region29
  $region28: #{_lambda_.13} parent=0 // pred_region
    _
  $region29: #{_lambda_.13} parent=0 // pred_fallthru
    _
  // Predicated region
  $region30: #{_lambda_.13} parent=0 // pred_check
    _
  $region31: #{_lambda_.13} parent=0 // pred_check_branch
    %532 = sbr.rel (0) target = $region33
  $region32: #{_lambda_.13} parent=0 // pred_region
    _
  $region33: #{_lambda_.13} parent=0 // pred_fallthru
    _

// kernel: _lambda_.14
$region0: #{_lambda_.14}
  #allocation0 [shape = 'u32[]', space=smem, size = 0x4, offset = 0x4, fixed_abs, tag = 'smem constant byte address 0x4 - core index']
  #allocation1 [shape = 'u32[144,128]{1,0:T(1,128)}', space=vmem, size = 0x12000, scoped, tag = 'internal scratch']
  #allocation2 [shape = 'f32[128,128]{1,0:T(8,128)}', space=vmem, size = 0x10000, scoped, tag = 'scratch operand']
  %s0 = inlined_call_operand.vmem [shape: bf16[128,144], index: 0, kind: input, shape index: {}]
  %s1 = inlined_call_operand.vmem [shape: bf16[144,128], index: 1, kind: input, shape index: {}]
  %s2 = inlined_call_operand.vmem [shape: f32[1,128], index: 2, kind: input, shape index: {}]
  %s3 = inlined_call_operand.vmem [shape: f32[1,128], index: 3, kind: input, shape index: {}]
  %s4 = inlined_call_operand.vmem [shape: bf16[128,128], index: 4, kind: input, shape index: {}]
  %s5 = inlined_call_operand.vmem [shape: bf16[128,128], index: 5, kind: output, shape index: {}]
  %s6 = sld [smem:[#allocation0]]
  $region38: #{_lambda_.14} parent=0
    _
  %s8 = ssub.s32 1, %s6
  %s9 = scalar_select 0, %s8, %s6
  // Predicated region
  $region2: #{_lambda_.14} parent=0 // pred_check
    _
  $region3: #{_lambda_.14} parent=0 // pred_check_branch
    %11 = sbr.rel (0) target = $region5
  $region4: #{_lambda_.14} parent=0 // pred_region
    _
  $region5: #{_lambda_.14} parent=0 // pred_fallthru
    _
  // Predicated region
  $region6: #{_lambda_.14} parent=0 // pred_check
    _
  $region7: #{_lambda_.14} parent=0 // pred_check_branch
    %13 = sbr.rel (0) target = $region9
  $region8: #{_lambda_.14} parent=0 // pred_region
    _
  $region9: #{_lambda_.14} parent=0 // pred_fallthru
    _
  // Predicated region
  $region10: #{_lambda_.14} parent=0 // pred_check
    _
  $region11: #{_lambda_.14} parent=0 // pred_check_branch
    %15 = sbr.rel (0) target = $region13
  $region12: #{_lambda_.14} parent=0 // pred_region
    _
  $region13: #{_lambda_.14} parent=0 // pred_fallthru
    _
  // Predicated region
  $region14: #{_lambda_.14} parent=0 // pred_check
    _
  $region15: #{_lambda_.14} parent=0 // pred_check_branch
    %17 = sbr.rel (0) target = $region17
  $region16: #{_lambda_.14} parent=0 // pred_region
    _
  $region17: #{_lambda_.14} parent=0 // pred_fallthru
    _
  // Predicated region
  $region18: #{_lambda_.14} parent=0 // pred_check
    _
  $region19: #{_lambda_.14} parent=0 // pred_check_branch
    %19 = sbr.rel (0) target = $region21
  $region20: #{_lambda_.14} parent=0 // pred_region
    _
  $region21: #{_lambda_.14} parent=0 // pred_fallthru
    _
  %p21 = scmp.eq.s32.totalorder 0, 0
  // Predicated region
  $region22: #{_lambda_.14} parent=0 // pred_check
    %p22 = pneg %p21
  $region23: #{_lambda_.14} parent=0 // pred_check_branch
    %24 = sbr.rel (%p22) target = $region25
  $region24: #{_lambda_.14} parent=0 // pred_region
    %25 = vst [vmem:[#allocation2] sm:$0xff] 0.0
    %26 = vst [vmem:[#allocation2 + $0x8] sm:$0xff] 0.0
    %27 = vst [vmem:[#allocation2 + $0x10] sm:$0xff] 0.0
    %28 = vst [vmem:[#allocation2 + $0x18] sm:$0xff] 0.0
    %29 = vst [vmem:[#allocation2 + $0x20] sm:$0xff] 0.0
    %30 = vst [vmem:[#allocation2 + $0x28] sm:$0xff] 0.0
    %31 = vst [vmem:[#allocation2 + $0x30] sm:$0xff] 0.0
    %32 = vst [vmem:[#allocation2 + $0x38] sm:$0xff] 0.0
    %33 = vst [vmem:[#allocation2 + $0x40] sm:$0xff] 0.0
    %34 = vst [vmem:[#allocation2 + $0x48] sm:$0xff] 0.0
    %35 = vst [vmem:[#allocation2 + $0x50] sm:$0xff] 0.0
    %36 = vst [vmem:[#allocation2 + $0x58] sm:$0xff] 0.0
    %37 = vst [vmem:[#allocation2 + $0x60] sm:$0xff] 0.0
    %38 = vst [vmem:[#allocation2 + $0x68] sm:$0xff] 0.0
    %39 = vst [vmem:[#allocation2 + $0x70] sm:$0xff] 0.0
    %40 = vst [vmem:[#allocation2 + $0x78] sm:$0xff] 0.0
  $region25: #{_lambda_.14} parent=0 // pred_fallthru
    _
  %v41 = vld [vmem:[#allocation2] sm:$0xff]
  %v42 = vld [vmem:[#allocation2 + $0x8] sm:$0xff]
  %v43 = vld [vmem:[#allocation2 + $0x10] sm:$0xff]
  %v44 = vld [vmem:[#allocation2 + $0x18] sm:$0xff]
  %v45 = vld [vmem:[#allocation2 + $0x20] sm:$0xff]
  %v46 = vld [vmem:[#allocation2 + $0x28] sm:$0xff]
  %v47 = vld [vmem:[#allocation2 + $0x30] sm:$0xff]
  %v48 = vld [vmem:[#allocation2 + $0x38] sm:$0xff]
  %v49 = vld [vmem:[#allocation2 + $0x40] sm:$0xff]
  %v50 = vld [vmem:[#allocation2 + $0x48] sm:$0xff]
  %v51 = vld [vmem:[#allocation2 + $0x50] sm:$0xff]
  %v52 = vld [vmem:[#allocation2 + $0x58] sm:$0xff]
  %v53 = vld [vmem:[#allocation2 + $0x60] sm:$0xff]
  %v54 = vld [vmem:[#allocation2 + $0x68] sm:$0xff]
  %v55 = vld [vmem:[#allocation2 + $0x70] sm:$0xff]
  %v56 = vld [vmem:[#allocation2 + $0x78] sm:$0xff]
  %v57 = vld [vmem:[%s0] sm:$0xff]
  %v58 = vld [vmem:[%s0 + $0x8] sm:$0xff]
  %v59 = vld [vmem:[%s0 + $0x10] sm:$0xff]
  %v60 = vld [vmem:[%s0 + $0x18] sm:$0xff]
  %v61 = vld [vmem:[%s0 + $0x20] sm:$0xff]
  %v62 = vld [vmem:[%s0 + $0x28] sm:$0xff]
  %v63 = vld [vmem:[%s0 + $0x30] sm:$0xff]
  %v64 = vld [vmem:[%s0 + $0x38] sm:$0xff]
  %v65 = vld [vmem:[%s0 + $0x40] sm:$0xff]
  %v66 = vld [vmem:[%s0 + $0x48] sm:$0xff]
  %v67 = vld [vmem:[%s0 + $0x50] sm:$0xff]
  %v68 = vld [vmem:[%s0 + $0x58] sm:$0xff]
  %v69 = vld [vmem:[%s0 + $0x60] sm:$0xff]
  %v70 = vld [vmem:[%s0 + $0x68] sm:$0xff]
  %v71 = vld [vmem:[%s0 + $0x70] sm:$0xff]
  %v72 = vld [vmem:[%s0 + $0x78] sm:$0xff]
  %v73 = vld [vmem:[%s1] sm:$0xf]
  %v74 = vld [vmem:[%s1 + $0x4] sm:$0xf]
  %v75 = vld [vmem:[%s1 + $0x8] sm:$0xf]
  %v76 = vld [vmem:[%s1 + $0xc] sm:$0xf]
  %v77 = vld [vmem:[%s1 + $0x10] sm:$0xf]
  %v78 = vld [vmem:[%s1 + $0x14] sm:$0xf]
  %v79 = vld [vmem:[%s1 + $0x18] sm:$0xf]
  %v80 = vld [vmem:[%s1 + $0x1c] sm:$0xf]
  %v81 = vld [vmem:[%s1 + $0x20] sm:$0xf]
  %v82 = vld [vmem:[%s1 + $0x24] sm:$0xf]
  %v83 = vld [vmem:[%s1 + $0x28] sm:$0xf]
  %v84 = vld [vmem:[%s1 + $0x2c] sm:$0xf]
  %v85 = vld [vmem:[%s1 + $0x30] sm:$0xf]
  %v86 = vld [vmem:[%s1 + $0x34] sm:$0xf]
  %v87 = vld [vmem:[%s1 + $0x38] sm:$0xf]
  %v88 = vld [vmem:[%s1 + $0x3c] sm:$0xf]
  %v89 = vld [vmem:[%s1 + $0x40] sm:$0xf]
  %v90 = vld [vmem:[%s1 + $0x44] sm:$0xf]
  %v107 = vunpack.c.l.b16 %v57
  %v108 = vunpack.c.h.b16 %v57
  %v109 = vunpack.c.l.b16 %v58
  %v110 = vunpack.c.h.b16 %v58
  %v111 = vunpack.c.l.b16 %v59
  %v112 = vunpack.c.h.b16 %v59
  %v113 = vunpack.c.l.b16 %v60
  %v114 = vunpack.c.h.b16 %v60
  %v115 = vunpack.c.l.b16 %v61
  %v116 = vunpack.c.h.b16 %v61
  %v117 = vunpack.c.l.b16 %v62
  %v118 = vunpack.c.h.b16 %v62
  %v119 = vunpack.c.l.b16 %v63
  %v120 = vunpack.c.h.b16 %v63
  %v121 = vunpack.c.l.b16 %v64
  %v122 = vunpack.c.h.b16 %v64
  %v123 = vunpack.c.l.b16 %v65
  %v124 = vunpack.c.h.b16 %v65
  %v125 = vunpack.c.l.b16 %v66
  %v126 = vunpack.c.h.b16 %v66
  %v127 = vunpack.c.l.b16 %v67
  %v128 = vunpack.c.h.b16 %v67
  %v129 = vunpack.c.l.b16 %v68
  %v130 = vunpack.c.h.b16 %v68
  %v131 = vunpack.c.l.b16 %v69
  %v132 = vunpack.c.h.b16 %v69
  %v133 = vunpack.c.l.b16 %v70
  %v134 = vunpack.c.h.b16 %v70
  %v135 = vunpack.c.l.b16 %v71
  %v136 = vunpack.c.h.b16 %v71
  %v137 = vunpack.c.l.b16 %v72
  %v138 = vunpack.c.h.b16 %v72
  %v139 = vpack.c.b16 %v109, %v107
  %v140 = vpack.c.b16 %v110, %v108
  %v141 = vpack.c.b16 %v113, %v111
  %v142 = vpack.c.b16 %v114, %v112
  %v143 = vpack.c.b16 %v117, %v115
  %v144 = vpack.c.b16 %v118, %v116
  %v145 = vpack.c.b16 %v121, %v119
  %v146 = vpack.c.b16 %v122, %v120
  %v147 = vpack.c.b16 %v125, %v123
  %v148 = vpack.c.b16 %v126, %v124
  %v149 = vpack.c.b16 %v129, %v127
  %v150 = vpack.c.b16 %v130, %v128
  %v151 = vpack.c.b16 %v133, %v131
  %v152 = vpack.c.b16 %v134, %v132
  %v153 = vpack.c.b16 %v137, %v135
  %v154 = vpack.c.b16 %v138, %v136
  %v181 = vunpack.c.l.b16 %v73
  %v182 = vunpack.c.l.b16 %v74
  %v183 = vunpack.c.l.b16 %v75
  %v184 = vunpack.c.l.b16 %v76
  %v185 = vunpack.c.l.b16 %v77
  %v186 = vunpack.c.l.b16 %v78
  %v187 = vunpack.c.l.b16 %v79
  %v188 = vunpack.c.l.b16 %v80
  %v189 = vunpack.c.l.b16 %v81
  %v190 = vunpack.c.l.b16 %v82
  %v191 = vunpack.c.l.b16 %v83
  %v192 = vunpack.c.l.b16 %v84
  %v193 = vunpack.c.l.b16 %v85
  %v194 = vunpack.c.l.b16 %v86
  %v195 = vunpack.c.l.b16 %v87
  %v196 = vunpack.c.l.b16 %v88
  %v197 = vunpack.c.l.b16 %v89
  %v198 = vunpack.c.l.b16 %v90
  %v199 = vpack.c.b16 %v182, %v181
  %v200 = vpack.c.b16 %v184, %v183
  %v201 = vpack.c.b16 %v186, %v185
  %v202 = vpack.c.b16 %v188, %v187
  %v203 = vpack.c.b16 %v190, %v189
  %v204 = vpack.c.b16 %v192, %v191
  %v205 = vpack.c.b16 %v194, %v193
  %v206 = vpack.c.b16 %v196, %v195
  %v207 = vpack.c.b16 %v198, %v197
  %vm217 = vcmask 130048
  %v219 = vsel %vm217, %v140, 0
  %v222 = vsel %vm217, %v142, 0
  %v225 = vsel %vm217, %v144, 0
  %v228 = vsel %vm217, %v146, 0
  %v231 = vsel %vm217, %v148, 0
  %v234 = vsel %vm217, %v150, 0
  %v237 = vsel %vm217, %v152, 0
  %v240 = vsel %vm217, %v154, 0
  %242 = vmatprep.subr.bf16.mxu0 0
  %243 = vmatpush1.bf16.msra.mxu0 %v199
  %244 = vmatprep.subr.bf16.mxu0 0
  %245 = vmatpush1.bf16.msra.mxu0 %v200
  %246 = vmatprep.subr.bf16.mxu0 0
  %247 = vmatpush1.bf16.msra.mxu0 %v201
  %248 = vmatprep.subr.bf16.mxu0 0
  %249 = vmatpush1.bf16.msra.mxu0 %v202
  %250 = vmatprep.subr.bf16.mxu0 0
  %251 = vmatpush1.bf16.msra.mxu0 %v203
  %252 = vmatprep.subr.bf16.mxu0 0
  %253 = vmatpush1.bf16.msra.mxu0 %v204
  %254 = vmatprep.subr.bf16.mxu0 0
  %255 = vmatpush1.bf16.msra.mxu0 %v205
  %256 = vmatprep.subr.bf16.mxu0 0
  %257 = vmatpush1.bf16.msra.mxu0 %v206
  %258 = vmatprep.subr.bf16.mxu0 0
  %259 = vmatpush1.bf16.msra.mxu0 %v207
  %260 = vmatprep.subr.bf16.mxu0 0
  %261 = vmatpush1.bf16.msra.mxu0 0
  %262 = vmatprep.subr.bf16.mxu0 0
  %263 = vmatpush1.bf16.msra.mxu0 0
  %264 = vmatprep.subr.bf16.mxu0 0
  %265 = vmatpush1.bf16.msra.mxu0 0
  %266 = vmatprep.subr.bf16.mxu0 0
  %267 = vmatpush1.bf16.msra.mxu0 0
  %268 = vmatprep.subr.bf16.mxu0 0
  %269 = vmatpush1.bf16.msra.mxu0 0
  %270 = vmatprep.subr.bf16.mxu0 0
  %271 = vmatpush1.bf16.msra.mxu0 0
  %272 = vmatprep.subr.bf16.mxu0 0
  %273 = vmatpush1.bf16.msra.mxu0 0
  %274 = vmatprep.mubr.bf16.mxu0 %v219
  %275 = vmatmul.mubr.bf16.gmra.mrb[0].mxu0 %v139
  %v276 = vpop.f32.mrb[0].mxu0
  %v277 = vadd.f32 0.0, %v276
  %v278 = vpop.f32.mrb[0].mxu0
  %v279 = vpop.f32.mrb[0].mxu0
  %v280 = vadd.f32 0.0, %v279
  %v281 = vpop.f32.mrb[0].mxu0
  %282 = vmatprep.mubr.bf16.mxu0 %v222
  %283 = vmatmul.mubr.bf16.gmra.mrb[0].mxu0 %v141
  %v284 = vpop.f32.mrb[0].mxu0
  %v285 = vadd.f32 0.0, %v284
  %v286 = vpop.f32.mrb[0].mxu0
  %v287 = vpop.f32.mrb[0].mxu0
  %v288 = vadd.f32 0.0, %v287
  %v289 = vpop.f32.mrb[0].mxu0
  %290 = vmatprep.mubr.bf16.mxu0 %v225
  %291 = vmatmul.mubr.bf16.gmra.mrb[0].mxu0 %v143
  %v292 = vpop.f32.mrb[0].mxu0
  %v293 = vadd.f32 0.0, %v292
  %v294 = vpop.f32.mrb[0].mxu0
  %v295 = vpop.f32.mrb[0].mxu0
  %v296 = vadd.f32 0.0, %v295
  %v297 = vpop.f32.mrb[0].mxu0
  %298 = vmatprep.mubr.bf16.mxu0 %v228
  %299 = vmatmul.mubr.bf16.gmra.mrb[0].mxu0 %v145
  %v300 = vpop.f32.mrb[0].mxu0
  %v301 = vadd.f32 0.0, %v300
  %v302 = vpop.f32.mrb[0].mxu0
  %v303 = vpop.f32.mrb[0].mxu0
  %v304 = vadd.f32 0.0, %v303
  %v305 = vpop.f32.mrb[0].mxu0
  %306 = vmatprep.mubr.bf16.mxu0 %v231
  %307 = vmatmul.mubr.bf16.gmra.mrb[0].mxu0 %v147
  %v308 = vpop.f32.mrb[0].mxu0
  %v309 = vadd.f32 0.0, %v308
  %v310 = vpop.f32.mrb[0].mxu0
  %v311 = vpop.f32.mrb[0].mxu0
  %v312 = vadd.f32 0.0, %v311
  %v313 = vpop.f32.mrb[0].mxu0
  %314 = vmatprep.mubr.bf16.mxu0 %v234
  %315 = vmatmul.mubr.bf16.gmra.mrb[0].mxu0 %v149
  %v316 = vpop.f32.mrb[0].mxu0
  %v317 = vadd.f32 0.0, %v316
  %v318 = vpop.f32.mrb[0].mxu0
  %v319 = vpop.f32.mrb[0].mxu0
  %v320 = vadd.f32 0.0, %v319
  %v321 = vpop.f32.mrb[0].mxu0
  %322 = vmatprep.mubr.bf16.mxu0 %v237
  %323 = vmatmul.mubr.bf16.gmra.mrb[0].mxu0 %v151
  %v324 = vpop.f32.mrb[0].mxu0
  %v325 = vadd.f32 0.0, %v324
  %v326 = vpop.f32.mrb[0].mxu0
  %v327 = vpop.f32.mrb[0].mxu0
  %v328 = vadd.f32 0.0, %v327
  %v329 = vpop.f32.mrb[0].mxu0
  %330 = vmatprep.mubr.bf16.mxu0 %v240
  %331 = vmatmul.mubr.bf16.gmra.mrb[0].mxu0 %v153
  %v332 = vpop.f32.mrb[0].mxu0
  %v333 = vadd.f32 0.0, %v332
  %v334 = vpop.f32.mrb[0].mxu0
  %v335 = vpop.f32.mrb[0].mxu0
  %v336 = vadd.f32 0.0, %v335
  %v337 = vpop.f32.mrb[0].mxu0
  %338 = vdwg.mxu0
  %v339 = vadd.f32 %v41, %v277
  %v340 = vadd.f32 %v42, %v280
  %v341 = vadd.f32 %v43, %v285
  %v342 = vadd.f32 %v44, %v288
  %v343 = vadd.f32 %v45, %v293
  %v344 = vadd.f32 %v46, %v296
  %v345 = vadd.f32 %v47, %v301
  %v346 = vadd.f32 %v48, %v304
  %v347 = vadd.f32 %v49, %v309
  %v348 = vadd.f32 %v50, %v312
  %v349 = vadd.f32 %v51, %v317
  %v350 = vadd.f32 %v52, %v320
  %v351 = vadd.f32 %v53, %v325
  %v352 = vadd.f32 %v54, %v328
  %v353 = vadd.f32 %v55, %v333
  %v354 = vadd.f32 %v56, %v336
  %355 = vst [vmem:[#allocation2] sm:$0xff] %v339
  %356 = vst [vmem:[#allocation2 + $0x8] sm:$0xff] %v340
  %357 = vst [vmem:[#allocation2 + $0x10] sm:$0xff] %v341
  %358 = vst [vmem:[#allocation2 + $0x18] sm:$0xff] %v342
  %359 = vst [vmem:[#allocation2 + $0x20] sm:$0xff] %v343
  %360 = vst [vmem:[#allocation2 + $0x28] sm:$0xff] %v344
  %361 = vst [vmem:[#allocation2 + $0x30] sm:$0xff] %v345
  %362 = vst [vmem:[#allocation2 + $0x38] sm:$0xff] %v346
  %363 = vst [vmem:[#allocation2 + $0x40] sm:$0xff] %v347
  %364 = vst [vmem:[#allocation2 + $0x48] sm:$0xff] %v348
  %365 = vst [vmem:[#allocation2 + $0x50] sm:$0xff] %v349
  %366 = vst [vmem:[#allocation2 + $0x58] sm:$0xff] %v350
  %367 = vst [vmem:[#allocation2 + $0x60] sm:$0xff] %v351
  %368 = vst [vmem:[#allocation2 + $0x68] sm:$0xff] %v352
  %369 = vst [vmem:[#allocation2 + $0x70] sm:$0xff] %v353
  %370 = vst [vmem:[#allocation2 + $0x78] sm:$0xff] %v354
  // Predicated region
  $region26: #{_lambda_.14} parent=0 // pred_check
    %p371 = pneg %p21
  $region27: #{_lambda_.14} parent=0 // pred_check_branch
    %373 = sbr.rel (%p371) target = $region29
  $region28: #{_lambda_.14} parent=0 // pred_region
    %v374 = vld [vmem:[#allocation2] sm:$0xff]
    %v375 = vld [vmem:[#allocation2 + $0x8] sm:$0xff]
    %v376 = vld [vmem:[#allocation2 + $0x10] sm:$0xff]
    %v377 = vld [vmem:[#allocation2 + $0x18] sm:$0xff]
    %v378 = vld [vmem:[#allocation2 + $0x20] sm:$0xff]
    %v379 = vld [vmem:[#allocation2 + $0x28] sm:$0xff]
    %v380 = vld [vmem:[#allocation2 + $0x30] sm:$0xff]
    %v381 = vld [vmem:[#allocation2 + $0x38] sm:$0xff]
    %v382 = vld [vmem:[#allocation2 + $0x40] sm:$0xff]
    %v383 = vld [vmem:[#allocation2 + $0x48] sm:$0xff]
    %v384 = vld [vmem:[#allocation2 + $0x50] sm:$0xff]
    %v385 = vld [vmem:[#allocation2 + $0x58] sm:$0xff]
    %v386 = vld [vmem:[#allocation2 + $0x60] sm:$0xff]
    %v387 = vld [vmem:[#allocation2 + $0x68] sm:$0xff]
    %v388 = vld [vmem:[#allocation2 + $0x70] sm:$0xff]
    %v389 = vld [vmem:[#allocation2 + $0x78] sm:$0xff]
    %v390 = vld [vmem:[%s2] sm:$0x1]
    %v392 = vlaneseq
    %v393 = vshrl.u32 %v392, 7
    %v394 = vsub.s32 0, %v393
    %v395 = vrot.slane %v390, %v394
    %v397 = vmul.f32 %v374, %v395
    %v398 = vmul.f32 %v375, %v395
    %v399 = vmul.f32 %v376, %v395
    %v400 = vmul.f32 %v377, %v395
    %v401 = vmul.f32 %v378, %v395
    %v402 = vmul.f32 %v379, %v395
    %v403 = vmul.f32 %v380, %v395
    %v404 = vmul.f32 %v381, %v395
    %v405 = vmul.f32 %v382, %v395
    %v406 = vmul.f32 %v383, %v395
    %v407 = vmul.f32 %v384, %v395
    %v408 = vmul.f32 %v385, %v395
    %v409 = vmul.f32 %v386, %v395
    %v410 = vmul.f32 %v387, %v395
    %v411 = vmul.f32 %v388, %v395
    %v412 = vmul.f32 %v389, %v395
    %v413 = vld [vmem:[%s3] sm:$0x1]
    %v415 = vlaneseq
    %v416 = vshrl.u32 %v415, 7
    %v417 = vsub.s32 0, %v416
    %v418 = vrot.slane %v413, %v417
    %v420 = vadd.f32 %v397, %v418
    %v421 = vadd.f32 %v398, %v418
    %v422 = vadd.f32 %v399, %v418
    %v423 = vadd.f32 %v400, %v418
    %v424 = vadd.f32 %v401, %v418
    %v425 = vadd.f32 %v402, %v418
    %v426 = vadd.f32 %v403, %v418
    %v427 = vadd.f32 %v404, %v418
    %v428 = vadd.f32 %v405, %v418
    %v429 = vadd.f32 %v406, %v418
    %v430 = vadd.f32 %v407, %v418
    %v431 = vadd.f32 %v408, %v418
    %v432 = vadd.f32 %v409, %v418
    %v433 = vadd.f32 %v410, %v418
    %v434 = vadd.f32 %v411, %v418
    %v435 = vadd.f32 %v412, %v418
    %v436 = vld [vmem:[%s4] sm:$0xf]
    %v437 = vld [vmem:[%s4 + $0x4] sm:$0xf]
    %v438 = vld [vmem:[%s4 + $0x8] sm:$0xf]
    %v439 = vld [vmem:[%s4 + $0xc] sm:$0xf]
    %v440 = vld [vmem:[%s4 + $0x10] sm:$0xf]
    %v441 = vld [vmem:[%s4 + $0x14] sm:$0xf]
    %v442 = vld [vmem:[%s4 + $0x18] sm:$0xf]
    %v443 = vld [vmem:[%s4 + $0x1c] sm:$0xf]
    %v444 = vld [vmem:[%s4 + $0x20] sm:$0xf]
    %v445 = vld [vmem:[%s4 + $0x24] sm:$0xf]
    %v446 = vld [vmem:[%s4 + $0x28] sm:$0xf]
    %v447 = vld [vmem:[%s4 + $0x2c] sm:$0xf]
    %v448 = vld [vmem:[%s4 + $0x30] sm:$0xf]
    %v449 = vld [vmem:[%s4 + $0x34] sm:$0xf]
    %v450 = vld [vmem:[%s4 + $0x38] sm:$0xf]
    %v451 = vld [vmem:[%s4 + $0x3c] sm:$0xf]
    %v452 = vunpack.c.l.bf16 %v436
    %v453 = vunpack.c.l.bf16 %v437
    %v454 = vunpack.c.l.bf16 %v438
    %v455 = vunpack.c.l.bf16 %v439
    %v456 = vunpack.c.l.bf16 %v440
    %v457 = vunpack.c.l.bf16 %v441
    %v458 = vunpack.c.l.bf16 %v442
    %v459 = vunpack.c.l.bf16 %v443
    %v460 = vunpack.c.l.bf16 %v444
    %v461 = vunpack.c.l.bf16 %v445
    %v462 = vunpack.c.l.bf16 %v446
    %v463 = vunpack.c.l.bf16 %v447
    %v464 = vunpack.c.l.bf16 %v448
    %v465 = vunpack.c.l.bf16 %v449
    %v466 = vunpack.c.l.bf16 %v450
    %v467 = vunpack.c.l.bf16 %v451
    %v468 = vadd.f32 %v420, %v452
    %v469 = vadd.f32 %v421, %v453
    %v470 = vadd.f32 %v422, %v454
    %v471 = vadd.f32 %v423, %v455
    %v472 = vadd.f32 %v424, %v456
    %v473 = vadd.f32 %v425, %v457
    %v474 = vadd.f32 %v426, %v458
    %v475 = vadd.f32 %v427, %v459
    %v476 = vadd.f32 %v428, %v460
    %v477 = vadd.f32 %v429, %v461
    %v478 = vadd.f32 %v430, %v462
    %v479 = vadd.f32 %v431, %v463
    %v480 = vadd.f32 %v432, %v464
    %v481 = vadd.f32 %v433, %v465
    %v482 = vadd.f32 %v434, %v466
    %v483 = vadd.f32 %v435, %v467
    %v484 = vmax.f32 %v468, 0.0
    %v485 = vmax.f32 %v469, 0.0
    %v486 = vmax.f32 %v470, 0.0
    %v487 = vmax.f32 %v471, 0.0
    %v488 = vmax.f32 %v472, 0.0
    %v489 = vmax.f32 %v473, 0.0
    %v490 = vmax.f32 %v474, 0.0
    %v491 = vmax.f32 %v475, 0.0
    %v492 = vmax.f32 %v476, 0.0
    %v493 = vmax.f32 %v477, 0.0
    %v494 = vmax.f32 %v478, 0.0
    %v495 = vmax.f32 %v479, 0.0
    %v496 = vmax.f32 %v480, 0.0
    %v497 = vmax.f32 %v481, 0.0
    %v498 = vmax.f32 %v482, 0.0
    %v499 = vmax.f32 %v483, 0.0
    %v500 = vpack.c.bf16 %v485, %v484
    %v501 = vpack.c.bf16 %v487, %v486
    %v502 = vpack.c.bf16 %v489, %v488
    %v503 = vpack.c.bf16 %v491, %v490
    %v504 = vpack.c.bf16 %v493, %v492
    %v505 = vpack.c.bf16 %v495, %v494
    %v506 = vpack.c.bf16 %v497, %v496
    %v507 = vpack.c.bf16 %v499, %v498
    %v516 = vunpack.c.l.b16 %v500
    %v517 = vunpack.c.h.b16 %v500
    %v518 = vunpack.c.l.b16 %v501
    %v519 = vunpack.c.h.b16 %v501
    %v520 = vunpack.c.l.b16 %v502
    %v521 = vunpack.c.h.b16 %v502
    %v522 = vunpack.c.l.b16 %v503
    %v523 = vunpack.c.h.b16 %v503
    %v524 = vunpack.c.l.b16 %v504
    %v525 = vunpack.c.h.b16 %v504
    %v526 = vunpack.c.l.b16 %v505
    %v527 = vunpack.c.h.b16 %v505
    %v528 = vunpack.c.l.b16 %v506
    %v529 = vunpack.c.h.b16 %v506
    %v530 = vunpack.c.l.b16 %v507
    %v531 = vunpack.c.h.b16 %v507
    %v532 = vpack.c.b16 %v516, %v516
    %v533 = vpack.c.b16 %v517, %v517
    %v534 = vpack.c.b16 %v518, %v518
    %v535 = vpack.c.b16 %v519, %v519
    %v536 = vpack.c.b16 %v520, %v520
    %v537 = vpack.c.b16 %v521, %v521
    %v538 = vpack.c.b16 %v522, %v522
    %v539 = vpack.c.b16 %v523, %v523
    %v540 = vpack.c.b16 %v524, %v524
    %v541 = vpack.c.b16 %v525, %v525
    %v542 = vpack.c.b16 %v526, %v526
    %v543 = vpack.c.b16 %v527, %v527
    %v544 = vpack.c.b16 %v528, %v528
    %v545 = vpack.c.b16 %v529, %v529
    %v546 = vpack.c.b16 %v530, %v530
    %v547 = vpack.c.b16 %v531, %v531
    %564 = vst [vmem:[%s5] sm:$0xf] %v532
    %565 = vst [vmem:[%s5 + $0x4] sm:$0xf] %v533
    %566 = vst [vmem:[%s5 + $0x8] sm:$0xf] %v534
    %567 = vst [vmem:[%s5 + $0xc] sm:$0xf] %v535
    %568 = vst [vmem:[%s5 + $0x10] sm:$0xf] %v536
    %569 = vst [vmem:[%s5 + $0x14] sm:$0xf] %v537
    %570 = vst [vmem:[%s5 + $0x18] sm:$0xf] %v538
    %571 = vst [vmem:[%s5 + $0x1c] sm:$0xf] %v539
    %572 = vst [vmem:[%s5 + $0x20] sm:$0xf] %v540
    %573 = vst [vmem:[%s5 + $0x24] sm:$0xf] %v541
    %574 = vst [vmem:[%s5 + $0x28] sm:$0xf] %v542
    %575 = vst [vmem:[%s5 + $0x2c] sm:$0xf] %v543
    %576 = vst [vmem:[%s5 + $0x30] sm:$0xf] %v544
    %577 = vst [vmem:[%s5 + $0x34] sm:$0xf] %v545
    %578 = vst [vmem:[%s5 + $0x38] sm:$0xf] %v546
    %579 = vst [vmem:[%s5 + $0x3c] sm:$0xf] %v547
  $region29: #{_lambda_.14} parent=0 // pred_fallthru
    _
  // Predicated region
  $region30: #{_lambda_.14} parent=0 // pred_check
    _
  $region31: #{_lambda_.14} parent=0 // pred_check_branch
    %581 = sbr.rel (0) target = $region33
  $region32: #{_lambda_.14} parent=0 // pred_region
    _
  $region33: #{_lambda_.14} parent=0 // pred_fallthru
    _
  // Predicated region
  $region34: #{_lambda_.14} parent=0 // pred_check
    _
  $region35: #{_lambda_.14} parent=0 // pred_check_branch
    %583 = sbr.rel (0) target = $region37
  $region36: #{_lambda_.14} parent=0 // pred_region
    _
  $region37: #{_lambda_.14} parent=0 // pred_fallthru
    _

// kernel: _lambda_.15
$region0: #{_lambda_.15}
  #allocation0 [shape = 'u32[]', space=smem, size = 0x4, offset = 0x4, fixed_abs, tag = 'smem constant byte address 0x4 - core index']
  #allocation1 [shape = 'u32[144,128]{1,0:T(1,128)}', space=vmem, size = 0x12000, scoped, tag = 'internal scratch']
  #allocation2 [shape = 'f32[32,128]{1,0:T(8,128)}', space=vmem, size = 0x4000, scoped, tag = 'scratch operand']
  %s0 = inlined_call_operand.vmem [shape: bf16[32,144], index: 0, kind: input, shape index: {}]
  %s1 = inlined_call_operand.vmem [shape: bf16[144,128], index: 1, kind: input, shape index: {}]
  %s2 = inlined_call_operand.vmem [shape: f32[1,128], index: 2, kind: input, shape index: {}]
  %s3 = inlined_call_operand.vmem [shape: f32[1,128], index: 3, kind: input, shape index: {}]
  %s4 = inlined_call_operand.vmem [shape: bf16[32,128], index: 4, kind: output, shape index: {}]
  %s5 = sld [smem:[#allocation0]]
  $region34: #{_lambda_.15} parent=0
    _
  %s7 = ssub.s32 1, %s5
  %s8 = scalar_select 0, %s7, %s5
  // Predicated region
  $region2: #{_lambda_.15} parent=0 // pred_check
    _
  $region3: #{_lambda_.15} parent=0 // pred_check_branch
    %10 = sbr.rel (0) target = $region5
  $region4: #{_lambda_.15} parent=0 // pred_region
    _
  $region5: #{_lambda_.15} parent=0 // pred_fallthru
    _
  // Predicated region
  $region6: #{_lambda_.15} parent=0 // pred_check
    _
  $region7: #{_lambda_.15} parent=0 // pred_check_branch
    %12 = sbr.rel (0) target = $region9
  $region8: #{_lambda_.15} parent=0 // pred_region
    _
  $region9: #{_lambda_.15} parent=0 // pred_fallthru
    _
  // Predicated region
  $region10: #{_lambda_.15} parent=0 // pred_check
    _
  $region11: #{_lambda_.15} parent=0 // pred_check_branch
    %14 = sbr.rel (0) target = $region13
  $region12: #{_lambda_.15} parent=0 // pred_region
    _
  $region13: #{_lambda_.15} parent=0 // pred_fallthru
    _
  // Predicated region
  $region14: #{_lambda_.15} parent=0 // pred_check
    _
  $region15: #{_lambda_.15} parent=0 // pred_check_branch
    %16 = sbr.rel (0) target = $region17
  $region16: #{_lambda_.15} parent=0 // pred_region
    _
  $region17: #{_lambda_.15} parent=0 // pred_fallthru
    _
  %p18 = scmp.eq.s32.totalorder 0, 0
  // Predicated region
  $region18: #{_lambda_.15} parent=0 // pred_check
    %p19 = pneg %p18
  $region19: #{_lambda_.15} parent=0 // pred_check_branch
    %21 = sbr.rel (%p19) target = $region21
  $region20: #{_lambda_.15} parent=0 // pred_region
    %22 = vst [vmem:[#allocation2] sm:$0xff] 0.0
    %23 = vst [vmem:[#allocation2 + $0x8] sm:$0xff] 0.0
    %24 = vst [vmem:[#allocation2 + $0x10] sm:$0xff] 0.0
    %25 = vst [vmem:[#allocation2 + $0x18] sm:$0xff] 0.0
  $region21: #{_lambda_.15} parent=0 // pred_fallthru
    _
  %v26 = vld [vmem:[#allocation2] sm:$0xff]
  %v27 = vld [vmem:[#allocation2 + $0x8] sm:$0xff]
  %v28 = vld [vmem:[#allocation2 + $0x10] sm:$0xff]
  %v29 = vld [vmem:[#allocation2 + $0x18] sm:$0xff]
  %v30 = vld [vmem:[%s0] sm:$0xff]
  %v31 = vld [vmem:[%s0 + $0x8] sm:$0xff]
  %v32 = vld [vmem:[%s0 + $0x10] sm:$0xff]
  %v33 = vld [vmem:[%s0 + $0x18] sm:$0xff]
  %v34 = vld [vmem:[%s1] sm:$0xf]
  %v35 = vld [vmem:[%s1 + $0x4] sm:$0xf]
  %v36 = vld [vmem:[%s1 + $0x8] sm:$0xf]
  %v37 = vld [vmem:[%s1 + $0xc] sm:$0xf]
  %v38 = vld [vmem:[%s1 + $0x10] sm:$0xf]
  %v39 = vld [vmem:[%s1 + $0x14] sm:$0xf]
  %v40 = vld [vmem:[%s1 + $0x18] sm:$0xf]
  %v41 = vld [vmem:[%s1 + $0x1c] sm:$0xf]
  %v42 = vld [vmem:[%s1 + $0x20] sm:$0xf]
  %v43 = vld [vmem:[%s1 + $0x24] sm:$0xf]
  %v44 = vld [vmem:[%s1 + $0x28] sm:$0xf]
  %v45 = vld [vmem:[%s1 + $0x2c] sm:$0xf]
  %v46 = vld [vmem:[%s1 + $0x30] sm:$0xf]
  %v47 = vld [vmem:[%s1 + $0x34] sm:$0xf]
  %v48 = vld [vmem:[%s1 + $0x38] sm:$0xf]
  %v49 = vld [vmem:[%s1 + $0x3c] sm:$0xf]
  %v50 = vld [vmem:[%s1 + $0x40] sm:$0xf]
  %v51 = vld [vmem:[%s1 + $0x44] sm:$0xf]
  %v56 = vunpack.c.l.b16 %v30
  %v57 = vunpack.c.h.b16 %v30
  %v58 = vunpack.c.l.b16 %v31
  %v59 = vunpack.c.h.b16 %v31
  %v60 = vunpack.c.l.b16 %v32
  %v61 = vunpack.c.h.b16 %v32
  %v62 = vunpack.c.l.b16 %v33
  %v63 = vunpack.c.h.b16 %v33
  %v64 = vpack.c.b16 %v58, %v56
  %v65 = vpack.c.b16 %v59, %v57
  %v66 = vpack.c.b16 %v62, %v60
  %v67 = vpack.c.b16 %v63, %v61
  %v88 = vunpack.c.l.b16 %v34
  %v89 = vunpack.c.l.b16 %v35
  %v90 = vunpack.c.l.b16 %v36
  %v91 = vunpack.c.l.b16 %v37
  %v92 = vunpack.c.l.b16 %v38
  %v93 = vunpack.c.l.b16 %v39
  %v94 = vunpack.c.l.b16 %v40
  %v95 = vunpack.c.l.b16 %v41
  %v96 = vunpack.c.l.b16 %v42
  %v97 = vunpack.c.l.b16 %v43
  %v98 = vunpack.c.l.b16 %v44
  %v99 = vunpack.c.l.b16 %v45
  %v100 = vunpack.c.l.b16 %v46
  %v101 = vunpack.c.l.b16 %v47
  %v102 = vunpack.c.l.b16 %v48
  %v103 = vunpack.c.l.b16 %v49
  %v104 = vunpack.c.l.b16 %v50
  %v105 = vunpack.c.l.b16 %v51
  %v106 = vpack.c.b16 %v89, %v88
  %v107 = vpack.c.b16 %v91, %v90
  %v108 = vpack.c.b16 %v93, %v92
  %v109 = vpack.c.b16 %v95, %v94
  %v110 = vpack.c.b16 %v97, %v96
  %v111 = vpack.c.b16 %v99, %v98
  %v112 = vpack.c.b16 %v101, %v100
  %v113 = vpack.c.b16 %v103, %v102
  %v114 = vpack.c.b16 %v105, %v104
  %vm124 = vcmask 130048
  %v126 = vsel %vm124, %v65, 0
  %v129 = vsel %vm124, %v67, 0
  %131 = vmatprep.subr.bf16.mxu0 0
  %132 = vmatpush1.bf16.msra.mxu0 %v106
  %133 = vmatprep.subr.bf16.mxu0 0
  %134 = vmatpush1.bf16.msra.mxu0 %v107
  %135 = vmatprep.subr.bf16.mxu0 0
  %136 = vmatpush1.bf16.msra.mxu0 %v108
  %137 = vmatprep.subr.bf16.mxu0 0
  %138 = vmatpush1.bf16.msra.mxu0 %v109
  %139 = vmatprep.subr.bf16.mxu0 0
  %140 = vmatpush1.bf16.msra.mxu0 %v110
  %141 = vmatprep.subr.bf16.mxu0 0
  %142 = vmatpush1.bf16.msra.mxu0 %v111
  %143 = vmatprep.subr.bf16.mxu0 0
  %144 = vmatpush1.bf16.msra.mxu0 %v112
  %145 = vmatprep.subr.bf16.mxu0 0
  %146 = vmatpush1.bf16.msra.mxu0 %v113
  %147 = vmatprep.subr.bf16.mxu0 0
  %148 = vmatpush1.bf16.msra.mxu0 %v114
  %149 = vmatprep.subr.bf16.mxu0 0
  %150 = vmatpush1.bf16.msra.mxu0 0
  %151 = vmatprep.subr.bf16.mxu0 0
  %152 = vmatpush1.bf16.msra.mxu0 0
  %153 = vmatprep.subr.bf16.mxu0 0
  %154 = vmatpush1.bf16.msra.mxu0 0
  %155 = vmatprep.subr.bf16.mxu0 0
  %156 = vmatpush1.bf16.msra.mxu0 0
  %157 = vmatprep.subr.bf16.mxu0 0
  %158 = vmatpush1.bf16.msra.mxu0 0
  %159 = vmatprep.subr.bf16.mxu0 0
  %160 = vmatpush1.bf16.msra.mxu0 0
  %161 = vmatprep.subr.bf16.mxu0 0
  %162 = vmatpush1.bf16.msra.mxu0 0
  %163 = vmatprep.mubr.bf16.mxu0 %v126
  %164 = vmatmul.mubr.bf16.gmra.mrb[0].mxu0 %v64
  %v165 = vpop.f32.mrb[0].mxu0
  %v166 = vadd.f32 0.0, %v165
  %v167 = vpop.f32.mrb[0].mxu0
  %v168 = vpop.f32.mrb[0].mxu0
  %v169 = vadd.f32 0.0, %v168
  %v170 = vpop.f32.mrb[0].mxu0
  %171 = vmatprep.mubr.bf16.mxu0 %v129
  %172 = vmatmul.mubr.bf16.gmra.mrb[0].mxu0 %v66
  %v173 = vpop.f32.mrb[0].mxu0
  %v174 = vadd.f32 0.0, %v173
  %v175 = vpop.f32.mrb[0].mxu0
  %v176 = vpop.f32.mrb[0].mxu0
  %v177 = vadd.f32 0.0, %v176
  %v178 = vpop.f32.mrb[0].mxu0
  %179 = vdwg.mxu0
  %v180 = vadd.f32 %v26, %v166
  %v181 = vadd.f32 %v27, %v169
  %v182 = vadd.f32 %v28, %v174
  %v183 = vadd.f32 %v29, %v177
  %184 = vst [vmem:[#allocation2] sm:$0xff] %v180
  %185 = vst [vmem:[#allocation2 + $0x8] sm:$0xff] %v181
  %186 = vst [vmem:[#allocation2 + $0x10] sm:$0xff] %v182
  %187 = vst [vmem:[#allocation2 + $0x18] sm:$0xff] %v183
  // Predicated region
  $region22: #{_lambda_.15} parent=0 // pred_check
    %p188 = pneg %p18
  $region23: #{_lambda_.15} parent=0 // pred_check_branch
    %190 = sbr.rel (%p188) target = $region25
  $region24: #{_lambda_.15} parent=0 // pred_region
    %v191 = vld [vmem:[#allocation2] sm:$0xff]
    %v192 = vld [vmem:[#allocation2 + $0x8] sm:$0xff]
    %v193 = vld [vmem:[#allocation2 + $0x10] sm:$0xff]
    %v194 = vld [vmem:[#allocation2 + $0x18] sm:$0xff]
    %v195 = vld [vmem:[%s2] sm:$0x1]
    %v197 = vlaneseq
    %v198 = vshrl.u32 %v197, 7
    %v199 = vsub.s32 0, %v198
    %v200 = vrot.slane %v195, %v199
    %v202 = vmul.f32 %v191, %v200
    %v203 = vmul.f32 %v192, %v200
    %v204 = vmul.f32 %v193, %v200
    %v205 = vmul.f32 %v194, %v200
    %v206 = vld [vmem:[%s3] sm:$0x1]
    %v208 = vlaneseq
    %v209 = vshrl.u32 %v208, 7
    %v210 = vsub.s32 0, %v209
    %v211 = vrot.slane %v206, %v210
    %v213 = vadd.f32 %v202, %v211
    %v214 = vadd.f32 %v203, %v211
    %v215 = vadd.f32 %v204, %v211
    %v216 = vadd.f32 %v205, %v211
    %v217 = vmax.f32 %v213, 0.0
    %v218 = vmax.f32 %v214, 0.0
    %v219 = vmax.f32 %v215, 0.0
    %v220 = vmax.f32 %v216, 0.0
    %v221 = vpack.c.bf16 %v218, %v217
    %v222 = vpack.c.bf16 %v220, %v219
    %v225 = vunpack.c.l.b16 %v221
    %v226 = vunpack.c.h.b16 %v221
    %v227 = vunpack.c.l.b16 %v222
    %v228 = vunpack.c.h.b16 %v222
    %v229 = vpack.c.b16 %v225, %v225
    %v230 = vpack.c.b16 %v226, %v226
    %v231 = vpack.c.b16 %v227, %v227
    %v232 = vpack.c.b16 %v228, %v228
    %237 = vst [vmem:[%s4] sm:$0xf] %v229
    %238 = vst [vmem:[%s4 + $0x4] sm:$0xf] %v230
    %239 = vst [vmem:[%s4 + $0x8] sm:$0xf] %v231
    %240 = vst [vmem:[%s4 + $0xc] sm:$0xf] %v232
  $region25: #{_lambda_.15} parent=0 // pred_fallthru
    _
  // Predicated region
  $region26: #{_lambda_.15} parent=0 // pred_check
    _
  $region27: #{_lambda_.15} parent=0 // pred_check_branch
    %242 = sbr.rel (0) target = $region29
  $region28: #{_lambda_.15} parent=0 // pred_region
    _
  $region29: #{_lambda_.15} parent=0 // pred_fallthru
    _
  // Predicated region
  $region30: #{_lambda_.15} parent=0 // pred_check
    _
  $region31: #{_lambda_.15} parent=0 // pred_check_branch
    %244 = sbr.rel (0) target = $region33
  $region32: #{_lambda_.15} parent=0 // pred_region
    _
  $region33: #{_lambda_.15} parent=0 // pred_fallthru
    _

// kernel: _lambda_.16
$region0: #{_lambda_.16}
  #allocation0 [shape = 'u32[]', space=smem, size = 0x4, offset = 0x4, fixed_abs, tag = 'smem constant byte address 0x4 - core index']
  #allocation1 [shape = 'u32[144,128]{1,0:T(1,128)}', space=vmem, size = 0x12000, scoped, tag = 'internal scratch']
  #allocation2 [shape = 'f32[32,128]{1,0:T(8,128)}', space=vmem, size = 0x4000, scoped, tag = 'scratch operand']
  %s0 = inlined_call_operand.vmem [shape: bf16[32,16], index: 0, kind: input, shape index: {}]
  %s1 = inlined_call_operand.vmem [shape: bf16[16,128], index: 1, kind: input, shape index: {}]
  %s2 = inlined_call_operand.vmem [shape: f32[1,128], index: 2, kind: input, shape index: {}]
  %s3 = inlined_call_operand.vmem [shape: f32[1,128], index: 3, kind: input, shape index: {}]
  %s4 = inlined_call_operand.vmem [shape: bf16[32,128], index: 4, kind: output, shape index: {}]
  %s5 = sld [smem:[#allocation0]]
  $region34: #{_lambda_.16} parent=0
    _
  %s7 = ssub.s32 1, %s5
  %s8 = scalar_select 0, %s7, %s5
  // Predicated region
  $region2: #{_lambda_.16} parent=0 // pred_check
    _
  $region3: #{_lambda_.16} parent=0 // pred_check_branch
    %10 = sbr.rel (0) target = $region5
  $region4: #{_lambda_.16} parent=0 // pred_region
    _
  $region5: #{_lambda_.16} parent=0 // pred_fallthru
    _
  // Predicated region
  $region6: #{_lambda_.16} parent=0 // pred_check
    _
  $region7: #{_lambda_.16} parent=0 // pred_check_branch
    %12 = sbr.rel (0) target = $region9
  $region8: #{_lambda_.16} parent=0 // pred_region
    _
  $region9: #{_lambda_.16} parent=0 // pred_fallthru
    _
  // Predicated region
  $region10: #{_lambda_.16} parent=0 // pred_check
    _
  $region11: #{_lambda_.16} parent=0 // pred_check_branch
    %14 = sbr.rel (0) target = $region13
  $region12: #{_lambda_.16} parent=0 // pred_region
    _
  $region13: #{_lambda_.16} parent=0 // pred_fallthru
    _
  // Predicated region
  $region14: #{_lambda_.16} parent=0 // pred_check
    _
  $region15: #{_lambda_.16} parent=0 // pred_check_branch
    %16 = sbr.rel (0) target = $region17
  $region16: #{_lambda_.16} parent=0 // pred_region
    _
  $region17: #{_lambda_.16} parent=0 // pred_fallthru
    _
  %p18 = scmp.eq.s32.totalorder 0, 0
  // Predicated region
  $region18: #{_lambda_.16} parent=0 // pred_check
    %p19 = pneg %p18
  $region19: #{_lambda_.16} parent=0 // pred_check_branch
    %21 = sbr.rel (%p19) target = $region21
  $region20: #{_lambda_.16} parent=0 // pred_region
    %22 = vst [vmem:[#allocation2] sm:$0xff] 0.0
    %23 = vst [vmem:[#allocation2 + $0x8] sm:$0xff] 0.0
    %24 = vst [vmem:[#allocation2 + $0x10] sm:$0xff] 0.0
    %25 = vst [vmem:[#allocation2 + $0x18] sm:$0xff] 0.0
  $region21: #{_lambda_.16} parent=0 // pred_fallthru
    _
  %v26 = vld [vmem:[#allocation2] sm:$0xff]
  %v27 = vld [vmem:[#allocation2 + $0x8] sm:$0xff]
  %v28 = vld [vmem:[#allocation2 + $0x10] sm:$0xff]
  %v29 = vld [vmem:[#allocation2 + $0x18] sm:$0xff]
  %v30 = vld [vmem:[%s0] sm:$0xf]
  %v31 = vld [vmem:[%s0 + $0x4] sm:$0xf]
  %v32 = vld [vmem:[%s0 + $0x8] sm:$0xf]
  %v33 = vld [vmem:[%s0 + $0xc] sm:$0xf]
  %v34 = vld [vmem:[%s1] sm:$0xf]
  %v35 = vld [vmem:[%s1 + $0x4] sm:$0xf]
  %v40 = vunpack.c.l.b16 %v30
  %v41 = vunpack.c.l.b16 %v31
  %v42 = vunpack.c.l.b16 %v32
  %v43 = vunpack.c.l.b16 %v33
  %v44 = vpack.c.b16 %v41, %v40
  %v45 = vpack.c.b16 %v43, %v42
  %v48 = vunpack.c.l.b16 %v34
  %v49 = vunpack.c.l.b16 %v35
  %v50 = vpack.c.b16 %v49, %v48
  %vm52 = vcmask 130048
  %v54 = vsel %vm52, %v44, 0
  %v57 = vsel %vm52, %v45, 0
  %59 = vmatprep.subr.bf16.mxu0 0
  %60 = vmatpush1.bf16.msra.mxu0 %v50
  %61 = vmatprep.subr.bf16.mxu0 0
  %62 = vmatpush1.bf16.msra.mxu0 0
  %63 = vmatprep.subr.bf16.mxu0 0
  %64 = vmatpush1.bf16.msra.mxu0 0
  %65 = vmatprep.subr.bf16.mxu0 0
  %66 = vmatpush1.bf16.msra.mxu0 0
  %67 = vmatprep.subr.bf16.mxu0 0
  %68 = vmatpush1.bf16.msra.mxu0 0
  %69 = vmatprep.subr.bf16.mxu0 0
  %70 = vmatpush1.bf16.msra.mxu0 0
  %71 = vmatprep.subr.bf16.mxu0 0
  %72 = vmatpush1.bf16.msra.mxu0 0
  %73 = vmatprep.subr.bf16.mxu0 0
  %74 = vmatpush1.bf16.msra.mxu0 0
  %75 = vmatprep.subr.bf16.mxu0 0
  %76 = vmatpush1.bf16.msra.mxu0 0
  %77 = vmatprep.subr.bf16.mxu0 0
  %78 = vmatpush1.bf16.msra.mxu0 0
  %79 = vmatprep.subr.bf16.mxu0 0
  %80 = vmatpush1.bf16.msra.mxu0 0
  %81 = vmatprep.subr.bf16.mxu0 0
  %82 = vmatpush1.bf16.msra.mxu0 0
  %83 = vmatprep.subr.bf16.mxu0 0
  %84 = vmatpush1.bf16.msra.mxu0 0
  %85 = vmatprep.subr.bf16.mxu0 0
  %86 = vmatpush1.bf16.msra.mxu0 0
  %87 = vmatprep.subr.bf16.mxu0 0
  %88 = vmatpush1.bf16.msra.mxu0 0
  %89 = vmatprep.subr.bf16.mxu0 0
  %90 = vmatpush1.bf16.msra.mxu0 0
  %91 = vmatprep.mubr.bf16.mxu0 0
  %92 = vmatmul.mubr.bf16.gmra.mrb[0].mxu0 %v54
  %v93 = vpop.f32.mrb[0].mxu0
  %v94 = vadd.f32 0.0, %v93
  %v95 = vpop.f32.mrb[0].mxu0
  %v96 = vpop.f32.mrb[0].mxu0
  %v97 = vadd.f32 0.0, %v96
  %v98 = vpop.f32.mrb[0].mxu0
  %99 = vmatprep.mubr.bf16.mxu0 0
  %100 = vmatmul.mubr.bf16.gmra.mrb[0].mxu0 %v57
  %v101 = vpop.f32.mrb[0].mxu0
  %v102 = vadd.f32 0.0, %v101
  %v103 = vpop.f32.mrb[0].mxu0
  %v104 = vpop.f32.mrb[0].mxu0
  %v105 = vadd.f32 0.0, %v104
  %v106 = vpop.f32.mrb[0].mxu0
  %107 = vdwg.mxu0
  %v108 = vadd.f32 %v26, %v94
  %v109 = vadd.f32 %v27, %v97
  %v110 = vadd.f32 %v28, %v102
  %v111 = vadd.f32 %v29, %v105
  %112 = vst [vmem:[#allocation2] sm:$0xff] %v108
  %113 = vst [vmem:[#allocation2 + $0x8] sm:$0xff] %v109
  %114 = vst [vmem:[#allocation2 + $0x10] sm:$0xff] %v110
  %115 = vst [vmem:[#allocation2 + $0x18] sm:$0xff] %v111
  // Predicated region
  $region22: #{_lambda_.16} parent=0 // pred_check
    %p116 = pneg %p18
  $region23: #{_lambda_.16} parent=0 // pred_check_branch
    %118 = sbr.rel (%p116) target = $region25
  $region24: #{_lambda_.16} parent=0 // pred_region
    %v119 = vld [vmem:[#allocation2] sm:$0xff]
    %v120 = vld [vmem:[#allocation2 + $0x8] sm:$0xff]
    %v121 = vld [vmem:[#allocation2 + $0x10] sm:$0xff]
    %v122 = vld [vmem:[#allocation2 + $0x18] sm:$0xff]
    %v123 = vld [vmem:[%s2] sm:$0x1]
    %v125 = vlaneseq
    %v126 = vshrl.u32 %v125, 7
    %v127 = vsub.s32 0, %v126
    %v128 = vrot.slane %v123, %v127
    %v130 = vmul.f32 %v119, %v128
    %v131 = vmul.f32 %v120, %v128
    %v132 = vmul.f32 %v121, %v128
    %v133 = vmul.f32 %v122, %v128
    %v134 = vld [vmem:[%s3] sm:$0x1]
    %v136 = vlaneseq
    %v137 = vshrl.u32 %v136, 7
    %v138 = vsub.s32 0, %v137
    %v139 = vrot.slane %v134, %v138
    %v141 = vadd.f32 %v130, %v139
    %v142 = vadd.f32 %v131, %v139
    %v143 = vadd.f32 %v132, %v139
    %v144 = vadd.f32 %v133, %v139
    %v145 = vpack.c.bf16 %v142, %v141
    %v146 = vpack.c.bf16 %v144, %v143
    %v149 = vunpack.c.l.b16 %v145
    %v150 = vunpack.c.h.b16 %v145
    %v151 = vunpack.c.l.b16 %v146
    %v152 = vunpack.c.h.b16 %v146
    %v153 = vpack.c.b16 %v149, %v149
    %v154 = vpack.c.b16 %v150, %v150
    %v155 = vpack.c.b16 %v151, %v151
    %v156 = vpack.c.b16 %v152, %v152
    %161 = vst [vmem:[%s4] sm:$0xf] %v153
    %162 = vst [vmem:[%s4 + $0x4] sm:$0xf] %v154
    %163 = vst [vmem:[%s4 + $0x8] sm:$0xf] %v155
    %164 = vst [vmem:[%s4 + $0xc] sm:$0xf] %v156
  $region25: #{_lambda_.16} parent=0 // pred_fallthru
    _
  // Predicated region
  $region26: #{_lambda_.16} parent=0 // pred_check
    _
  $region27: #{_lambda_.16} parent=0 // pred_check_branch
    %166 = sbr.rel (0) target = $region29
  $region28: #{_lambda_.16} parent=0 // pred_region
    _
  $region29: #{_lambda_.16} parent=0 // pred_fallthru
    _
  // Predicated region
  $region30: #{_lambda_.16} parent=0 // pred_check
    _
  $region31: #{_lambda_.16} parent=0 // pred_check_branch
    %168 = sbr.rel (0) target = $region33
  $region32: #{_lambda_.16} parent=0 // pred_region
    _
  $region33: #{_lambda_.16} parent=0 // pred_fallthru
    _

// kernel: _lambda_.17
$region0: #{_lambda_.17}
  #allocation0 [shape = 'u32[]', space=smem, size = 0x4, offset = 0x4, fixed_abs, tag = 'smem constant byte address 0x4 - core index']
  #allocation1 [shape = 'u32[144,128]{1,0:T(1,128)}', space=vmem, size = 0x12000, scoped, tag = 'internal scratch']
  #allocation2 [shape = 'f32[32,128]{1,0:T(8,128)}', space=vmem, size = 0x4000, scoped, tag = 'scratch operand']
  %s0 = inlined_call_operand.vmem [shape: bf16[32,288], index: 0, kind: input, shape index: {}]
  %s1 = inlined_call_operand.vmem [shape: bf16[288,128], index: 1, kind: input, shape index: {}]
  %s2 = inlined_call_operand.vmem [shape: f32[1,128], index: 2, kind: input, shape index: {}]
  %s3 = inlined_call_operand.vmem [shape: f32[1,128], index: 3, kind: input, shape index: {}]
  %s4 = inlined_call_operand.vmem [shape: bf16[32,128], index: 4, kind: input, shape index: {}]
  %s5 = inlined_call_operand.vmem [shape: bf16[32,128], index: 5, kind: output, shape index: {}]
  %s6 = sld [smem:[#allocation0]]
  $region38: #{_lambda_.17} parent=0
    _
  %s8 = ssub.s32 1, %s6
  %s9 = scalar_select 0, %s8, %s6
  // Predicated region
  $region2: #{_lambda_.17} parent=0 // pred_check
    _
  $region3: #{_lambda_.17} parent=0 // pred_check_branch
    %11 = sbr.rel (0) target = $region5
  $region4: #{_lambda_.17} parent=0 // pred_region
    _
  $region5: #{_lambda_.17} parent=0 // pred_fallthru
    _
  // Predicated region
  $region6: #{_lambda_.17} parent=0 // pred_check
    _
  $region7: #{_lambda_.17} parent=0 // pred_check_branch
    %13 = sbr.rel (0) target = $region9
  $region8: #{_lambda_.17} parent=0 // pred_region
    _
  $region9: #{_lambda_.17} parent=0 // pred_fallthru
    _
  // Predicated region
  $region10: #{_lambda_.17} parent=0 // pred_check
    _
  $region11: #{_lambda_.17} parent=0 // pred_check_branch
    %15 = sbr.rel (0) target = $region13
  $region12: #{_lambda_.17} parent=0 // pred_region
    _
  $region13: #{_lambda_.17} parent=0 // pred_fallthru
    _
  // Predicated region
  $region14: #{_lambda_.17} parent=0 // pred_check
    _
  $region15: #{_lambda_.17} parent=0 // pred_check_branch
    %17 = sbr.rel (0) target = $region17
  $region16: #{_lambda_.17} parent=0 // pred_region
    _
  $region17: #{_lambda_.17} parent=0 // pred_fallthru
    _
  // Predicated region
  $region18: #{_lambda_.17} parent=0 // pred_check
    _
  $region19: #{_lambda_.17} parent=0 // pred_check_branch
    %19 = sbr.rel (0) target = $region21
  $region20: #{_lambda_.17} parent=0 // pred_region
    _
  $region21: #{_lambda_.17} parent=0 // pred_fallthru
    _
  %p21 = scmp.eq.s32.totalorder 0, 0
  // Predicated region
  $region22: #{_lambda_.17} parent=0 // pred_check
    %p22 = pneg %p21
  $region23: #{_lambda_.17} parent=0 // pred_check_branch
    %24 = sbr.rel (%p22) target = $region25
  $region24: #{_lambda_.17} parent=0 // pred_region
    %25 = vst [vmem:[#allocation2] sm:$0xff] 0.0
    %26 = vst [vmem:[#allocation2 + $0x8] sm:$0xff] 0.0
    %27 = vst [vmem:[#allocation2 + $0x10] sm:$0xff] 0.0
    %28 = vst [vmem:[#allocation2 + $0x18] sm:$0xff] 0.0
  $region25: #{_lambda_.17} parent=0 // pred_fallthru
    _
  %v29 = vld [vmem:[#allocation2] sm:$0xff]
  %v30 = vld [vmem:[#allocation2 + $0x8] sm:$0xff]
  %v31 = vld [vmem:[#allocation2 + $0x10] sm:$0xff]
  %v32 = vld [vmem:[#allocation2 + $0x18] sm:$0xff]
  %v33 = vld [vmem:[%s0] sm:$0xff]
  %v34 = vld [vmem:[%s0 + $0x8] sm:$0xf]
  %v35 = vld [vmem:[%s0 + $0xc] sm:$0xff]
  %v36 = vld [vmem:[%s0 + $0x14] sm:$0xf]
  %v37 = vld [vmem:[%s0 + $0x18] sm:$0xff]
  %v38 = vld [vmem:[%s0 + $0x20] sm:$0xf]
  %v39 = vld [vmem:[%s0 + $0x24] sm:$0xff]
  %v40 = vld [vmem:[%s0 + $0x2c] sm:$0xf]
  %v41 = vld [vmem:[%s1] sm:$0xf]
  %v42 = vld [vmem:[%s1 + $0x4] sm:$0xf]
  %v43 = vld [vmem:[%s1 + $0x8] sm:$0xf]
  %v44 = vld [vmem:[%s1 + $0xc] sm:$0xf]
  %v45 = vld [vmem:[%s1 + $0x10] sm:$0xf]
  %v46 = vld [vmem:[%s1 + $0x14] sm:$0xf]
  %v47 = vld [vmem:[%s1 + $0x18] sm:$0xf]
  %v48 = vld [vmem:[%s1 + $0x1c] sm:$0xf]
  %v49 = vld [vmem:[%s1 + $0x20] sm:$0xf]
  %v50 = vld [vmem:[%s1 + $0x24] sm:$0xf]
  %v51 = vld [vmem:[%s1 + $0x28] sm:$0xf]
  %v52 = vld [vmem:[%s1 + $0x2c] sm:$0xf]
  %v53 = vld [vmem:[%s1 + $0x30] sm:$0xf]
  %v54 = vld [vmem:[%s1 + $0x34] sm:$0xf]
  %v55 = vld [vmem:[%s1 + $0x38] sm:$0xf]
  %v56 = vld [vmem:[%s1 + $0x3c] sm:$0xf]
  %v57 = vld [vmem:[%s1 + $0x40] sm:$0xf]
  %v58 = vld [vmem:[%s1 + $0x44] sm:$0xf]
  %v59 = vld [vmem:[%s1 + $0x48] sm:$0xf]
  %v60 = vld [vmem:[%s1 + $0x4c] sm:$0xf]
  %v61 = vld [vmem:[%s1 + $0x50] sm:$0xf]
  %v62 = vld [vmem:[%s1 + $0x54] sm:$0xf]
  %v63 = vld [vmem:[%s1 + $0x58] sm:$0xf]
  %v64 = vld [vmem:[%s1 + $0x5c] sm:$0xf]
  %v65 = vld [vmem:[%s1 + $0x60] sm:$0xf]
  %v66 = vld [vmem:[%s1 + $0x64] sm:$0xf]
  %v67 = vld [vmem:[%s1 + $0x68] sm:$0xf]
  %v68 = vld [vmem:[%s1 + $0x6c] sm:$0xf]
  %v69 = vld [vmem:[%s1 + $0x70] sm:$0xf]
  %v70 = vld [vmem:[%s1 + $0x74] sm:$0xf]
  %v71 = vld [vmem:[%s1 + $0x78] sm:$0xf]
  %v72 = vld [vmem:[%s1 + $0x7c] sm:$0xf]
  %v73 = vld [vmem:[%s1 + $0x80] sm:$0xf]
  %v74 = vld [vmem:[%s1 + $0x84] sm:$0xf]
  %v75 = vld [vmem:[%s1 + $0x88] sm:$0xf]
  %v76 = vld [vmem:[%s1 + $0x8c] sm:$0xf]
  %v85 = vunpack.c.l.b16 %v33
  %v86 = vunpack.c.h.b16 %v33
  %v87 = vunpack.c.l.b16 %v34
  %v88 = vunpack.c.l.b16 %v35
  %v89 = vunpack.c.h.b16 %v35
  %v90 = vunpack.c.l.b16 %v36
  %v91 = vunpack.c.l.b16 %v37
  %v92 = vunpack.c.h.b16 %v37
  %v93 = vunpack.c.l.b16 %v38
  %v94 = vunpack.c.l.b16 %v39
  %v95 = vunpack.c.h.b16 %v39
  %v96 = vunpack.c.l.b16 %v40
  %v97 = vpack.c.b16 %v88, %v85
  %v98 = vpack.c.b16 %v89, %v86
  %v99 = vpack.c.b16 %v90, %v87
  %v100 = vpack.c.b16 %v94, %v91
  %v101 = vpack.c.b16 %v95, %v92
  %v102 = vpack.c.b16 %v96, %v93
  %v143 = vunpack.c.l.b16 %v41
  %v144 = vunpack.c.l.b16 %v42
  %v145 = vunpack.c.l.b16 %v43
  %v146 = vunpack.c.l.b16 %v44
  %v147 = vunpack.c.l.b16 %v45
  %v148 = vunpack.c.l.b16 %v46
  %v149 = vunpack.c.l.b16 %v47
  %v150 = vunpack.c.l.b16 %v48
  %v151 = vunpack.c.l.b16 %v49
  %v152 = vunpack.c.l.b16 %v50
  %v153 = vunpack.c.l.b16 %v51
  %v154 = vunpack.c.l.b16 %v52
  %v155 = vunpack.c.l.b16 %v53
  %v156 = vunpack.c.l.b16 %v54
  %v157 = vunpack.c.l.b16 %v55
  %v158 = vunpack.c.l.b16 %v56
  %v159 = vunpack.c.l.b16 %v57
  %v160 = vunpack.c.l.b16 %v58
  %v161 = vunpack.c.l.b16 %v59
  %v162 = vunpack.c.l.b16 %v60
  %v163 = vunpack.c.l.b16 %v61
  %v164 = vunpack.c.l.b16 %v62
  %v165 = vunpack.c.l.b16 %v63
  %v166 = vunpack.c.l.b16 %v64
  %v167 = vunpack.c.l.b16 %v65
  %v168 = vunpack.c.l.b16 %v66
  %v169 = vunpack.c.l.b16 %v67
  %v170 = vunpack.c.l.b16 %v68
  %v171 = vunpack.c.l.b16 %v69
  %v172 = vunpack.c.l.b16 %v70
  %v173 = vunpack.c.l.b16 %v71
  %v174 = vunpack.c.l.b16 %v72
  %v175 = vunpack.c.l.b16 %v73
  %v176 = vunpack.c.l.b16 %v74
  %v177 = vunpack.c.l.b16 %v75
  %v178 = vunpack.c.l.b16 %v76
  %v179 = vpack.c.b16 %v144, %v143
  %v180 = vpack.c.b16 %v146, %v145
  %v181 = vpack.c.b16 %v148, %v147
  %v182 = vpack.c.b16 %v150, %v149
  %v183 = vpack.c.b16 %v152, %v151
  %v184 = vpack.c.b16 %v154, %v153
  %v185 = vpack.c.b16 %v156, %v155
  %v186 = vpack.c.b16 %v158, %v157
  %v187 = vpack.c.b16 %v160, %v159
  %v188 = vpack.c.b16 %v162, %v161
  %v189 = vpack.c.b16 %v164, %v163
  %v190 = vpack.c.b16 %v166, %v165
  %v191 = vpack.c.b16 %v168, %v167
  %v192 = vpack.c.b16 %v170, %v169
  %v193 = vpack.c.b16 %v172, %v171
  %v194 = vpack.c.b16 %v174, %v173
  %v195 = vpack.c.b16 %v176, %v175
  %v196 = vpack.c.b16 %v178, %v177
  %vm215 = vcmask 261120
  %v217 = vsel %vm215, %v99, 0
  %v220 = vsel %vm215, %v102, 0
  %222 = vmatprep.subr.bf16.mxu0 0
  %223 = vmatpush1.bf16.msra.mxu0 %v179
  %224 = vmatprep.subr.bf16.mxu0 0
  %225 = vmatpush1.bf16.msra.mxu0 %v180
  %226 = vmatprep.subr.bf16.mxu0 0
  %227 = vmatpush1.bf16.msra.mxu0 %v181
  %228 = vmatprep.subr.bf16.mxu0 0
  %229 = vmatpush1.bf16.msra.mxu0 %v182
  %230 = vmatprep.subr.bf16.mxu0 0
  %231 = vmatpush1.bf16.msra.mxu0 %v183
  %232 = vmatprep.subr.bf16.mxu0 0
  %233 = vmatpush1.bf16.msra.mxu0 %v184
  %234 = vmatprep.subr.bf16.mxu0 0
  %235 = vmatpush1.bf16.msra.mxu0 %v185
  %236 = vmatprep.subr.bf16.mxu0 0
  %237 = vmatpush1.bf16.msra.mxu0 %v186
  %238 = vmatprep.subr.bf16.mxu0 0
  %239 = vmatpush1.bf16.msra.mxu0 %v187
  %240 = vmatprep.subr.bf16.mxu0 0
  %241 = vmatpush1.bf16.msra.mxu0 %v188
  %242 = vmatprep.subr.bf16.mxu0 0
  %243 = vmatpush1.bf16.msra.mxu0 %v189
  %244 = vmatprep.subr.bf16.mxu0 0
  %245 = vmatpush1.bf16.msra.mxu0 %v190
  %246 = vmatprep.subr.bf16.mxu0 0
  %247 = vmatpush1.bf16.msra.mxu0 %v191
  %248 = vmatprep.subr.bf16.mxu0 0
  %249 = vmatpush1.bf16.msra.mxu0 %v192
  %250 = vmatprep.subr.bf16.mxu0 0
  %251 = vmatpush1.bf16.msra.mxu0 %v193
  %252 = vmatprep.subr.bf16.mxu0 0
  %253 = vmatpush1.bf16.msra.mxu0 %v194
  %254 = vmatprep.mubr.bf16.mxu0 %v98
  %255 = vmatmul.mubr.bf16.gmra.mrb[0].mxu0 %v97
  %v256 = vpop.f32.mrb[0].mxu0
  %v257 = vadd.f32 0.0, %v256
  %v258 = vpop.f32.mrb[0].mxu0
  %v259 = vpop.f32.mrb[0].mxu0
  %v260 = vadd.f32 0.0, %v259
  %v261 = vpop.f32.mrb[0].mxu0
  %262 = vmatprep.mubr.bf16.mxu0 %v101
  %263 = vmatmul.mubr.bf16.gmra.mrb[0].mxu0 %v100
  %v264 = vpop.f32.mrb[0].mxu0
  %v265 = vadd.f32 0.0, %v264
  %v266 = vpop.f32.mrb[0].mxu0
  %v267 = vpop.f32.mrb[0].mxu0
  %v268 = vadd.f32 0.0, %v267
  %v269 = vpop.f32.mrb[0].mxu0
  %270 = vdwg.mxu0
  %271 = vmatprep.subr.bf16.mxu0 0
  %272 = vmatpush1.bf16.msra.mxu0 %v195
  %273 = vmatprep.subr.bf16.mxu0 0
  %274 = vmatpush1.bf16.msra.mxu0 %v196
  %275 = vmatprep.subr.bf16.mxu0 0
  %276 = vmatpush1.bf16.msra.mxu0 0
  %277 = vmatprep.subr.bf16.mxu0 0
  %278 = vmatpush1.bf16.msra.mxu0 0
  %279 = vmatprep.subr.bf16.mxu0 0
  %280 = vmatpush1.bf16.msra.mxu0 0
  %281 = vmatprep.subr.bf16.mxu0 0
  %282 = vmatpush1.bf16.msra.mxu0 0
  %283 = vmatprep.subr.bf16.mxu0 0
  %284 = vmatpush1.bf16.msra.mxu0 0
  %285 = vmatprep.subr.bf16.mxu0 0
  %286 = vmatpush1.bf16.msra.mxu0 0
  %287 = vmatprep.subr.bf16.mxu0 0
  %288 = vmatpush1.bf16.msra.mxu0 0
  %289 = vmatprep.subr.bf16.mxu0 0
  %290 = vmatpush1.bf16.msra.mxu0 0
  %291 = vmatprep.subr.bf16.mxu0 0
  %292 = vmatpush1.bf16.msra.mxu0 0
  %293 = vmatprep.subr.bf16.mxu0 0
  %294 = vmatpush1.bf16.msra.mxu0 0
  %295 = vmatprep.subr.bf16.mxu0 0
  %296 = vmatpush1.bf16.msra.mxu0 0
  %297 = vmatprep.subr.bf16.mxu0 0
  %298 = vmatpush1.bf16.msra.mxu0 0
  %299 = vmatprep.subr.bf16.mxu0 0
  %300 = vmatpush1.bf16.msra.mxu0 0
  %301 = vmatprep.subr.bf16.mxu0 0
  %302 = vmatpush1.bf16.msra.mxu0 0
  %303 = vmatprep.mubr.bf16.mxu0 0
  %304 = vmatmul.mubr.bf16.gmra.mrb[0].mxu0 %v217
  %v305 = vpop.f32.mrb[0].mxu0
  %v306 = vadd.f32 %v257, %v305
  %v307 = vpop.f32.mrb[0].mxu0
  %v308 = vpop.f32.mrb[0].mxu0
  %v309 = vadd.f32 %v260, %v308
  %v310 = vpop.f32.mrb[0].mxu0
  %311 = vmatprep.mubr.bf16.mxu0 0
  %312 = vmatmul.mubr.bf16.gmra.mrb[0].mxu0 %v220
  %v313 = vpop.f32.mrb[0].mxu0
  %v314 = vadd.f32 %v265, %v313
  %v315 = vpop.f32.mrb[0].mxu0
  %v316 = vpop.f32.mrb[0].mxu0
  %v317 = vadd.f32 %v268, %v316
  %v318 = vpop.f32.mrb[0].mxu0
  %319 = vdwg.mxu0
  %v320 = vadd.f32 %v29, %v306
  %v321 = vadd.f32 %v30, %v309
  %v322 = vadd.f32 %v31, %v314
  %v323 = vadd.f32 %v32, %v317
  %324 = vst [vmem:[#allocation2] sm:$0xff] %v320
  %325 = vst [vmem:[#allocation2 + $0x8] sm:$0xff] %v321
  %326 = vst [vmem:[#allocation2 + $0x10] sm:$0xff] %v322
  %327 = vst [vmem:[#allocation2 + $0x18] sm:$0xff] %v323
  // Predicated region
  $region26: #{_lambda_.17} parent=0 // pred_check
    %p328 = pneg %p21
  $region27: #{_lambda_.17} parent=0 // pred_check_branch
    %330 = sbr.rel (%p328) target = $region29
  $region28: #{_lambda_.17} parent=0 // pred_region
    %v331 = vld [vmem:[#allocation2] sm:$0xff]
    %v332 = vld [vmem:[#allocation2 + $0x8] sm:$0xff]
    %v333 = vld [vmem:[#allocation2 + $0x10] sm:$0xff]
    %v334 = vld [vmem:[#allocation2 + $0x18] sm:$0xff]
    %v335 = vld [vmem:[%s2] sm:$0x1]
    %v337 = vlaneseq
    %v338 = vshrl.u32 %v337, 7
    %v339 = vsub.s32 0, %v338
    %v340 = vrot.slane %v335, %v339
    %v342 = vmul.f32 %v331, %v340
    %v343 = vmul.f32 %v332, %v340
    %v344 = vmul.f32 %v333, %v340
    %v345 = vmul.f32 %v334, %v340
    %v346 = vld [vmem:[%s3] sm:$0x1]
    %v348 = vlaneseq
    %v349 = vshrl.u32 %v348, 7
    %v350 = vsub.s32 0, %v349
    %v351 = vrot.slane %v346, %v350
    %v353 = vadd.f32 %v342, %v351
    %v354 = vadd.f32 %v343, %v351
    %v355 = vadd.f32 %v344, %v351
    %v356 = vadd.f32 %v345, %v351
    %v357 = vld [vmem:[%s4] sm:$0xf]
    %v358 = vld [vmem:[%s4 + $0x4] sm:$0xf]
    %v359 = vld [vmem:[%s4 + $0x8] sm:$0xf]
    %v360 = vld [vmem:[%s4 + $0xc] sm:$0xf]
    %v361 = vunpack.c.l.bf16 %v357
    %v362 = vunpack.c.l.bf16 %v358
    %v363 = vunpack.c.l.bf16 %v359
    %v364 = vunpack.c.l.bf16 %v360
    %v365 = vadd.f32 %v353, %v361
    %v366 = vadd.f32 %v354, %v362
    %v367 = vadd.f32 %v355, %v363
    %v368 = vadd.f32 %v356, %v364
    %v369 = vmax.f32 %v365, 0.0
    %v370 = vmax.f32 %v366, 0.0
    %v371 = vmax.f32 %v367, 0.0
    %v372 = vmax.f32 %v368, 0.0
    %v373 = vpack.c.bf16 %v370, %v369
    %v374 = vpack.c.bf16 %v372, %v371
    %v377 = vunpack.c.l.b16 %v373
    %v378 = vunpack.c.h.b16 %v373
    %v379 = vunpack.c.l.b16 %v374
    %v380 = vunpack.c.h.b16 %v374
    %v381 = vpack.c.b16 %v377, %v377
    %v382 = vpack.c.b16 %v378, %v378
    %v383 = vpack.c.b16 %v379, %v379
    %v384 = vpack.c.b16 %v380, %v380
    %389 = vst [vmem:[%s5] sm:$0xf] %v381
    %390 = vst [vmem:[%s5 + $0x4] sm:$0xf] %v382
    %391 = vst [vmem:[%s5 + $0x8] sm:$0xf] %v383
    %392 = vst [vmem:[%s5 + $0xc] sm:$0xf] %v384
  $region29: #{_lambda_.17} parent=0 // pred_fallthru
    _
  // Predicated region
  $region30: #{_lambda_.17} parent=0 // pred_check
    _
  $region31: #{_lambda_.17} parent=0 // pred_check_branch
    %394 = sbr.rel (0) target = $region33
  $region32: #{_lambda_.17} parent=0 // pred_region
    _
  $region33: #{_lambda_.17} parent=0 // pred_fallthru
    _
  // Predicated region
  $region34: #{_lambda_.17} parent=0 // pred_check
    _
  $region35: #{_lambda_.17} parent=0 // pred_check_branch
    %396 = sbr.rel (0) target = $region37
  $region36: #{_lambda_.17} parent=0 // pred_region
    _
  $region37: #{_lambda_.17} parent=0 // pred_fallthru
    _

// kernel: _lambda_.18
$region0: #{_lambda_.18}
  #allocation0 [shape = 'u32[]', space=smem, size = 0x4, offset = 0x4, fixed_abs, tag = 'smem constant byte address 0x4 - core index']
  #allocation1 [shape = 'u32[144,128]{1,0:T(1,128)}', space=vmem, size = 0x12000, scoped, tag = 'internal scratch']
  #allocation2 [shape = 'f32[8,128]{1,0:T(8,128)}', space=vmem, size = 0x1000, scoped, tag = 'scratch operand']
  %s0 = inlined_call_operand.vmem [shape: bf16[8,288], index: 0, kind: input, shape index: {}]
  %s1 = inlined_call_operand.vmem [shape: bf16[288,128], index: 1, kind: input, shape index: {}]
  %s2 = inlined_call_operand.vmem [shape: f32[1,128], index: 2, kind: input, shape index: {}]
  %s3 = inlined_call_operand.vmem [shape: f32[1,128], index: 3, kind: input, shape index: {}]
  %s4 = inlined_call_operand.vmem [shape: bf16[8,128], index: 4, kind: output, shape index: {}]
  %s5 = sld [smem:[#allocation0]]
  $region34: #{_lambda_.18} parent=0
    _
  %s7 = ssub.s32 1, %s5
  %s8 = scalar_select 0, %s7, %s5
  // Predicated region
  $region2: #{_lambda_.18} parent=0 // pred_check
    _
  $region3: #{_lambda_.18} parent=0 // pred_check_branch
    %10 = sbr.rel (0) target = $region5
  $region4: #{_lambda_.18} parent=0 // pred_region
    _
  $region5: #{_lambda_.18} parent=0 // pred_fallthru
    _
  // Predicated region
  $region6: #{_lambda_.18} parent=0 // pred_check
    _
  $region7: #{_lambda_.18} parent=0 // pred_check_branch
    %12 = sbr.rel (0) target = $region9
  $region8: #{_lambda_.18} parent=0 // pred_region
    _
  $region9: #{_lambda_.18} parent=0 // pred_fallthru
    _
  // Predicated region
  $region10: #{_lambda_.18} parent=0 // pred_check
    _
  $region11: #{_lambda_.18} parent=0 // pred_check_branch
    %14 = sbr.rel (0) target = $region13
  $region12: #{_lambda_.18} parent=0 // pred_region
    _
  $region13: #{_lambda_.18} parent=0 // pred_fallthru
    _
  // Predicated region
  $region14: #{_lambda_.18} parent=0 // pred_check
    _
  $region15: #{_lambda_.18} parent=0 // pred_check_branch
    %16 = sbr.rel (0) target = $region17
  $region16: #{_lambda_.18} parent=0 // pred_region
    _
  $region17: #{_lambda_.18} parent=0 // pred_fallthru
    _
  %p18 = scmp.eq.s32.totalorder 0, 0
  // Predicated region
  $region18: #{_lambda_.18} parent=0 // pred_check
    %p19 = pneg %p18
  $region19: #{_lambda_.18} parent=0 // pred_check_branch
    %21 = sbr.rel (%p19) target = $region21
  $region20: #{_lambda_.18} parent=0 // pred_region
    %22 = vst [vmem:[#allocation2] sm:$0xff] 0.0
  $region21: #{_lambda_.18} parent=0 // pred_fallthru
    _
  %v23 = vld [vmem:[#allocation2] sm:$0xff]
  %v24 = vld [vmem:[%s0] sm:$0xff]
  %v25 = vld [vmem:[%s0 + $0x8] sm:$0xf]
  %v26 = vld [vmem:[%s1] sm:$0xf]
  %v27 = vld [vmem:[%s1 + $0x4] sm:$0xf]
  %v28 = vld [vmem:[%s1 + $0x8] sm:$0xf]
  %v29 = vld [vmem:[%s1 + $0xc] sm:$0xf]
  %v30 = vld [vmem:[%s1 + $0x10] sm:$0xf]
  %v31 = vld [vmem:[%s1 + $0x14] sm:$0xf]
  %v32 = vld [vmem:[%s1 + $0x18] sm:$0xf]
  %v33 = vld [vmem:[%s1 + $0x1c] sm:$0xf]
  %v34 = vld [vmem:[%s1 + $0x20] sm:$0xf]
  %v35 = vld [vmem:[%s1 + $0x24] sm:$0xf]
  %v36 = vld [vmem:[%s1 + $0x28] sm:$0xf]
  %v37 = vld [vmem:[%s1 + $0x2c] sm:$0xf]
  %v38 = vld [vmem:[%s1 + $0x30] sm:$0xf]
  %v39 = vld [vmem:[%s1 + $0x34] sm:$0xf]
  %v40 = vld [vmem:[%s1 + $0x38] sm:$0xf]
  %v41 = vld [vmem:[%s1 + $0x3c] sm:$0xf]
  %v42 = vld [vmem:[%s1 + $0x40] sm:$0xf]
  %v43 = vld [vmem:[%s1 + $0x44] sm:$0xf]
  %v44 = vld [vmem:[%s1 + $0x48] sm:$0xf]
  %v45 = vld [vmem:[%s1 + $0x4c] sm:$0xf]
  %v46 = vld [vmem:[%s1 + $0x50] sm:$0xf]
  %v47 = vld [vmem:[%s1 + $0x54] sm:$0xf]
  %v48 = vld [vmem:[%s1 + $0x58] sm:$0xf]
  %v49 = vld [vmem:[%s1 + $0x5c] sm:$0xf]
  %v50 = vld [vmem:[%s1 + $0x60] sm:$0xf]
  %v51 = vld [vmem:[%s1 + $0x64] sm:$0xf]
  %v52 = vld [vmem:[%s1 + $0x68] sm:$0xf]
  %v53 = vld [vmem:[%s1 + $0x6c] sm:$0xf]
  %v54 = vld [vmem:[%s1 + $0x70] sm:$0xf]
  %v55 = vld [vmem:[%s1 + $0x74] sm:$0xf]
  %v56 = vld [vmem:[%s1 + $0x78] sm:$0xf]
  %v57 = vld [vmem:[%s1 + $0x7c] sm:$0xf]
  %v58 = vld [vmem:[%s1 + $0x80] sm:$0xf]
  %v59 = vld [vmem:[%s1 + $0x84] sm:$0xf]
  %v60 = vld [vmem:[%s1 + $0x88] sm:$0xf]
  %v61 = vld [vmem:[%s1 + $0x8c] sm:$0xf]
  %v64 = vunpack.c.l.b16 %v24
  %v65 = vunpack.c.h.b16 %v24
  %v66 = vunpack.c.l.b16 %v25
  %v67 = vpack.c.b16 %v64, %v64
  %v68 = vpack.c.b16 %v65, %v65
  %v69 = vpack.c.b16 %v66, %v66
  %v108 = vunpack.c.l.b16 %v26
  %v109 = vunpack.c.l.b16 %v27
  %v110 = vunpack.c.l.b16 %v28
  %v111 = vunpack.c.l.b16 %v29
  %v112 = vunpack.c.l.b16 %v30
  %v113 = vunpack.c.l.b16 %v31
  %v114 = vunpack.c.l.b16 %v32
  %v115 = vunpack.c.l.b16 %v33
  %v116 = vunpack.c.l.b16 %v34
  %v117 = vunpack.c.l.b16 %v35
  %v118 = vunpack.c.l.b16 %v36
  %v119 = vunpack.c.l.b16 %v37
  %v120 = vunpack.c.l.b16 %v38
  %v121 = vunpack.c.l.b16 %v39
  %v122 = vunpack.c.l.b16 %v40
  %v123 = vunpack.c.l.b16 %v41
  %v124 = vunpack.c.l.b16 %v42
  %v125 = vunpack.c.l.b16 %v43
  %v126 = vunpack.c.l.b16 %v44
  %v127 = vunpack.c.l.b16 %v45
  %v128 = vunpack.c.l.b16 %v46
  %v129 = vunpack.c.l.b16 %v47
  %v130 = vunpack.c.l.b16 %v48
  %v131 = vunpack.c.l.b16 %v49
  %v132 = vunpack.c.l.b16 %v50
  %v133 = vunpack.c.l.b16 %v51
  %v134 = vunpack.c.l.b16 %v52
  %v135 = vunpack.c.l.b16 %v53
  %v136 = vunpack.c.l.b16 %v54
  %v137 = vunpack.c.l.b16 %v55
  %v138 = vunpack.c.l.b16 %v56
  %v139 = vunpack.c.l.b16 %v57
  %v140 = vunpack.c.l.b16 %v58
  %v141 = vunpack.c.l.b16 %v59
  %v142 = vunpack.c.l.b16 %v60
  %v143 = vunpack.c.l.b16 %v61
  %v144 = vpack.c.b16 %v109, %v108
  %v145 = vpack.c.b16 %v111, %v110
  %v146 = vpack.c.b16 %v113, %v112
  %v147 = vpack.c.b16 %v115, %v114
  %v148 = vpack.c.b16 %v117, %v116
  %v149 = vpack.c.b16 %v119, %v118
  %v150 = vpack.c.b16 %v121, %v120
  %v151 = vpack.c.b16 %v123, %v122
  %v152 = vpack.c.b16 %v125, %v124
  %v153 = vpack.c.b16 %v127, %v126
  %v154 = vpack.c.b16 %v129, %v128
  %v155 = vpack.c.b16 %v131, %v130
  %v156 = vpack.c.b16 %v133, %v132
  %v157 = vpack.c.b16 %v135, %v134
  %v158 = vpack.c.b16 %v137, %v136
  %v159 = vpack.c.b16 %v139, %v138
  %v160 = vpack.c.b16 %v141, %v140
  %v161 = vpack.c.b16 %v143, %v142
  %vm180 = vcmask 261120
  %v182 = vsel %vm180, %v69, 0
  %184 = vmatprep.subr.bf16.mxu0 0
  %185 = vmatpush1.bf16.msra.mxu0 %v144
  %186 = vmatprep.subr.bf16.mxu0 0
  %187 = vmatpush1.bf16.msra.mxu0 %v145
  %188 = vmatprep.subr.bf16.mxu0 0
  %189 = vmatpush1.bf16.msra.mxu0 %v146
  %190 = vmatprep.subr.bf16.mxu0 0
  %191 = vmatpush1.bf16.msra.mxu0 %v147
  %192 = vmatprep.subr.bf16.mxu0 0
  %193 = vmatpush1.bf16.msra.mxu0 %v148
  %194 = vmatprep.subr.bf16.mxu0 0
  %195 = vmatpush1.bf16.msra.mxu0 %v149
  %196 = vmatprep.subr.bf16.mxu0 0
  %197 = vmatpush1.bf16.msra.mxu0 %v150
  %198 = vmatprep.subr.bf16.mxu0 0
  %199 = vmatpush1.bf16.msra.mxu0 %v151
  %200 = vmatprep.subr.bf16.mxu0 0
  %201 = vmatpush1.bf16.msra.mxu0 %v152
  %202 = vmatprep.subr.bf16.mxu0 0
  %203 = vmatpush1.bf16.msra.mxu0 %v153
  %204 = vmatprep.subr.bf16.mxu0 0
  %205 = vmatpush1.bf16.msra.mxu0 %v154
  %206 = vmatprep.subr.bf16.mxu0 0
  %207 = vmatpush1.bf16.msra.mxu0 %v155
  %208 = vmatprep.subr.bf16.mxu0 0
  %209 = vmatpush1.bf16.msra.mxu0 %v156
  %210 = vmatprep.subr.bf16.mxu0 0
  %211 = vmatpush1.bf16.msra.mxu0 %v157
  %212 = vmatprep.subr.bf16.mxu0 0
  %213 = vmatpush1.bf16.msra.mxu0 %v158
  %214 = vmatprep.subr.bf16.mxu0 0
  %215 = vmatpush1.bf16.msra.mxu0 %v159
  %216 = vmatprep.mubr.bf16.mxu0 %v68
  %217 = vmatmul.mubr.bf16.gmra.mrb[0].mxu0 %v67
  %v218 = vpop.f32.mrb[0].mxu0
  %v219 = vadd.f32 0.0, %v218
  %v220 = vpop.f32.mrb[0].mxu0
  %v221 = vpop.f32.mrb[0].mxu0
  %v222 = vpop.f32.mrb[0].mxu0
  %223 = vdwg.mxu0
  %224 = vmatprep.subr.bf16.mxu0 0
  %225 = vmatpush1.bf16.msra.mxu0 %v160
  %226 = vmatprep.subr.bf16.mxu0 0
  %227 = vmatpush1.bf16.msra.mxu0 %v161
  %228 = vmatprep.subr.bf16.mxu0 0
  %229 = vmatpush1.bf16.msra.mxu0 0
  %230 = vmatprep.subr.bf16.mxu0 0
  %231 = vmatpush1.bf16.msra.mxu0 0
  %232 = vmatprep.subr.bf16.mxu0 0
  %233 = vmatpush1.bf16.msra.mxu0 0
  %234 = vmatprep.subr.bf16.mxu0 0
  %235 = vmatpush1.bf16.msra.mxu0 0
  %236 = vmatprep.subr.bf16.mxu0 0
  %237 = vmatpush1.bf16.msra.mxu0 0
  %238 = vmatprep.subr.bf16.mxu0 0
  %239 = vmatpush1.bf16.msra.mxu0 0
  %240 = vmatprep.subr.bf16.mxu0 0
  %241 = vmatpush1.bf16.msra.mxu0 0
  %242 = vmatprep.subr.bf16.mxu0 0
  %243 = vmatpush1.bf16.msra.mxu0 0
  %244 = vmatprep.subr.bf16.mxu0 0
  %245 = vmatpush1.bf16.msra.mxu0 0
  %246 = vmatprep.subr.bf16.mxu0 0
  %247 = vmatpush1.bf16.msra.mxu0 0
  %248 = vmatprep.subr.bf16.mxu0 0
  %249 = vmatpush1.bf16.msra.mxu0 0
  %250 = vmatprep.subr.bf16.mxu0 0
  %251 = vmatpush1.bf16.msra.mxu0 0
  %252 = vmatprep.subr.bf16.mxu0 0
  %253 = vmatpush1.bf16.msra.mxu0 0
  %254 = vmatprep.subr.bf16.mxu0 0
  %255 = vmatpush1.bf16.msra.mxu0 0
  %256 = vmatprep.mubr.bf16.mxu0 0
  %257 = vmatmul.mubr.bf16.gmra.mrb[0].mxu0 %v182
  %v258 = vpop.f32.mrb[0].mxu0
  %v259 = vadd.f32 %v219, %v258
  %v260 = vpop.f32.mrb[0].mxu0
  %v261 = vpop.f32.mrb[0].mxu0
  %v262 = vpop.f32.mrb[0].mxu0
  %263 = vdwg.mxu0
  %v264 = vadd.f32 %v23, %v259
  %265 = vst [vmem:[#allocation2] sm:$0xff] %v264
  // Predicated region
  $region22: #{_lambda_.18} parent=0 // pred_check
    %p266 = pneg %p18
  $region23: #{_lambda_.18} parent=0 // pred_check_branch
    %268 = sbr.rel (%p266) target = $region25
  $region24: #{_lambda_.18} parent=0 // pred_region
    %v269 = vld [vmem:[#allocation2] sm:$0xff]
    %v270 = vld [vmem:[%s2] sm:$0x1]
    %v272 = vlaneseq
    %v273 = vshrl.u32 %v272, 7
    %v274 = vsub.s32 0, %v273
    %v275 = vrot.slane %v270, %v274
    %v277 = vmul.f32 %v269, %v275
    %v278 = vld [vmem:[%s3] sm:$0x1]
    %v280 = vlaneseq
    %v281 = vshrl.u32 %v280, 7
    %v282 = vsub.s32 0, %v281
    %v283 = vrot.slane %v278, %v282
    %v285 = vadd.f32 %v277, %v283
    %v286 = vmax.f32 %v285, 0.0
    %v287 = vpack.c.bf16 %v286, %v286
    %288 = vst [vmem:[%s4] sm:$0xf] %v287
  $region25: #{_lambda_.18} parent=0 // pred_fallthru
    _
  // Predicated region
  $region26: #{_lambda_.18} parent=0 // pred_check
    _
  $region27: #{_lambda_.18} parent=0 // pred_check_branch
    %290 = sbr.rel (0) target = $region29
  $region28: #{_lambda_.18} parent=0 // pred_region
    _
  $region29: #{_lambda_.18} parent=0 // pred_fallthru
    _
  // Predicated region
  $region30: #{_lambda_.18} parent=0 // pred_check
    _
  $region31: #{_lambda_.18} parent=0 // pred_check_branch
    %292 = sbr.rel (0) target = $region33
  $region32: #{_lambda_.18} parent=0 // pred_region
    _
  $region33: #{_lambda_.18} parent=0 // pred_fallthru
    _

// kernel: _lambda_.19
$region0: #{_lambda_.19}
  #allocation0 [shape = 'u32[]', space=smem, size = 0x4, offset = 0x4, fixed_abs, tag = 'smem constant byte address 0x4 - core index']
  #allocation1 [shape = 'u32[144,128]{1,0:T(1,128)}', space=vmem, size = 0x12000, scoped, tag = 'internal scratch']
  #allocation2 [shape = 'f32[8,128]{1,0:T(8,128)}', space=vmem, size = 0x1000, scoped, tag = 'scratch operand']
  %s0 = inlined_call_operand.vmem [shape: bf16[8,32], index: 0, kind: input, shape index: {}]
  %s1 = inlined_call_operand.vmem [shape: bf16[32,128], index: 1, kind: input, shape index: {}]
  %s2 = inlined_call_operand.vmem [shape: f32[1,128], index: 2, kind: input, shape index: {}]
  %s3 = inlined_call_operand.vmem [shape: f32[1,128], index: 3, kind: input, shape index: {}]
  %s4 = inlined_call_operand.vmem [shape: bf16[8,128], index: 4, kind: output, shape index: {}]
  %s5 = sld [smem:[#allocation0]]
  $region34: #{_lambda_.19} parent=0
    _
  %s7 = ssub.s32 1, %s5
  %s8 = scalar_select 0, %s7, %s5
  // Predicated region
  $region2: #{_lambda_.19} parent=0 // pred_check
    _
  $region3: #{_lambda_.19} parent=0 // pred_check_branch
    %10 = sbr.rel (0) target = $region5
  $region4: #{_lambda_.19} parent=0 // pred_region
    _
  $region5: #{_lambda_.19} parent=0 // pred_fallthru
    _
  // Predicated region
  $region6: #{_lambda_.19} parent=0 // pred_check
    _
  $region7: #{_lambda_.19} parent=0 // pred_check_branch
    %12 = sbr.rel (0) target = $region9
  $region8: #{_lambda_.19} parent=0 // pred_region
    _
  $region9: #{_lambda_.19} parent=0 // pred_fallthru
    _
  // Predicated region
  $region10: #{_lambda_.19} parent=0 // pred_check
    _
  $region11: #{_lambda_.19} parent=0 // pred_check_branch
    %14 = sbr.rel (0) target = $region13
  $region12: #{_lambda_.19} parent=0 // pred_region
    _
  $region13: #{_lambda_.19} parent=0 // pred_fallthru
    _
  // Predicated region
  $region14: #{_lambda_.19} parent=0 // pred_check
    _
  $region15: #{_lambda_.19} parent=0 // pred_check_branch
    %16 = sbr.rel (0) target = $region17
  $region16: #{_lambda_.19} parent=0 // pred_region
    _
  $region17: #{_lambda_.19} parent=0 // pred_fallthru
    _
  %p18 = scmp.eq.s32.totalorder 0, 0
  // Predicated region
  $region18: #{_lambda_.19} parent=0 // pred_check
    %p19 = pneg %p18
  $region19: #{_lambda_.19} parent=0 // pred_check_branch
    %21 = sbr.rel (%p19) target = $region21
  $region20: #{_lambda_.19} parent=0 // pred_region
    %22 = vst [vmem:[#allocation2] sm:$0xff] 0.0
  $region21: #{_lambda_.19} parent=0 // pred_fallthru
    _
  %v23 = vld [vmem:[#allocation2] sm:$0xff]
  %v24 = vld [vmem:[%s0] sm:$0xf]
  %v25 = vld [vmem:[%s1] sm:$0xf]
  %v26 = vld [vmem:[%s1 + $0x4] sm:$0xf]
  %v27 = vld [vmem:[%s1 + $0x8] sm:$0xf]
  %v28 = vld [vmem:[%s1 + $0xc] sm:$0xf]
  %v33 = vunpack.c.l.b16 %v25
  %v34 = vunpack.c.l.b16 %v26
  %v35 = vunpack.c.l.b16 %v27
  %v36 = vunpack.c.l.b16 %v28
  %v37 = vpack.c.b16 %v34, %v33
  %v38 = vpack.c.b16 %v36, %v35
  %vm41 = vcmask 261120
  %v43 = vsel %vm41, %v24, 0
  %45 = vmatprep.subr.bf16.mxu0 0
  %46 = vmatpush1.bf16.msra.mxu0 %v37
  %47 = vmatprep.subr.bf16.mxu0 0
  %48 = vmatpush1.bf16.msra.mxu0 %v38
  %49 = vmatprep.subr.bf16.mxu0 0
  %50 = vmatpush1.bf16.msra.mxu0 0
  %51 = vmatprep.subr.bf16.mxu0 0
  %52 = vmatpush1.bf16.msra.mxu0 0
  %53 = vmatprep.subr.bf16.mxu0 0
  %54 = vmatpush1.bf16.msra.mxu0 0
  %55 = vmatprep.subr.bf16.mxu0 0
  %56 = vmatpush1.bf16.msra.mxu0 0
  %57 = vmatprep.subr.bf16.mxu0 0
  %58 = vmatpush1.bf16.msra.mxu0 0
  %59 = vmatprep.subr.bf16.mxu0 0
  %60 = vmatpush1.bf16.msra.mxu0 0
  %61 = vmatprep.subr.bf16.mxu0 0
  %62 = vmatpush1.bf16.msra.mxu0 0
  %63 = vmatprep.subr.bf16.mxu0 0
  %64 = vmatpush1.bf16.msra.mxu0 0
  %65 = vmatprep.subr.bf16.mxu0 0
  %66 = vmatpush1.bf16.msra.mxu0 0
  %67 = vmatprep.subr.bf16.mxu0 0
  %68 = vmatpush1.bf16.msra.mxu0 0
  %69 = vmatprep.subr.bf16.mxu0 0
  %70 = vmatpush1.bf16.msra.mxu0 0
  %71 = vmatprep.subr.bf16.mxu0 0
  %72 = vmatpush1.bf16.msra.mxu0 0
  %73 = vmatprep.subr.bf16.mxu0 0
  %74 = vmatpush1.bf16.msra.mxu0 0
  %75 = vmatprep.subr.bf16.mxu0 0
  %76 = vmatpush1.bf16.msra.mxu0 0
  %77 = vmatprep.mubr.bf16.mxu0 0
  %78 = vmatmul.mubr.bf16.gmra.mrb[0].mxu0 %v43
  %v79 = vpop.f32.mrb[0].mxu0
  %v80 = vadd.f32 0.0, %v79
  %v81 = vpop.f32.mrb[0].mxu0
  %v82 = vpop.f32.mrb[0].mxu0
  %v83 = vpop.f32.mrb[0].mxu0
  %84 = vdwg.mxu0
  %v85 = vadd.f32 %v23, %v80
  %86 = vst [vmem:[#allocation2] sm:$0xff] %v85
  // Predicated region
  $region22: #{_lambda_.19} parent=0 // pred_check
    %p87 = pneg %p18
  $region23: #{_lambda_.19} parent=0 // pred_check_branch
    %89 = sbr.rel (%p87) target = $region25
  $region24: #{_lambda_.19} parent=0 // pred_region
    %v90 = vld [vmem:[#allocation2] sm:$0xff]
    %v91 = vld [vmem:[%s2] sm:$0x1]
    %v93 = vlaneseq
    %v94 = vshrl.u32 %v93, 7
    %v95 = vsub.s32 0, %v94
    %v96 = vrot.slane %v91, %v95
    %v98 = vmul.f32 %v90, %v96
    %v99 = vld [vmem:[%s3] sm:$0x1]
    %v101 = vlaneseq
    %v102 = vshrl.u32 %v101, 7
    %v103 = vsub.s32 0, %v102
    %v104 = vrot.slane %v99, %v103
    %v106 = vadd.f32 %v98, %v104
    %v107 = vpack.c.bf16 %v106, %v106
    %108 = vst [vmem:[%s4] sm:$0xf] %v107
  $region25: #{_lambda_.19} parent=0 // pred_fallthru
    _
  // Predicated region
  $region26: #{_lambda_.19} parent=0 // pred_check
    _
  $region27: #{_lambda_.19} parent=0 // pred_check_branch
    %110 = sbr.rel (0) target = $region29
  $region28: #{_lambda_.19} parent=0 // pred_region
    _
  $region29: #{_lambda_.19} parent=0 // pred_fallthru
    _
  // Predicated region
  $region30: #{_lambda_.19} parent=0 // pred_check
    _
  $region31: #{_lambda_.19} parent=0 // pred_check_branch
    %112 = sbr.rel (0) target = $region33
  $region32: #{_lambda_.19} parent=0 // pred_region
    _
  $region33: #{_lambda_.19} parent=0 // pred_fallthru
    _

// kernel: _lambda_.20
$region0: #{_lambda_.20}
  #allocation0 [shape = 'u32[]', space=smem, size = 0x4, offset = 0x4, fixed_abs, tag = 'smem constant byte address 0x4 - core index']
  #allocation1 [shape = 'u32[144,128]{1,0:T(1,128)}', space=vmem, size = 0x12000, scoped, tag = 'internal scratch']
  #allocation2 [shape = 'f32[8,128]{1,0:T(8,128)}', space=vmem, size = 0x1000, scoped, tag = 'scratch operand']
  %s0 = inlined_call_operand.vmem [shape: bf16[8,576], index: 0, kind: input, shape index: {}]
  %s1 = inlined_call_operand.vmem [shape: bf16[576,128], index: 1, kind: input, shape index: {}]
  %s2 = inlined_call_operand.vmem [shape: f32[1,128], index: 2, kind: input, shape index: {}]
  %s3 = inlined_call_operand.vmem [shape: f32[1,128], index: 3, kind: input, shape index: {}]
  %s4 = inlined_call_operand.vmem [shape: bf16[8,128], index: 4, kind: input, shape index: {}]
  %s5 = inlined_call_operand.vmem [shape: bf16[8,128], index: 5, kind: output, shape index: {}]
  %s6 = sld [smem:[#allocation0]]
  $region38: #{_lambda_.20} parent=0
    _
  %s8 = ssub.s32 1, %s6
  %s9 = scalar_select 0, %s8, %s6
  // Predicated region
  $region2: #{_lambda_.20} parent=0 // pred_check
    _
  $region3: #{_lambda_.20} parent=0 // pred_check_branch
    %11 = sbr.rel (0) target = $region5
  $region4: #{_lambda_.20} parent=0 // pred_region
    _
  $region5: #{_lambda_.20} parent=0 // pred_fallthru
    _
  // Predicated region
  $region6: #{_lambda_.20} parent=0 // pred_check
    _
  $region7: #{_lambda_.20} parent=0 // pred_check_branch
    %13 = sbr.rel (0) target = $region9
  $region8: #{_lambda_.20} parent=0 // pred_region
    _
  $region9: #{_lambda_.20} parent=0 // pred_fallthru
    _
  // Predicated region
  $region10: #{_lambda_.20} parent=0 // pred_check
    _
  $region11: #{_lambda_.20} parent=0 // pred_check_branch
    %15 = sbr.rel (0) target = $region13
  $region12: #{_lambda_.20} parent=0 // pred_region
    _
  $region13: #{_lambda_.20} parent=0 // pred_fallthru
    _
  // Predicated region
  $region14: #{_lambda_.20} parent=0 // pred_check
    _
  $region15: #{_lambda_.20} parent=0 // pred_check_branch
    %17 = sbr.rel (0) target = $region17
  $region16: #{_lambda_.20} parent=0 // pred_region
    _
  $region17: #{_lambda_.20} parent=0 // pred_fallthru
    _
  // Predicated region
  $region18: #{_lambda_.20} parent=0 // pred_check
    _
  $region19: #{_lambda_.20} parent=0 // pred_check_branch
    %19 = sbr.rel (0) target = $region21
  $region20: #{_lambda_.20} parent=0 // pred_region
    _
  $region21: #{_lambda_.20} parent=0 // pred_fallthru
    _
  %p21 = scmp.eq.s32.totalorder 0, 0
  // Predicated region
  $region22: #{_lambda_.20} parent=0 // pred_check
    %p22 = pneg %p21
  $region23: #{_lambda_.20} parent=0 // pred_check_branch
    %24 = sbr.rel (%p22) target = $region25
  $region24: #{_lambda_.20} parent=0 // pred_region
    %25 = vst [vmem:[#allocation2] sm:$0xff] 0.0
  $region25: #{_lambda_.20} parent=0 // pred_fallthru
    _
  %v26 = vld [vmem:[#allocation2] sm:$0xff]
  %v27 = vld [vmem:[%s0] sm:$0xff]
  %v28 = vld [vmem:[%s0 + $0x8] sm:$0xff]
  %v29 = vld [vmem:[%s0 + $0x10] sm:$0xf]
  %v30 = vld [vmem:[%s1] sm:$0xf]
  %v31 = vld [vmem:[%s1 + $0x4] sm:$0xf]
  %v32 = vld [vmem:[%s1 + $0x8] sm:$0xf]
  %v33 = vld [vmem:[%s1 + $0xc] sm:$0xf]
  %v34 = vld [vmem:[%s1 + $0x10] sm:$0xf]
  %v35 = vld [vmem:[%s1 + $0x14] sm:$0xf]
  %v36 = vld [vmem:[%s1 + $0x18] sm:$0xf]
  %v37 = vld [vmem:[%s1 + $0x1c] sm:$0xf]
  %v38 = vld [vmem:[%s1 + $0x20] sm:$0xf]
  %v39 = vld [vmem:[%s1 + $0x24] sm:$0xf]
  %v40 = vld [vmem:[%s1 + $0x28] sm:$0xf]
  %v41 = vld [vmem:[%s1 + $0x2c] sm:$0xf]
  %v42 = vld [vmem:[%s1 + $0x30] sm:$0xf]
  %v43 = vld [vmem:[%s1 + $0x34] sm:$0xf]
  %v44 = vld [vmem:[%s1 + $0x38] sm:$0xf]
  %v45 = vld [vmem:[%s1 + $0x3c] sm:$0xf]
  %v46 = vld [vmem:[%s1 + $0x40] sm:$0xf]
  %v47 = vld [vmem:[%s1 + $0x44] sm:$0xf]
  %v48 = vld [vmem:[%s1 + $0x48] sm:$0xf]
  %v49 = vld [vmem:[%s1 + $0x4c] sm:$0xf]
  %v50 = vld [vmem:[%s1 + $0x50] sm:$0xf]
  %v51 = vld [vmem:[%s1 + $0x54] sm:$0xf]
  %v52 = vld [vmem:[%s1 + $0x58] sm:$0xf]
  %v53 = vld [vmem:[%s1 + $0x5c] sm:$0xf]
  %v54 = vld [vmem:[%s1 + $0x60] sm:$0xf]
  %v55 = vld [vmem:[%s1 + $0x64] sm:$0xf]
  %v56 = vld [vmem:[%s1 + $0x68] sm:$0xf]
  %v57 = vld [vmem:[%s1 + $0x6c] sm:$0xf]
  %v58 = vld [vmem:[%s1 + $0x70] sm:$0xf]
  %v59 = vld [vmem:[%s1 + $0x74] sm:$0xf]
  %v60 = vld [vmem:[%s1 + $0x78] sm:$0xf]
  %v61 = vld [vmem:[%s1 + $0x7c] sm:$0xf]
  %v62 = vld [vmem:[%s1 + $0x80] sm:$0xf]
  %v63 = vld [vmem:[%s1 + $0x84] sm:$0xf]
  %v64 = vld [vmem:[%s1 + $0x88] sm:$0xf]
  %v65 = vld [vmem:[%s1 + $0x8c] sm:$0xf]
  %v66 = vld [vmem:[%s1 + $0x90] sm:$0xf]
  %v67 = vld [vmem:[%s1 + $0x94] sm:$0xf]
  %v68 = vld [vmem:[%s1 + $0x98] sm:$0xf]
  %v69 = vld [vmem:[%s1 + $0x9c] sm:$0xf]
  %v70 = vld [vmem:[%s1 + $0xa0] sm:$0xf]
  %v71 = vld [vmem:[%s1 + $0xa4] sm:$0xf]
  %v72 = vld [vmem:[%s1 + $0xa8] sm:$0xf]
  %v73 = vld [vmem:[%s1 + $0xac] sm:$0xf]
  %v74 = vld [vmem:[%s1 + $0xb0] sm:$0xf]
  %v75 = vld [vmem:[%s1 + $0xb4] sm:$0xf]
  %v76 = vld [vmem:[%s1 + $0xb8] sm:$0xf]
  %v77 = vld [vmem:[%s1 + $0xbc] sm:$0xf]
  %v78 = vld [vmem:[%s1 + $0xc0] sm:$0xf]
  %v79 = vld [vmem:[%s1 + $0xc4] sm:$0xf]
  %v80 = vld [vmem:[%s1 + $0xc8] sm:$0xf]
  %v81 = vld [vmem:[%s1 + $0xcc] sm:$0xf]
  %v82 = vld [vmem:[%s1 + $0xd0] sm:$0xf]
  %v83 = vld [vmem:[%s1 + $0xd4] sm:$0xf]
  %v84 = vld [vmem:[%s1 + $0xd8] sm:$0xf]
  %v85 = vld [vmem:[%s1 + $0xdc] sm:$0xf]
  %v86 = vld [vmem:[%s1 + $0xe0] sm:$0xf]
  %v87 = vld [vmem:[%s1 + $0xe4] sm:$0xf]
  %v88 = vld [vmem:[%s1 + $0xe8] sm:$0xf]
  %v89 = vld [vmem:[%s1 + $0xec] sm:$0xf]
  %v90 = vld [vmem:[%s1 + $0xf0] sm:$0xf]
  %v91 = vld [vmem:[%s1 + $0xf4] sm:$0xf]
  %v92 = vld [vmem:[%s1 + $0xf8] sm:$0xf]
  %v93 = vld [vmem:[%s1 + $0xfc] sm:$0xf]
  %v94 = vld [vmem:[%s1 + $0x100] sm:$0xf]
  %v95 = vld [vmem:[%s1 + $0x104] sm:$0xf]
  %v96 = vld [vmem:[%s1 + $0x108] sm:$0xf]
  %v97 = vld [vmem:[%s1 + $0x10c] sm:$0xf]
  %v98 = vld [vmem:[%s1 + $0x110] sm:$0xf]
  %v99 = vld [vmem:[%s1 + $0x114] sm:$0xf]
  %v100 = vld [vmem:[%s1 + $0x118] sm:$0xf]
  %v101 = vld [vmem:[%s1 + $0x11c] sm:$0xf]
  %v105 = vunpack.c.l.b16 %v27
  %v106 = vunpack.c.h.b16 %v27
  %v107 = vunpack.c.l.b16 %v28
  %v108 = vunpack.c.h.b16 %v28
  %v109 = vunpack.c.l.b16 %v29
  %v110 = vpack.c.b16 %v105, %v105
  %v111 = vpack.c.b16 %v106, %v106
  %v112 = vpack.c.b16 %v107, %v107
  %v113 = vpack.c.b16 %v108, %v108
  %v114 = vpack.c.b16 %v109, %v109
  %v191 = vunpack.c.l.b16 %v30
  %v192 = vunpack.c.l.b16 %v31
  %v193 = vunpack.c.l.b16 %v32
  %v194 = vunpack.c.l.b16 %v33
  %v195 = vunpack.c.l.b16 %v34
  %v196 = vunpack.c.l.b16 %v35
  %v197 = vunpack.c.l.b16 %v36
  %v198 = vunpack.c.l.b16 %v37
  %v199 = vunpack.c.l.b16 %v38
  %v200 = vunpack.c.l.b16 %v39
  %v201 = vunpack.c.l.b16 %v40
  %v202 = vunpack.c.l.b16 %v41
  %v203 = vunpack.c.l.b16 %v42
  %v204 = vunpack.c.l.b16 %v43
  %v205 = vunpack.c.l.b16 %v44
  %v206 = vunpack.c.l.b16 %v45
  %v207 = vunpack.c.l.b16 %v46
  %v208 = vunpack.c.l.b16 %v47
  %v209 = vunpack.c.l.b16 %v48
  %v210 = vunpack.c.l.b16 %v49
  %v211 = vunpack.c.l.b16 %v50
  %v212 = vunpack.c.l.b16 %v51
  %v213 = vunpack.c.l.b16 %v52
  %v214 = vunpack.c.l.b16 %v53
  %v215 = vunpack.c.l.b16 %v54
  %v216 = vunpack.c.l.b16 %v55
  %v217 = vunpack.c.l.b16 %v56
  %v218 = vunpack.c.l.b16 %v57
  %v219 = vunpack.c.l.b16 %v58
  %v220 = vunpack.c.l.b16 %v59
  %v221 = vunpack.c.l.b16 %v60
  %v222 = vunpack.c.l.b16 %v61
  %v223 = vunpack.c.l.b16 %v62
  %v224 = vunpack.c.l.b16 %v63
  %v225 = vunpack.c.l.b16 %v64
  %v226 = vunpack.c.l.b16 %v65
  %v227 = vunpack.c.l.b16 %v66
  %v228 = vunpack.c.l.b16 %v67
  %v229 = vunpack.c.l.b16 %v68
  %v230 = vunpack.c.l.b16 %v69
  %v231 = vunpack.c.l.b16 %v70
  %v232 = vunpack.c.l.b16 %v71
  %v233 = vunpack.c.l.b16 %v72
  %v234 = vunpack.c.l.b16 %v73
  %v235 = vunpack.c.l.b16 %v74
  %v236 = vunpack.c.l.b16 %v75
  %v237 = vunpack.c.l.b16 %v76
  %v238 = vunpack.c.l.b16 %v77
  %v239 = vunpack.c.l.b16 %v78
  %v240 = vunpack.c.l.b16 %v79
  %v241 = vunpack.c.l.b16 %v80
  %v242 = vunpack.c.l.b16 %v81
  %v243 = vunpack.c.l.b16 %v82
  %v244 = vunpack.c.l.b16 %v83
  %v245 = vunpack.c.l.b16 %v84
  %v246 = vunpack.c.l.b16 %v85
  %v247 = vunpack.c.l.b16 %v86
  %v248 = vunpack.c.l.b16 %v87
  %v249 = vunpack.c.l.b16 %v88
  %v250 = vunpack.c.l.b16 %v89
  %v251 = vunpack.c.l.b16 %v90
  %v252 = vunpack.c.l.b16 %v91
  %v253 = vunpack.c.l.b16 %v92
  %v254 = vunpack.c.l.b16 %v93
  %v255 = vunpack.c.l.b16 %v94
  %v256 = vunpack.c.l.b16 %v95
  %v257 = vunpack.c.l.b16 %v96
  %v258 = vunpack.c.l.b16 %v97
  %v259 = vunpack.c.l.b16 %v98
  %v260 = vunpack.c.l.b16 %v99
  %v261 = vunpack.c.l.b16 %v100
  %v262 = vunpack.c.l.b16 %v101
  %v263 = vpack.c.b16 %v192, %v191
  %v264 = vpack.c.b16 %v194, %v193
  %v265 = vpack.c.b16 %v196, %v195
  %v266 = vpack.c.b16 %v198, %v197
  %v267 = vpack.c.b16 %v200, %v199
  %v268 = vpack.c.b16 %v202, %v201
  %v269 = vpack.c.b16 %v204, %v203
  %v270 = vpack.c.b16 %v206, %v205
  %v271 = vpack.c.b16 %v208, %v207
  %v272 = vpack.c.b16 %v210, %v209
  %v273 = vpack.c.b16 %v212, %v211
  %v274 = vpack.c.b16 %v214, %v213
  %v275 = vpack.c.b16 %v216, %v215
  %v276 = vpack.c.b16 %v218, %v217
  %v277 = vpack.c.b16 %v220, %v219
  %v278 = vpack.c.b16 %v222, %v221
  %v279 = vpack.c.b16 %v224, %v223
  %v280 = vpack.c.b16 %v226, %v225
  %v281 = vpack.c.b16 %v228, %v227
  %v282 = vpack.c.b16 %v230, %v229
  %v283 = vpack.c.b16 %v232, %v231
  %v284 = vpack.c.b16 %v234, %v233
  %v285 = vpack.c.b16 %v236, %v235
  %v286 = vpack.c.b16 %v238, %v237
  %v287 = vpack.c.b16 %v240, %v239
  %v288 = vpack.c.b16 %v242, %v241
  %v289 = vpack.c.b16 %v244, %v243
  %v290 = vpack.c.b16 %v246, %v245
  %v291 = vpack.c.b16 %v248, %v247
  %v292 = vpack.c.b16 %v250, %v249
  %v293 = vpack.c.b16 %v252, %v251
  %v294 = vpack.c.b16 %v254, %v253
  %v295 = vpack.c.b16 %v256, %v255
  %v296 = vpack.c.b16 %v258, %v257
  %v297 = vpack.c.b16 %v260, %v259
  %v298 = vpack.c.b16 %v262, %v261
  %vm335 = vcmask 523264
  %v337 = vsel %vm335, %v114, 0
  %339 = vmatprep.subr.bf16.mxu0 0
  %340 = vmatpush1.bf16.msra.mxu0 %v263
  %341 = vmatprep.subr.bf16.mxu0 0
  %342 = vmatpush1.bf16.msra.mxu0 %v264
  %343 = vmatprep.subr.bf16.mxu0 0
  %344 = vmatpush1.bf16.msra.mxu0 %v265
  %345 = vmatprep.subr.bf16.mxu0 0
  %346 = vmatpush1.bf16.msra.mxu0 %v266
  %347 = vmatprep.subr.bf16.mxu0 0
  %348 = vmatpush1.bf16.msra.mxu0 %v267
  %349 = vmatprep.subr.bf16.mxu0 0
  %350 = vmatpush1.bf16.msra.mxu0 %v268
  %351 = vmatprep.subr.bf16.mxu0 0
  %352 = vmatpush1.bf16.msra.mxu0 %v269
  %353 = vmatprep.subr.bf16.mxu0 0
  %354 = vmatpush1.bf16.msra.mxu0 %v270
  %355 = vmatprep.subr.bf16.mxu0 0
  %356 = vmatpush1.bf16.msra.mxu0 %v271
  %357 = vmatprep.subr.bf16.mxu0 0
  %358 = vmatpush1.bf16.msra.mxu0 %v272
  %359 = vmatprep.subr.bf16.mxu0 0
  %360 = vmatpush1.bf16.msra.mxu0 %v273
  %361 = vmatprep.subr.bf16.mxu0 0
  %362 = vmatpush1.bf16.msra.mxu0 %v274
  %363 = vmatprep.subr.bf16.mxu0 0
  %364 = vmatpush1.bf16.msra.mxu0 %v275
  %365 = vmatprep.subr.bf16.mxu0 0
  %366 = vmatpush1.bf16.msra.mxu0 %v276
  %367 = vmatprep.subr.bf16.mxu0 0
  %368 = vmatpush1.bf16.msra.mxu0 %v277
  %369 = vmatprep.subr.bf16.mxu0 0
  %370 = vmatpush1.bf16.msra.mxu0 %v278
  %371 = vmatprep.mubr.bf16.mxu0 %v111
  %372 = vmatmul.mubr.bf16.gmra.mrb[0].mxu0 %v110
  %v373 = vpop.f32.mrb[0].mxu0
  %v374 = vadd.f32 0.0, %v373
  %v375 = vpop.f32.mrb[0].mxu0
  %v376 = vpop.f32.mrb[0].mxu0
  %v377 = vpop.f32.mrb[0].mxu0
  %378 = vdwg.mxu0
  %379 = vmatprep.subr.bf16.mxu0 0
  %380 = vmatpush1.bf16.msra.mxu0 %v279
  %381 = vmatprep.subr.bf16.mxu0 0
  %382 = vmatpush1.bf16.msra.mxu0 %v280
  %383 = vmatprep.subr.bf16.mxu0 0
  %384 = vmatpush1.bf16.msra.mxu0 %v281
  %385 = vmatprep.subr.bf16.mxu0 0
  %386 = vmatpush1.bf16.msra.mxu0 %v282
  %387 = vmatprep.subr.bf16.mxu0 0
  %388 = vmatpush1.bf16.msra.mxu0 %v283
  %389 = vmatprep.subr.bf16.mxu0 0
  %390 = vmatpush1.bf16.msra.mxu0 %v284
  %391 = vmatprep.subr.bf16.mxu0 0
  %392 = vmatpush1.bf16.msra.mxu0 %v285
  %393 = vmatprep.subr.bf16.mxu0 0
  %394 = vmatpush1.bf16.msra.mxu0 %v286
  %395 = vmatprep.subr.bf16.mxu0 0
  %396 = vmatpush1.bf16.msra.mxu0 %v287
  %397 = vmatprep.subr.bf16.mxu0 0
  %398 = vmatpush1.bf16.msra.mxu0 %v288
  %399 = vmatprep.subr.bf16.mxu0 0
  %400 = vmatpush1.bf16.msra.mxu0 %v289
  %401 = vmatprep.subr.bf16.mxu0 0
  %402 = vmatpush1.bf16.msra.mxu0 %v290
  %403 = vmatprep.subr.bf16.mxu0 0
  %404 = vmatpush1.bf16.msra.mxu0 %v291
  %405 = vmatprep.subr.bf16.mxu0 0
  %406 = vmatpush1.bf16.msra.mxu0 %v292
  %407 = vmatprep.subr.bf16.mxu0 0
  %408 = vmatpush1.bf16.msra.mxu0 %v293
  %409 = vmatprep.subr.bf16.mxu0 0
  %410 = vmatpush1.bf16.msra.mxu0 %v294
  %411 = vmatprep.mubr.bf16.mxu0 %v113
  %412 = vmatmul.mubr.bf16.gmra.mrb[0].mxu0 %v112
  %v413 = vpop.f32.mrb[0].mxu0
  %v414 = vadd.f32 %v374, %v413
  %v415 = vpop.f32.mrb[0].mxu0
  %v416 = vpop.f32.mrb[0].mxu0
  %v417 = vpop.f32.mrb[0].mxu0
  %418 = vdwg.mxu0
  %419 = vmatprep.subr.bf16.mxu0 0
  %420 = vmatpush1.bf16.msra.mxu0 %v295
  %421 = vmatprep.subr.bf16.mxu0 0
  %422 = vmatpush1.bf16.msra.mxu0 %v296
  %423 = vmatprep.subr.bf16.mxu0 0
  %424 = vmatpush1.bf16.msra.mxu0 %v297
  %425 = vmatprep.subr.bf16.mxu0 0
  %426 = vmatpush1.bf16.msra.mxu0 %v298
  %427 = vmatprep.subr.bf16.mxu0 0
  %428 = vmatpush1.bf16.msra.mxu0 0
  %429 = vmatprep.subr.bf16.mxu0 0
  %430 = vmatpush1.bf16.msra.mxu0 0
  %431 = vmatprep.subr.bf16.mxu0 0
  %432 = vmatpush1.bf16.msra.mxu0 0
  %433 = vmatprep.subr.bf16.mxu0 0
  %434 = vmatpush1.bf16.msra.mxu0 0
  %435 = vmatprep.subr.bf16.mxu0 0
  %436 = vmatpush1.bf16.msra.mxu0 0
  %437 = vmatprep.subr.bf16.mxu0 0
  %438 = vmatpush1.bf16.msra.mxu0 0
  %439 = vmatprep.subr.bf16.mxu0 0
  %440 = vmatpush1.bf16.msra.mxu0 0
  %441 = vmatprep.subr.bf16.mxu0 0
  %442 = vmatpush1.bf16.msra.mxu0 0
  %443 = vmatprep.subr.bf16.mxu0 0
  %444 = vmatpush1.bf16.msra.mxu0 0
  %445 = vmatprep.subr.bf16.mxu0 0
  %446 = vmatpush1.bf16.msra.mxu0 0
  %447 = vmatprep.subr.bf16.mxu0 0
  %448 = vmatpush1.bf16.msra.mxu0 0
  %449 = vmatprep.subr.bf16.mxu0 0
  %450 = vmatpush1.bf16.msra.mxu0 0
  %451 = vmatprep.mubr.bf16.mxu0 0
  %452 = vmatmul.mubr.bf16.gmra.mrb[0].mxu0 %v337
  %v453 = vpop.f32.mrb[0].mxu0
  %v454 = vadd.f32 %v414, %v453
  %v455 = vpop.f32.mrb[0].mxu0
  %v456 = vpop.f32.mrb[0].mxu0
  %v457 = vpop.f32.mrb[0].mxu0
  %458 = vdwg.mxu0
  %v459 = vadd.f32 %v26, %v454
  %460 = vst [vmem:[#allocation2] sm:$0xff] %v459
  // Predicated region
  $region26: #{_lambda_.20} parent=0 // pred_check
    %p461 = pneg %p21
  $region27: #{_lambda_.20} parent=0 // pred_check_branch
    %463 = sbr.rel (%p461) target = $region29
  $region28: #{_lambda_.20} parent=0 // pred_region
    %v464 = vld [vmem:[#allocation2] sm:$0xff]
    %v465 = vld [vmem:[%s2] sm:$0x1]
    %v467 = vlaneseq
    %v468 = vshrl.u32 %v467, 7
    %v469 = vsub.s32 0, %v468
    %v470 = vrot.slane %v465, %v469
    %v472 = vmul.f32 %v464, %v470
    %v473 = vld [vmem:[%s3] sm:$0x1]
    %v475 = vlaneseq
    %v476 = vshrl.u32 %v475, 7
    %v477 = vsub.s32 0, %v476
    %v478 = vrot.slane %v473, %v477
    %v480 = vadd.f32 %v472, %v478
    %v481 = vld [vmem:[%s4] sm:$0xf]
    %v482 = vunpack.c.l.bf16 %v481
    %v483 = vadd.f32 %v480, %v482
    %v484 = vmax.f32 %v483, 0.0
    %v485 = vpack.c.bf16 %v484, %v484
    %486 = vst [vmem:[%s5] sm:$0xf] %v485
  $region29: #{_lambda_.20} parent=0 // pred_fallthru
    _
  // Predicated region
  $region30: #{_lambda_.20} parent=0 // pred_check
    _
  $region31: #{_lambda_.20} parent=0 // pred_check_branch
    %488 = sbr.rel (0) target = $region33
  $region32: #{_lambda_.20} parent=0 // pred_region
    _
  $region33: #{_lambda_.20} parent=0 // pred_fallthru
    _
  // Predicated region
  $region34: #{_lambda_.20} parent=0 // pred_check
    _
  $region35: #{_lambda_.20} parent=0 // pred_check_branch
    %490 = sbr.rel (0) target = $region37
  $region36: #{_lambda_.20} parent=0 // pred_region
    _
  $region37: #{_lambda_.20} parent=0 // pred_fallthru
    _

// kernel: _lambda_.21
$region0: #{_lambda_.21}
  #allocation0 [shape = 'u32[]', space=smem, size = 0x4, offset = 0x4, fixed_abs, tag = 'smem constant byte address 0x4 - core index']
  #allocation1 [shape = 'u32[144,128]{1,0:T(1,128)}', space=vmem, size = 0x12000, scoped, tag = 'internal scratch']
  %s0 = inlined_call_operand.vmem [shape: bf16[2,4,128], index: 0, kind: input, shape index: {}]
  %s1 = inlined_call_operand.vmem [shape: bf16[128,128], index: 1, kind: input, shape index: {}]
  %s2 = inlined_call_operand.vmem [shape: f32[1,128], index: 2, kind: input, shape index: {}]
  %s3 = inlined_call_operand.hbm [shape: f32[2,128], index: 3, kind: output, shape index: {0}]
  %s4 = inlined_call_operand.hbm [shape: f32[2,128], index: 4, kind: output, shape index: {1}]
  %5 = xla_tuple %s3, %s4
  %s6 = sld [smem:[#allocation0]]
  $region30: #{_lambda_.21} parent=0
    _
  %s8 = ssub.s32 1, %s6
  %s9 = scalar_select 0, %s8, %s6
  $region1: #{_lambda_.21} parent=0
    #allocation2 [shape = 'u8[1024]{0}', space=vmem, size = 0x400, scoped, tag = 'output window, operand 0, single buffered']
    #allocation3 [shape = 's32[1]{0}', space=sflag, size = 0x4, scoped, tag = 'scoped memory for _lambda_.21']
    #allocation4 [shape = 'u8[1024]{0}', space=vmem, size = 0x400, scoped, tag = 'output window, operand 1, single buffered']
    #allocation5 [shape = 's32[1]{0}', space=sflag, size = 0x4, scoped, tag = 'scoped memory for _lambda_.21']
    %10 = vsyncpa [#allocation3], 0
    %11 = vsyncpa [#allocation5], 0
    // Predicated region
    $region2: #{_lambda_.21} parent=1 // pred_check
      _
    $region3: #{_lambda_.21} parent=1 // pred_check_branch
      %13 = sbr.rel (0) target = $region5
    $region4: #{_lambda_.21} parent=1 // pred_region
      _
    $region5: #{_lambda_.21} parent=1 // pred_fallthru
      _
    // Predicated region
    $region6: #{_lambda_.21} parent=1 // pred_check
      _
    $region7: #{_lambda_.21} parent=1 // pred_check_branch
      %15 = sbr.rel (0) target = $region9
    $region8: #{_lambda_.21} parent=1 // pred_region
      _
    $region9: #{_lambda_.21} parent=1 // pred_fallthru
      _
    // Predicated region
    $region10: #{_lambda_.21} parent=1 // pred_check
      _
    $region11: #{_lambda_.21} parent=1 // pred_check_branch
      %17 = sbr.rel (0) target = $region13
    $region12: #{_lambda_.21} parent=1 // pred_region
      _
    $region13: #{_lambda_.21} parent=1 // pred_fallthru
      _
    %v19 = vld [vmem:[%s0] sm:$0x3]
    %v20 = vld [vmem:[%s0 + $0x2] sm:$0x3]
    %v21 = vunpack.c.l.bf16 %v19
    %v22 = vunpack.c.l.bf16 %v20
    %vm23 = vcmask 1043456
    %v24 = vsel %vm23, %v21, 0.0
    %v25 = vrot.slane %v24, 4
    %v26 = vadd.f32 %v24, %v25
    %v27 = vrot.slane %v26, 2
    %v28 = vadd.f32 %v26, %v27
    %v29 = vrot.slane %v28, 1
    %v30 = vadd.f32 %v28, %v29
    %v31 = vsel %vm23, %v22, 0.0
    %v32 = vrot.slane %v31, 4
    %v33 = vadd.f32 %v31, %v32
    %v34 = vrot.slane %v33, 2
    %v35 = vadd.f32 %v33, %v34
    %v36 = vrot.slane %v35, 1
    %v37 = vadd.f32 %v35, %v36
    %v38 = vmul.f32 %v30, 0.25
    %v39 = vmul.f32 %v37, 0.25
    %vm42 = vcmask 1041409
    %v43 = vsel %vm42, %v39, %v38
    %45 = vst [vmem:[#allocation4] sm:$0x3] %v43
    %v46 = vpack.c.bf16 %v38, %v38
    %v47 = vpack.c.bf16 %v39, %v39
    %v48 = vld [vmem:[%s1] sm:$0xf]
    %v49 = vld [vmem:[%s1 + $0x4] sm:$0xf]
    %v50 = vld [vmem:[%s1 + $0x8] sm:$0xf]
    %v51 = vld [vmem:[%s1 + $0xc] sm:$0xf]
    %v52 = vld [vmem:[%s1 + $0x10] sm:$0xf]
    %v53 = vld [vmem:[%s1 + $0x14] sm:$0xf]
    %v54 = vld [vmem:[%s1 + $0x18] sm:$0xf]
    %v55 = vld [vmem:[%s1 + $0x1c] sm:$0xf]
    %v56 = vld [vmem:[%s1 + $0x20] sm:$0xf]
    %v57 = vld [vmem:[%s1 + $0x24] sm:$0xf]
    %v58 = vld [vmem:[%s1 + $0x28] sm:$0xf]
    %v59 = vld [vmem:[%s1 + $0x2c] sm:$0xf]
    %v60 = vld [vmem:[%s1 + $0x30] sm:$0xf]
    %v61 = vld [vmem:[%s1 + $0x34] sm:$0xf]
    %v62 = vld [vmem:[%s1 + $0x38] sm:$0xf]
    %v63 = vld [vmem:[%s1 + $0x3c] sm:$0xf]
    %v64 = vld [vmem:[%s2] sm:$0x1]
    %v66 = vlaneseq
    %v67 = vshrl.u32 %v66, 7
    %v68 = vsub.s32 0, %v67
    %v69 = vrot.slane %v64, %v68
    %v73 = vunpack.c.l.b16 %v46
    %v74 = vunpack.c.l.b16 %v47
    %v75 = vsel %vm42, %v74, %v73
    %v76 = vpack.c.b16 %v75, %v75
    %v94 = vunpack.c.l.b16 %v48
    %v95 = vunpack.c.l.b16 %v49
    %v96 = vunpack.c.l.b16 %v50
    %v97 = vunpack.c.l.b16 %v51
    %v98 = vunpack.c.l.b16 %v52
    %v99 = vunpack.c.l.b16 %v53
    %v100 = vunpack.c.l.b16 %v54
    %v101 = vunpack.c.l.b16 %v55
    %v102 = vunpack.c.l.b16 %v56
    %v103 = vunpack.c.l.b16 %v57
    %v104 = vunpack.c.l.b16 %v58
    %v105 = vunpack.c.l.b16 %v59
    %v106 = vunpack.c.l.b16 %v60
    %v107 = vunpack.c.l.b16 %v61
    %v108 = vunpack.c.l.b16 %v62
    %v109 = vunpack.c.l.b16 %v63
    %v110 = vpack.c.b16 %v95, %v94
    %v111 = vpack.c.b16 %v97, %v96
    %v112 = vpack.c.b16 %v99, %v98
    %v113 = vpack.c.b16 %v101, %v100
    %v114 = vpack.c.b16 %v103, %v102
    %v115 = vpack.c.b16 %v105, %v104
    %v116 = vpack.c.b16 %v107, %v106
    %v117 = vpack.c.b16 %v109, %v108
    %126 = vmatprep.subr.bf16.mxu0 0
    %127 = vmatpush1.bf16.msra.mxu0 %v110
    %128 = vmatprep.subr.bf16.mxu0 0
    %129 = vmatpush1.bf16.msra.mxu0 %v111
    %130 = vmatprep.subr.bf16.mxu0 0
    %131 = vmatpush1.bf16.msra.mxu0 %v112
    %132 = vmatprep.subr.bf16.mxu0 0
    %133 = vmatpush1.bf16.msra.mxu0 %v113
    %134 = vmatprep.subr.bf16.mxu0 0
    %135 = vmatpush1.bf16.msra.mxu0 %v114
    %136 = vmatprep.subr.bf16.mxu0 0
    %137 = vmatpush1.bf16.msra.mxu0 %v115
    %138 = vmatprep.subr.bf16.mxu0 0
    %139 = vmatpush1.bf16.msra.mxu0 %v116
    %140 = vmatprep.subr.bf16.mxu0 0
    %141 = vmatpush1.bf16.msra.mxu0 %v117
    %142 = vmatprep.subr.bf16.mxu0 0
    %143 = vmatpush1.bf16.msra.mxu0 0
    %144 = vmatprep.subr.bf16.mxu0 0
    %145 = vmatpush1.bf16.msra.mxu0 0
    %146 = vmatprep.subr.bf16.mxu0 0
    %147 = vmatpush1.bf16.msra.mxu0 0
    %148 = vmatprep.subr.bf16.mxu0 0
    %149 = vmatpush1.bf16.msra.mxu0 0
    %150 = vmatprep.subr.bf16.mxu0 0
    %151 = vmatpush1.bf16.msra.mxu0 0
    %152 = vmatprep.subr.bf16.mxu0 0
    %153 = vmatpush1.bf16.msra.mxu0 0
    %154 = vmatprep.subr.bf16.mxu0 0
    %155 = vmatpush1.bf16.msra.mxu0 0
    %156 = vmatprep.subr.bf16.mxu0 0
    %157 = vmatpush1.bf16.msra.mxu0 0
    %158 = vmatprep.mubr.bf16.mxu0 0
    %159 = vmatmul.mubr.bf16.gmra.mrb[0].mxu0 %v76
    %v160 = vpop.f32.mrb[0].mxu0
    %v161 = vadd.f32 %v69, %v160
    %v162 = vpop.f32.mrb[0].mxu0
    %v163 = vpop.f32.mrb[0].mxu0
    %v164 = vpop.f32.mrb[0].mxu0
    %165 = vdwg.mxu0
    %166 = vst [vmem:[#allocation2] sm:$0x3] %v161
    // Predicated region
    $region14: #{_lambda_.21} parent=1 // pred_check
      _
    $region15: #{_lambda_.21} parent=1 // pred_check_branch
      %168 = sbr.rel (0) target = $region17
    $region16: #{_lambda_.21} parent=1 // pred_region
      %s170 = ssub.s32 32, 32
      %171 = vsyncadd [#allocation3], %s170
      %s173 = sshll.u32 [#allocation2], 4
      %s174 = int_to_ptr.vmem [resolvable:$true] %s173
      %176 = dma.vmem_to_hbm [thread:$0]  %s174, 32, %s3, [#allocation3]
    $region17: #{_lambda_.21} parent=1 // pred_fallthru
      _
    // Predicated region
    $region18: #{_lambda_.21} parent=1 // pred_check
      _
    $region19: #{_lambda_.21} parent=1 // pred_check_branch
      %178 = sbr.rel (0) target = $region21
    $region20: #{_lambda_.21} parent=1 // pred_region
      %s180 = ssub.s32 32, 32
      %181 = vsyncadd [#allocation5], %s180
      %s183 = sshll.u32 [#allocation4], 4
      %s184 = int_to_ptr.vmem [resolvable:$true] %s183
      %186 = dma.vmem_to_hbm [thread:$0]  %s184, 32, %s4, [#allocation5]
    $region21: #{_lambda_.21} parent=1 // pred_fallthru
      _
    // Predicated region
    $region22: #{_lambda_.21} parent=1 // pred_check
      _
    $region23: #{_lambda_.21} parent=1 // pred_check_branch
      %188 = sbr.rel (0) target = $region25
    $region24: #{_lambda_.21} parent=1 // pred_region
      %189 = dma.done [#allocation3], 32
    $region25: #{_lambda_.21} parent=1 // pred_fallthru
      _
    // Predicated region
    $region26: #{_lambda_.21} parent=1 // pred_check
      _
    $region27: #{_lambda_.21} parent=1 // pred_check_branch
      %191 = sbr.rel (0) target = $region29
    $region28: #{_lambda_.21} parent=1 // pred_region
      %192 = dma.done [#allocation5], 32
    $region29: #{_lambda_.21} parent=1 // pred_fallthru
      _
    %193 = vsyncpa [#allocation3], 1
    %194 = vsyncpa [#allocation5], 1

</llo_original>
